<compile_context>
chip_gen: v6e
topology: v6e:2x2x1
jax: 0.10.0
libtpu: 0.0.40
codegen_flags: <defaults>
</compile_context>

<pallas_src>
import numpy as np
import jax
import jax.numpy as jnp
from jax.experimental import pallas as pl
from jax.experimental.pallas import tpu as pltpu

NR_MIX = 10                          # mixture components (module default)
OUT_CH = 3                           # fixed to 3 colour channels by the module
D_OUT = (OUT_CH * 3 + 1) * NR_MIX    # = 100
GP = 16                              # padded group size (10 -> 16, 8-sublane aligned)
N_GROUPS = 1 + 3 * OUT_CH            # logit + (mean, log_scale, coeff) per colour = 10
D_PAD = N_GROUPS * GP                # = 160

LOG_1EM5 = float(np.log(1e-5))
LOG_127_5 = float(np.log(127.5))


def _softplus(x):
    return jnp.logaddexp(x, 0.0)


def _tanh_vpu(x):
    """Eigen-style rational tanh: VPU mul/add + one approx reciprocal (err < ~1e-6)."""
    x = jnp.clip(x, -7.90531110763549805, 7.90531110763549805)
    x2 = x * x
    p = x2 * np.float32(-2.76076847742355e-16) + np.float32(2.00018790482477e-13)
    p = x2 * p + np.float32(-8.60467152213735e-11)
    p = x2 * p + np.float32(5.12229709037114e-08)
    p = x2 * p + np.float32(1.48572235717979e-05)
    p = x2 * p + np.float32(6.37261928875436e-04)
    p = x2 * p + np.float32(4.89352455891786e-03)
    p = x * p
    q = x2 * np.float32(1.19825839466702e-06) + np.float32(1.18534705686654e-04)
    q = x2 * q + np.float32(2.26843463243900e-03)
    q = x2 * q + np.float32(4.89352518554385e-03)
    r = pl.reciprocal(q, approx=True)
    r = r * (2.0 - q * r)              # one Newton step (VPU) -> ~1e-7 rel error
    return p * r


def _channel_logprob(xc, mc, lsc):
    """Discretized-logistic per-channel log-prob, cdf_delta handled in log-space."""
    log_scales = jnp.maximum(lsc, -7.0)
    centered = xc - mc
    inv_stdv = jnp.exp(-log_scales)
    plus_in = inv_stdv * (centered + 1.0 / 255.0)
    min_in = inv_stdv * (centered - 1.0 / 255.0)
    sp_p = _softplus(-plus_in)
    sp_m = _softplus(min_in)
    log_cdf_plus = -sp_p                           # = log sigmoid(plus_in)
    log_one_minus_cdf_min = -sp_m                  # = log(1 - sigmoid(min_in))
    log_cdf_min = min_in - sp_m                    # = log sigmoid(min_in)
    diff = jnp.minimum(log_cdf_min - log_cdf_plus, 0.0)
    log_cdf_delta = log_cdf_plus + jnp.log1p(-jnp.exp(diff))   # -inf if delta <= 0
    mid_in = inv_stdv * centered
    log_pdf_mid = mid_in - log_scales - 2.0 * _softplus(mid_in)
    inner_inner = jnp.where(log_cdf_delta > LOG_1EM5,
                            log_cdf_delta,
                            log_pdf_mid - LOG_127_5)
    inner = jnp.where(xc > 0.999, log_one_minus_cdf_min, inner_inner)
    return jnp.where(xc < -0.999, log_cdf_plus, inner)


# ----------------------------------------------------------------------------- #
# Pallas kernel: one (batch b, pixel-tile t) grid point.  Pixels are lanes.
# ----------------------------------------------------------------------------- #
def _dlml_kernel(xp_ref, x_ref, w_ref, b_ref, gn_ref, ln_ref, lp_ref, samp_ref):
    xp = xp_ref[0]                                    # (Cin, T)
    w = w_ref[...]                                    # (D_PAD, Cin)
    bias = b_ref[...]                                 # (D_PAD, 1)

    # 1x1 "dense" layer over the channel dim (MXU), pixels stay in lanes.
    l = jnp.dot(w, xp, preferred_element_type=jnp.float32).astype(jnp.float32) + bias
    T = l.shape[1]

    def grp(g):                                       # aligned 16-sublane group slice
        return l[g * GP:(g + 1) * GP, :]

    logit_probs = grp(0)                              # (16, T); rows 10..15 = -1e9

    # -------- rsample: Gumbel-max selection first (kills raw-group live ranges) ----
    gumbel = logit_probs[:NR_MIX, :] + gn_ref[0]      # (10, T); noise precomputed
    gmax = jnp.max(gumbel, axis=0, keepdims=True)
    ids10 = jax.lax.broadcasted_iota(jnp.int32, gumbel.shape, 0)
    first_max = jnp.min(jnp.where(gumbel >= gmax, ids10, NR_MIX),
                        axis=0, keepdims=True)        # (1, T) argmax (first max)
    ids16 = jax.lax.broadcasted_iota(jnp.int32, (GP, T), 0)
    sel = (ids16 == first_max).astype(jnp.float32)    # one-hot along sublanes

    def select(g):                                    # (1, T) selected row of group g
        return jnp.sum(grp(g) * sel, axis=0, keepdims=True)

    mu0, mu1, mu2 = select(1), select(4), select(7)
    sls0 = jnp.maximum(select(2), -7.0)
    sls1 = jnp.maximum(select(5), -7.0)
    sls2 = jnp.maximum(select(8), -7.0)
    sc0 = _tanh_vpu(select(3))                        # tanh(select) == select(tanh)
    sc1 = _tanh_vpu(select(6))
    sc2 = _tanh_vpu(select(9))

    noise = ln_ref[0]                                 # (3, T) precomputed log u - log(1-u)
    s0 = mu0 + jnp.exp(sls0) * noise[0:1, :]
    s1 = mu1 + jnp.exp(sls1) * noise[1:2, :]
    s2 = mu2 + jnp.exp(sls2) * noise[2:3, :]

    y0 = jnp.clip(s0, -1.0, 1.0)
    y1 = jnp.clip(s1 + sc0 * y0, -1.0, 1.0)
    y2 = jnp.clip(s2 + sc1 * y0 + sc2 * y1, -1.0, 1.0)

    # per-row lane-dense stores (no (3,T) concatenate / relayout)
    samp_ref[0, 0:1, :] = jnp.clip((y0 + 1.0) * 0.5, 0.0, 1.0)
    samp_ref[0, 1:2, :] = jnp.clip((y1 + 1.0) * 0.5, 0.0, 1.0)
    samp_ref[0, 2:3, :] = jnp.clip((y2 + 1.0) * 0.5, 0.0, 1.0)

    # -------- log-likelihood, channel by channel (small live set) -------------------
    xin = x_ref[0] * 2.0 - 1.0                        # (3, T), [0,1] -> [-1,1]
    x0 = xin[0:1, :]
    x1 = xin[1:2, :]
    x2 = xin[2:3, :]

    lp = _channel_logprob(x0, grp(1), grp(2))
    c0 = _tanh_vpu(grp(3))
    lp = lp + _channel_logprob(x1, grp(4) + c0 * x0, grp(5))
    c1 = _tanh_vpu(grp(6))
    c2 = _tanh_vpu(grp(9))
    lp = lp + _channel_logprob(x2, grp(7) + c1 * x0 + c2 * x1, grp(8))   # (16, T)

    # log_softmax over the mixture (sublane) axis; padded rows are ~-1e9.
    lmax = jnp.max(logit_probs, axis=0, keepdims=True)
    lsum = jnp.log(jnp.sum(jnp.exp(logit_probs - lmax), axis=0, keepdims=True))
    comp = lp + (logit_probs - (lmax + lsum))         # (16, T)
    cmax = jnp.max(comp, axis=0, keepdims=True)
    pix_lp = cmax + jnp.log(jnp.sum(jnp.exp(comp - cmax), axis=0, keepdims=True))
    lp_ref[0] = pix_lp                                # (1, T) per-pixel log-probs


# ----------------------------------------------------------------------------- #
# Host-side parameter padding: map D_OUT=100 rows into 10 aligned groups of 16.
# ----------------------------------------------------------------------------- #
def _pad_params(w_rows, bias):
    """w_rows: (D_OUT, Cin) output-major weight-normalized weight; bias: (D_OUT,)."""
    rows = np.zeros(D_OUT, dtype=np.int32)
    for d in range(D_OUT):
        if d < NR_MIX:
            rows[d] = d                                # logit group (group 0)
        else:
            rem = d - NR_MIX
            c = rem // (3 * NR_MIX)                    # colour channel
            sub = (rem % (3 * NR_MIX)) // NR_MIX       # 0=mean, 1=log_scale, 2=coeff
            k = rem % NR_MIX
            rows[d] = (1 + 3 * c + sub) * GP + k
    w_pad = jnp.zeros((D_PAD, w_rows.shape[1]), w_rows.dtype).at[rows].set(w_rows)
    bias_pad = jnp.zeros((D_PAD,), bias.dtype)
    # Padded logit rows -> -1e9 so they never win softmax / Gumbel-max.
    bias_pad = bias_pad.at[NR_MIX:GP].set(-1e9)
    bias_pad = bias_pad.at[rows].set(bias)
    return w_pad, bias_pad.reshape(D_PAD, 1)


def _pick_tile(P, B, tile_p):
    """Largest 128-multiple divisor of P <= tile_p, keeping >=2 grid steps if possible."""
    cands = [t for t in range(128, P + 1, 128) if P % t == 0]
    assert cands, f"P={P} must be a multiple of 128"
    fitting = [t for t in cands if t <= tile_p]
    tile = max(fitting) if fitting else min(cands)
    if B * (P // tile) < 2:                       # v7x: 2 TensorCores, keep both busy
        multi = [t for t in cands if B * (P // t) >= 2]
        if multi:
            tile = max(multi)
    return tile


# ----------------------------------------------------------------------------- #
# Wrapper (glue: reshapes, noise transforms, padding, pallas_call, final reduce)
# ----------------------------------------------------------------------------- #
def dlml_forward(x_p, x, w_rows, bias, ug, ul, tile_p=2048, matmul_dtype=None):
    """
    x_p:    (B, Cin, H, W)  latent features (NCHW)
    x:      (B, 3, H, W)    image in [0, 1]  (NCHW)
    w_rows: (D_OUT, Cin)    weight-normalized dense weight (1x1 conv, output-major)
    bias:   (D_OUT,)
    ug:     (B, NR_MIX, P)  uniforms for Gumbel-max component choice
    ul:     (B, 3, P)       uniforms for logistic noise
    matmul_dtype: optional dtype (e.g. jnp.bfloat16) for the matmul operands only
                  (useful on v5e); elementwise math stays float32.
    """
    B, Cin, H, Wd = x_p.shape
    P = H * Wd
    tile_p = _pick_tile(P, B, tile_p)

    # NCHW -> channels-major, pixel-flattened: no transpose needed (pixels = lanes).
    xp_r = x_p.reshape(B, Cin, P)
    x_r = x.reshape(B, OUT_CH, P)

    w_pad, bias_pad = _pad_params(w_rows, bias)
    if matmul_dtype is not None:
        xp_r = xp_r.astype(matmul_dtype)
        w_pad = w_pad.astype(matmul_dtype)

    # Noise transforms hoisted off the kernel's saturated EUP into mem-bound XLA ops.
    gn = -jnp.log(-jnp.log(ug))                  # (B, NR_MIX, P) Gumbel noise
    ln = jnp.log(ul) - jnp.log(1.0 - ul)         # (B, 3, P) logistic noise

    grid = (B, P // tile_p)
    in_specs = [
        pl.BlockSpec((1, Cin, tile_p), lambda b, t: (b, 0, t)),
        pl.BlockSpec((1, OUT_CH, tile_p), lambda b, t: (b, 0, t)),
        pl.BlockSpec((D_PAD, Cin), lambda b, t: (0, 0)),
        pl.BlockSpec((D_PAD, 1), lambda b, t: (0, 0)),
        pl.BlockSpec((1, NR_MIX, tile_p), lambda b, t: (b, 0, t)),
        pl.BlockSpec((1, OUT_CH, tile_p), lambda b, t: (b, 0, t)),
    ]
    out_specs = (
        pl.BlockSpec((1, 1, tile_p), lambda b, t: (b, 0, t)),       # per-pixel logprob
        pl.BlockSpec((1, OUT_CH, tile_p), lambda b, t: (b, 0, t)),  # samples
    )
    out_shape = (
        jax.ShapeDtypeStruct((B, 1, P), jnp.float32),
        jax.ShapeDtypeStruct((B, OUT_CH, P), jnp.float32),
    )

    lp_flat, samples_flat = pl.pallas_call(
        _dlml_kernel,
        grid=grid,
        in_specs=in_specs,
        out_specs=out_specs,
        out_shape=out_shape,
        compiler_params=pltpu.CompilerParams(
            dimension_semantics=("parallel", "parallel"),
            vmem_limit_bytes=32 * 1024 * 1024),
    )(xp_r, x_r, w_pad, bias_pad, gn, ln)

    pix_lp = lp_flat[:, 0, :]                         # (B, P)
    likelihood = jnp.sum(pix_lp, axis=-1)             # (B,)  final reduce in XLA
    samples = samples_flat.reshape(B, OUT_CH, H, Wd)  # already NCHW-ordered
    return likelihood, pix_lp, samples


# ----------------------------------------------------------------------------- #
# Pure-JAX reference (mirrors the PyTorch code) for verification
# ----------------------------------------------------------------------------- #
def ref_forward(x_p, x01, w_rows, bias, ug, ul):
    B, Cin, H, Wd = x_p.shape
    nm = NR_MIX
    l = jnp.einsum("bchw,dc->bdhw", x_p, w_rows) + bias.reshape(1, -1, 1, 1)

    ll = jnp.transpose(l, (0, 2, 3, 1))                 # (B,H,W,D)
    xl = jnp.transpose(x01 * 2.0 - 1.0, (0, 2, 3, 1))   # (B,H,W,3)

    logit_probs = ll[..., :nm]
    rest = ll[..., nm:].reshape(B, H, Wd, 3, 3 * nm)
    means = rest[..., :nm]
    log_scales = jnp.maximum(rest[..., nm:2 * nm], -7.0)
    coeffs = jnp.tanh(rest[..., 2 * nm:3 * nm])

    xq = xl[..., None]
    m2 = means[..., 1, :] + coeffs[..., 0, :] * xq[..., 0, :]
    m3 = (means[..., 2, :] + coeffs[..., 1, :] * xq[..., 0, :]
          + coeffs[..., 2, :] * xq[..., 1, :])
    means_adj = jnp.stack([means[..., 0, :], m2, m3], axis=-2)

    centered = xq - means_adj
    inv_stdv = jnp.exp(-log_scales)
    plus_in = inv_stdv * (centered + 1.0 / 255.0)
    cdf_plus = jax.nn.sigmoid(plus_in)
    min_in = inv_stdv * (centered - 1.0 / 255.0)
    cdf_min = jax.nn.sigmoid(min_in)
    log_cdf_plus = plus_in - _softplus(plus_in)
    log_one_minus_cdf_min = -_softplus(min_in)
    cdf_delta = cdf_plus - cdf_min
    mid_in = inv_stdv * centered
    log_pdf_mid = mid_in - log_scales - 2.0 * _softplus(mid_in)
    inner_inner = jnp.where(cdf_delta > 1e-5,
                            jnp.log(jnp.maximum(cdf_delta, 1e-12)),
                            log_pdf_mid - np.float32(np.log(127.5)))
    inner = jnp.where(xq > 0.999, log_one_minus_cdf_min, inner_inner)
    lp = jnp.where(xq < -0.999, log_cdf_plus, inner)
    lp = lp.sum(axis=-2)
    lmax = jnp.max(logit_probs, axis=-1, keepdims=True)
    log_sm = logit_probs - (lmax + jnp.log(jnp.sum(jnp.exp(logit_probs - lmax),
                                                   axis=-1, keepdims=True)))
    comp = lp + log_sm
    cmax = jnp.max(comp, axis=-1, keepdims=True)
    pix_lp = (cmax + jnp.log(jnp.sum(jnp.exp(comp - cmax), axis=-1,
                                     keepdims=True)))[..., 0]
    likelihood = pix_lp.sum(axis=(1, 2))

    # sampling
    ugr = jnp.transpose(ug.reshape(B, nm, H, Wd), (0, 2, 3, 1))
    ulr = jnp.transpose(ul.reshape(B, OUT_CH, H, Wd), (0, 2, 3, 1))
    gumbel = logit_probs - jnp.log(-jnp.log(ugr))
    sel = jax.nn.one_hot(jnp.argmax(gumbel, axis=-1), nm)
    mu = jnp.sum(rest[..., :nm] * sel[..., None, :], axis=-1)
    ls = jnp.maximum(jnp.sum(rest[..., nm:2 * nm] * sel[..., None, :], axis=-1), -7.0)
    co = jnp.sum(jnp.tanh(rest[..., 2 * nm:3 * nm]) * sel[..., None, :], axis=-1)
    noise = jnp.log(ulr) - jnp.log(1.0 - ulr)
    xs = mu + jnp.exp(ls) * noise
    y0 = jnp.clip(xs[..., 0], -1.0, 1.0)
    y1 = jnp.clip(xs[..., 1] + co[..., 0] * y0, -1.0, 1.0)
    y2 = jnp.clip(xs[..., 2] + co[..., 1] * y0 + co[..., 2] * y1, -1.0, 1.0)
    out = jnp.stack([y0, y1, y2], axis=-1)
    samples = jnp.clip((out + 1.0) * 0.5, 0.0, 1.0)
    return likelihood, pix_lp.reshape(B, H * Wd), jnp.transpose(samples, (0, 3, 1, 2))


# ----------------------------------------------------------------------------- #
if __name__ == "__main__":
    B, Cin, H, Wd = 2, 32, 16, 16
    P = H * Wd

    key = jax.random.PRNGKey(0)
    kv, kg, kb, kxp, kx, k1, k2 = jax.random.split(key, 7)

    # NormedLinear parameters (weight-normalized linear acting on the channel dim)
    v = jax.random.normal(kv, (D_OUT, Cin), dtype=jnp.float32) * 0.05
    g = 1.0 + 0.1 * jax.random.normal(kg, (D_OUT,), dtype=jnp.float32)
    bias = 0.1 * jax.random.normal(kb, (D_OUT,), dtype=jnp.float32)
    w_rows = g[:, None] * v / jnp.linalg.norm(v, axis=1, keepdims=True)   # (D_OUT, Cin)

    # deterministic inputs
    x_p = jax.random.normal(kxp, (B, Cin, H, Wd), dtype=jnp.float32)        # latent (NCHW)
    x = (jax.random.randint(kx, (B, OUT_CH, H, Wd), 0, 256)
         .astype(jnp.float32) / 255.0)                                      # image in [0,1]
    ug = jax.random.uniform(k1, (B, NR_MIX, P), minval=1e-5, maxval=1.0 - 1e-5,
                            dtype=jnp.float32)
    ul = jax.random.uniform(k2, (B, OUT_CH, P), minval=1e-5, maxval=1.0 - 1e-5,
                            dtype=jnp.float32)

    likelihood, pix_lp, samples = dlml_forward(x_p, x, w_rows, bias, ug, ul)
    jax.block_until_ready((likelihood, pix_lp, samples))

    ref_like, ref_pix_lp, ref_samp = ref_forward(x_p, x, w_rows, bias, ug, ul)

    # per-pixel log-probs (kernel uses log-space cdf_delta -> slightly more accurate
    # than the f32 sigmoid-difference reference; tolerances account for that)
    assert np.allclose(np.asarray(pix_lp), np.asarray(ref_pix_lp),
                       rtol=2e-3, atol=5e-2), \
        float(np.max(np.abs(np.asarray(pix_lp) - np.asarray(ref_pix_lp))))
    # per-image likelihood
    assert np.allclose(np.asarray(likelihood), np.asarray(ref_like),
                       rtol=2e-3, atol=1.0), (likelihood, ref_like)
    # samples: allow a tiny fraction of mismatches from discrete Gumbel-argmax
    # flips caused by ~1e-6 matmul-order differences in the logits.
    diff_bad = np.abs(np.asarray(samples) - np.asarray(ref_samp)) > 1e-2
    assert float(np.mean(diff_bad)) < 5e-3, float(np.mean(diff_bad))

    print("KERNEL_OK")
</pallas_src>

<mosaic_0001>
module attributes {stable_mosaic.version = 11 : i64} {
  func.func @_dlml_kernel(%arg0: i32, %arg1: i32, %arg2: memref<1x32x256xf32, #tpu.memory_space<vmem>>, %arg3: memref<1x3x256xf32, #tpu.memory_space<vmem>>, %arg4: memref<160x32xf32, #tpu.memory_space<vmem>>, %arg5: memref<160x1xf32, #tpu.memory_space<vmem>>, %arg6: memref<1x10x256xf32, #tpu.memory_space<vmem>>, %arg7: memref<1x3x256xf32, #tpu.memory_space<vmem>>, %arg8: memref<1x1x256xf32, #tpu.memory_space<vmem>>, %arg9: memref<1x3x256xf32, #tpu.memory_space<vmem>>) attributes {dimension_semantics = [#tpu.dimension_semantics<parallel>, #tpu.dimension_semantics<parallel>], iteration_bounds = array<i64: 2, 1>, scalar_prefetch = 0 : i64, scratch_operands = 0 : i64, tpu.core_type = #tpu.core_type<tc>, window_params = [{transform_indices = @transform_0, window_bounds = array<i64: 1, 32, 256>}, {transform_indices = @transform_1, window_bounds = array<i64: 1, 3, 256>}, {pipeline_mode = #tpu.pipeline_mode<synchronous>, transform_indices = @transform_2, window_bounds = array<i64: 160, 32>}, {pipeline_mode = #tpu.pipeline_mode<synchronous>, transform_indices = @transform_3, window_bounds = array<i64: 160, 1>}, {transform_indices = @transform_4, window_bounds = array<i64: 1, 10, 256>}, {transform_indices = @transform_5, window_bounds = array<i64: 1, 3, 256>}, {transform_indices = @transform_6, window_bounds = array<i64: 1, 1, 256>}, {transform_indices = @transform_7, window_bounds = array<i64: 1, 3, 256>}]} {
    %c0 = arith.constant 0 : index
    %c0_0 = arith.constant 0 : index
    %c0_1 = arith.constant 0 : index
    %0 = vector.load %arg2[%c0, %c0_0, %c0_1] : memref<1x32x256xf32, #tpu.memory_space<vmem>>, vector<1x32x256xf32>
    %1 = vector.shape_cast %0 : vector<1x32x256xf32> to vector<32x256xf32>
    %c0_2 = arith.constant 0 : index
    %c0_3 = arith.constant 0 : index
    %2 = vector.load %arg4[%c0_2, %c0_3] : memref<160x32xf32, #tpu.memory_space<vmem>>, vector<160x32xf32>
    %c0_4 = arith.constant 0 : index
    %c0_5 = arith.constant 0 : index
    %3 = vector.load %arg5[%c0_4, %c0_5] : memref<160x1xf32, #tpu.memory_space<vmem>>, vector<160x1xf32>
    %cst = arith.constant dense<0.000000e+00> : vector<160x256xf32>
    %4 = tpu.matmul %2, %1, %cst {dimension_numbers = #tpu.dot_dimension_numbers<[1], [0], [0], [1], [0, 0, 1, 1], [], []>} : vector<160x32xf32>, vector<32x256xf32>, vector<160x256xf32> -> vector<160x256xf32>
    %5 = vector.broadcast %3 : vector<160x1xf32> to vector<160x256xf32>
    %6 = arith.addf %4, %5 : vector<160x256xf32>
    %7 = vector.extract_strided_slice %6 {offsets = [0, 0], sizes = [16, 256], strides = [1, 1]} : vector<160x256xf32> to vector<16x256xf32>
    %8 = vector.extract_strided_slice %7 {offsets = [0, 0], sizes = [10, 256], strides = [1, 1]} : vector<16x256xf32> to vector<10x256xf32>
    %c0_6 = arith.constant 0 : index
    %c0_7 = arith.constant 0 : index
    %c0_8 = arith.constant 0 : index
    %9 = vector.load %arg6[%c0_6, %c0_7, %c0_8] : memref<1x10x256xf32, #tpu.memory_space<vmem>>, vector<1x10x256xf32>
    %10 = vector.shape_cast %9 : vector<1x10x256xf32> to vector<10x256xf32>
    %11 = arith.addf %8, %10 : vector<10x256xf32>
    %cst_9 = arith.constant dense<0xFF800000> : vector<256xf32>
    %12 = vector.multi_reduction <maximumf>, %11, %cst_9 [0] : vector<10x256xf32> to vector<256xf32>
    %13 = vector.shape_cast %12 : vector<256xf32> to vector<1x256xf32>
    %14 = tpu.iota {dimensions = array<i32: 0>} : vector<10x256xi32>
    %15 = vector.broadcast %13 : vector<1x256xf32> to vector<10x256xf32>
    %16 = arith.cmpf oge, %11, %15 : vector<10x256xf32>
    %c10_i32 = arith.constant 10 : i32
    %17 = vector.broadcast %c10_i32 : i32 to vector<10x256xi32>
    %18 = arith.select %16, %14, %17 : vector<10x256xi1>, vector<10x256xi32>
    %cst_10 = arith.constant dense<2147483647> : vector<256xi32>
    %19 = vector.multi_reduction <minsi>, %18, %cst_10 [0] : vector<10x256xi32> to vector<256xi32>
    %20 = vector.shape_cast %19 : vector<256xi32> to vector<1x256xi32>
    %21 = tpu.iota {dimensions = array<i32: 0>} : vector<16x256xi32>
    %22 = vector.broadcast %20 : vector<1x256xi32> to vector<16x256xi32>
    %23 = arith.cmpi eq, %21, %22 : vector<16x256xi32>
    %24 = arith.extui %23 : vector<16x256xi1> to vector<16x256xi32>
    %25 = arith.sitofp %24 : vector<16x256xi32> to vector<16x256xf32>
    %26 = vector.extract_strided_slice %6 {offsets = [16, 0], sizes = [16, 256], strides = [1, 1]} : vector<160x256xf32> to vector<16x256xf32>
    %27 = arith.mulf %26, %25 : vector<16x256xf32>
    %cst_11 = arith.constant dense<0.000000e+00> : vector<256xf32>
    %28 = vector.multi_reduction <add>, %27, %cst_11 [0] : vector<16x256xf32> to vector<256xf32>
    %29 = vector.shape_cast %28 : vector<256xf32> to vector<1x256xf32>
    %30 = vector.extract_strided_slice %6 {offsets = [64, 0], sizes = [16, 256], strides = [1, 1]} : vector<160x256xf32> to vector<16x256xf32>
    %31 = arith.mulf %30, %25 : vector<16x256xf32>
    %cst_12 = arith.constant dense<0.000000e+00> : vector<256xf32>
    %32 = vector.multi_reduction <add>, %31, %cst_12 [0] : vector<16x256xf32> to vector<256xf32>
    %33 = vector.shape_cast %32 : vector<256xf32> to vector<1x256xf32>
    %34 = vector.extract_strided_slice %6 {offsets = [112, 0], sizes = [16, 256], strides = [1, 1]} : vector<160x256xf32> to vector<16x256xf32>
    %35 = arith.mulf %34, %25 : vector<16x256xf32>
    %cst_13 = arith.constant dense<0.000000e+00> : vector<256xf32>
    %36 = vector.multi_reduction <add>, %35, %cst_13 [0] : vector<16x256xf32> to vector<256xf32>
    %37 = vector.shape_cast %36 : vector<256xf32> to vector<1x256xf32>
    %38 = vector.extract_strided_slice %6 {offsets = [32, 0], sizes = [16, 256], strides = [1, 1]} : vector<160x256xf32> to vector<16x256xf32>
    %39 = arith.mulf %38, %25 : vector<16x256xf32>
    %cst_14 = arith.constant dense<0.000000e+00> : vector<256xf32>
    %40 = vector.multi_reduction <add>, %39, %cst_14 [0] : vector<16x256xf32> to vector<256xf32>
    %41 = vector.shape_cast %40 : vector<256xf32> to vector<1x256xf32>
    %cst_15 = arith.constant -7.000000e+00 : f32
    %42 = vector.broadcast %cst_15 : f32 to vector<1x256xf32>
    %43 = arith.maximumf %41, %42 : vector<1x256xf32>
    %44 = vector.extract_strided_slice %6 {offsets = [80, 0], sizes = [16, 256], strides = [1, 1]} : vector<160x256xf32> to vector<16x256xf32>
    %45 = arith.mulf %44, %25 : vector<16x256xf32>
    %cst_16 = arith.constant dense<0.000000e+00> : vector<256xf32>
    %46 = vector.multi_reduction <add>, %45, %cst_16 [0] : vector<16x256xf32> to vector<256xf32>
    %47 = vector.shape_cast %46 : vector<256xf32> to vector<1x256xf32>
    %cst_17 = arith.constant -7.000000e+00 : f32
    %48 = vector.broadcast %cst_17 : f32 to vector<1x256xf32>
    %49 = arith.maximumf %47, %48 : vector<1x256xf32>
    %50 = vector.extract_strided_slice %6 {offsets = [128, 0], sizes = [16, 256], strides = [1, 1]} : vector<160x256xf32> to vector<16x256xf32>
    %51 = arith.mulf %50, %25 : vector<16x256xf32>
    %cst_18 = arith.constant dense<0.000000e+00> : vector<256xf32>
    %52 = vector.multi_reduction <add>, %51, %cst_18 [0] : vector<16x256xf32> to vector<256xf32>
    %53 = vector.shape_cast %52 : vector<256xf32> to vector<1x256xf32>
    %cst_19 = arith.constant -7.000000e+00 : f32
    %54 = vector.broadcast %cst_19 : f32 to vector<1x256xf32>
    %55 = arith.maximumf %53, %54 : vector<1x256xf32>
    %56 = vector.extract_strided_slice %6 {offsets = [48, 0], sizes = [16, 256], strides = [1, 1]} : vector<160x256xf32> to vector<16x256xf32>
    %57 = arith.mulf %56, %25 : vector<16x256xf32>
    %cst_20 = arith.constant dense<0.000000e+00> : vector<256xf32>
    %58 = vector.multi_reduction <add>, %57, %cst_20 [0] : vector<16x256xf32> to vector<256xf32>
    %59 = vector.shape_cast %58 : vector<256xf32> to vector<1x256xf32>
    %cst_21 = arith.constant -7.90531111 : f32
    %cst_22 = arith.constant 7.90531111 : f32
    %60 = vector.broadcast %cst_21 : f32 to vector<1x256xf32>
    %61 = arith.maximumf %60, %59 : vector<1x256xf32>
    %62 = vector.broadcast %cst_22 : f32 to vector<1x256xf32>
    %63 = arith.minimumf %62, %61 : vector<1x256xf32>
    %64 = arith.mulf %63, %63 : vector<1x256xf32>
    %cst_23 = arith.constant -2.76076837E-16 : f32
    %65 = vector.broadcast %cst_23 : f32 to vector<1x256xf32>
    %66 = arith.mulf %64, %65 : vector<1x256xf32>
    %cst_24 = arith.constant 2.00018794E-13 : f32
    %67 = vector.broadcast %cst_24 : f32 to vector<1x256xf32>
    %68 = arith.addf %66, %67 : vector<1x256xf32>
    %69 = arith.mulf %64, %68 : vector<1x256xf32>
    %cst_25 = arith.constant -8.60467184E-11 : f32
    %70 = vector.broadcast %cst_25 : f32 to vector<1x256xf32>
    %71 = arith.addf %69, %70 : vector<1x256xf32>
    %72 = arith.mulf %64, %71 : vector<1x256xf32>
    %cst_26 = arith.constant 5.12229725E-8 : f32
    %73 = vector.broadcast %cst_26 : f32 to vector<1x256xf32>
    %74 = arith.addf %72, %73 : vector<1x256xf32>
    %75 = arith.mulf %64, %74 : vector<1x256xf32>
    %cst_27 = arith.constant 1.48572235E-5 : f32
    %76 = vector.broadcast %cst_27 : f32 to vector<1x256xf32>
    %77 = arith.addf %75, %76 : vector<1x256xf32>
    %78 = arith.mulf %64, %77 : vector<1x256xf32>
    %cst_28 = arith.constant 6.37261954E-4 : f32
    %79 = vector.broadcast %cst_28 : f32 to vector<1x256xf32>
    %80 = arith.addf %78, %79 : vector<1x256xf32>
    %81 = arith.mulf %64, %80 : vector<1x256xf32>
    %cst_29 = arith.constant 0.00489352457 : f32
    %82 = vector.broadcast %cst_29 : f32 to vector<1x256xf32>
    %83 = arith.addf %81, %82 : vector<1x256xf32>
    %84 = arith.mulf %63, %83 : vector<1x256xf32>
    %cst_30 = arith.constant 1.19825836E-6 : f32
    %85 = vector.broadcast %cst_30 : f32 to vector<1x256xf32>
    %86 = arith.mulf %64, %85 : vector<1x256xf32>
    %cst_31 = arith.constant 1.18534706E-4 : f32
    %87 = vector.broadcast %cst_31 : f32 to vector<1x256xf32>
    %88 = arith.addf %86, %87 : vector<1x256xf32>
    %89 = arith.mulf %64, %88 : vector<1x256xf32>
    %cst_32 = arith.constant 0.00226843474 : f32
    %90 = vector.broadcast %cst_32 : f32 to vector<1x256xf32>
    %91 = arith.addf %89, %90 : vector<1x256xf32>
    %92 = arith.mulf %64, %91 : vector<1x256xf32>
    %cst_33 = arith.constant 0.00489352504 : f32
    %93 = vector.broadcast %cst_33 : f32 to vector<1x256xf32>
    %94 = arith.addf %92, %93 : vector<1x256xf32>
    %95 = tpu.reciprocal %94 {approx = true} : vector<1x256xf32> -> vector<1x256xf32>
    %96 = arith.mulf %94, %95 : vector<1x256xf32>
    %cst_34 = arith.constant 2.000000e+00 : f32
    %97 = vector.broadcast %cst_34 : f32 to vector<1x256xf32>
    %98 = arith.subf %97, %96 : vector<1x256xf32>
    %99 = arith.mulf %95, %98 : vector<1x256xf32>
    %100 = arith.mulf %84, %99 : vector<1x256xf32>
    %101 = vector.extract_strided_slice %6 {offsets = [96, 0], sizes = [16, 256], strides = [1, 1]} : vector<160x256xf32> to vector<16x256xf32>
    %102 = arith.mulf %101, %25 : vector<16x256xf32>
    %cst_35 = arith.constant dense<0.000000e+00> : vector<256xf32>
    %103 = vector.multi_reduction <add>, %102, %cst_35 [0] : vector<16x256xf32> to vector<256xf32>
    %104 = vector.shape_cast %103 : vector<256xf32> to vector<1x256xf32>
    %cst_36 = arith.constant -7.90531111 : f32
    %cst_37 = arith.constant 7.90531111 : f32
    %105 = vector.broadcast %cst_36 : f32 to vector<1x256xf32>
    %106 = arith.maximumf %105, %104 : vector<1x256xf32>
    %107 = vector.broadcast %cst_37 : f32 to vector<1x256xf32>
    %108 = arith.minimumf %107, %106 : vector<1x256xf32>
    %109 = arith.mulf %108, %108 : vector<1x256xf32>
    %cst_38 = arith.constant -2.76076837E-16 : f32
    %110 = vector.broadcast %cst_38 : f32 to vector<1x256xf32>
    %111 = arith.mulf %109, %110 : vector<1x256xf32>
    %cst_39 = arith.constant 2.00018794E-13 : f32
    %112 = vector.broadcast %cst_39 : f32 to vector<1x256xf32>
    %113 = arith.addf %111, %112 : vector<1x256xf32>
    %114 = arith.mulf %109, %113 : vector<1x256xf32>
    %cst_40 = arith.constant -8.60467184E-11 : f32
    %115 = vector.broadcast %cst_40 : f32 to vector<1x256xf32>
    %116 = arith.addf %114, %115 : vector<1x256xf32>
    %117 = arith.mulf %109, %116 : vector<1x256xf32>
    %cst_41 = arith.constant 5.12229725E-8 : f32
    %118 = vector.broadcast %cst_41 : f32 to vector<1x256xf32>
    %119 = arith.addf %117, %118 : vector<1x256xf32>
    %120 = arith.mulf %109, %119 : vector<1x256xf32>
    %cst_42 = arith.constant 1.48572235E-5 : f32
    %121 = vector.broadcast %cst_42 : f32 to vector<1x256xf32>
    %122 = arith.addf %120, %121 : vector<1x256xf32>
    %123 = arith.mulf %109, %122 : vector<1x256xf32>
    %cst_43 = arith.constant 6.37261954E-4 : f32
    %124 = vector.broadcast %cst_43 : f32 to vector<1x256xf32>
    %125 = arith.addf %123, %124 : vector<1x256xf32>
    %126 = arith.mulf %109, %125 : vector<1x256xf32>
    %cst_44 = arith.constant 0.00489352457 : f32
    %127 = vector.broadcast %cst_44 : f32 to vector<1x256xf32>
    %128 = arith.addf %126, %127 : vector<1x256xf32>
    %129 = arith.mulf %108, %128 : vector<1x256xf32>
    %cst_45 = arith.constant 1.19825836E-6 : f32
    %130 = vector.broadcast %cst_45 : f32 to vector<1x256xf32>
    %131 = arith.mulf %109, %130 : vector<1x256xf32>
    %cst_46 = arith.constant 1.18534706E-4 : f32
    %132 = vector.broadcast %cst_46 : f32 to vector<1x256xf32>
    %133 = arith.addf %131, %132 : vector<1x256xf32>
    %134 = arith.mulf %109, %133 : vector<1x256xf32>
    %cst_47 = arith.constant 0.00226843474 : f32
    %135 = vector.broadcast %cst_47 : f32 to vector<1x256xf32>
    %136 = arith.addf %134, %135 : vector<1x256xf32>
    %137 = arith.mulf %109, %136 : vector<1x256xf32>
    %cst_48 = arith.constant 0.00489352504 : f32
    %138 = vector.broadcast %cst_48 : f32 to vector<1x256xf32>
    %139 = arith.addf %137, %138 : vector<1x256xf32>
    %140 = tpu.reciprocal %139 {approx = true} : vector<1x256xf32> -> vector<1x256xf32>
    %141 = arith.mulf %139, %140 : vector<1x256xf32>
    %cst_49 = arith.constant 2.000000e+00 : f32
    %142 = vector.broadcast %cst_49 : f32 to vector<1x256xf32>
    %143 = arith.subf %142, %141 : vector<1x256xf32>
    %144 = arith.mulf %140, %143 : vector<1x256xf32>
    %145 = arith.mulf %129, %144 : vector<1x256xf32>
    %146 = vector.extract_strided_slice %6 {offsets = [144, 0], sizes = [16, 256], strides = [1, 1]} : vector<160x256xf32> to vector<16x256xf32>
    %147 = arith.mulf %146, %25 : vector<16x256xf32>
    %cst_50 = arith.constant dense<0.000000e+00> : vector<256xf32>
    %148 = vector.multi_reduction <add>, %147, %cst_50 [0] : vector<16x256xf32> to vector<256xf32>
    %149 = vector.shape_cast %148 : vector<256xf32> to vector<1x256xf32>
    %cst_51 = arith.constant -7.90531111 : f32
    %cst_52 = arith.constant 7.90531111 : f32
    %150 = vector.broadcast %cst_51 : f32 to vector<1x256xf32>
    %151 = arith.maximumf %150, %149 : vector<1x256xf32>
    %152 = vector.broadcast %cst_52 : f32 to vector<1x256xf32>
    %153 = arith.minimumf %152, %151 : vector<1x256xf32>
    %154 = arith.mulf %153, %153 : vector<1x256xf32>
    %cst_53 = arith.constant -2.76076837E-16 : f32
    %155 = vector.broadcast %cst_53 : f32 to vector<1x256xf32>
    %156 = arith.mulf %154, %155 : vector<1x256xf32>
    %cst_54 = arith.constant 2.00018794E-13 : f32
    %157 = vector.broadcast %cst_54 : f32 to vector<1x256xf32>
    %158 = arith.addf %156, %157 : vector<1x256xf32>
    %159 = arith.mulf %154, %158 : vector<1x256xf32>
    %cst_55 = arith.constant -8.60467184E-11 : f32
    %160 = vector.broadcast %cst_55 : f32 to vector<1x256xf32>
    %161 = arith.addf %159, %160 : vector<1x256xf32>
    %162 = arith.mulf %154, %161 : vector<1x256xf32>
    %cst_56 = arith.constant 5.12229725E-8 : f32
    %163 = vector.broadcast %cst_56 : f32 to vector<1x256xf32>
    %164 = arith.addf %162, %163 : vector<1x256xf32>
    %165 = arith.mulf %154, %164 : vector<1x256xf32>
    %cst_57 = arith.constant 1.48572235E-5 : f32
    %166 = vector.broadcast %cst_57 : f32 to vector<1x256xf32>
    %167 = arith.addf %165, %166 : vector<1x256xf32>
    %168 = arith.mulf %154, %167 : vector<1x256xf32>
    %cst_58 = arith.constant 6.37261954E-4 : f32
    %169 = vector.broadcast %cst_58 : f32 to vector<1x256xf32>
    %170 = arith.addf %168, %169 : vector<1x256xf32>
    %171 = arith.mulf %154, %170 : vector<1x256xf32>
    %cst_59 = arith.constant 0.00489352457 : f32
    %172 = vector.broadcast %cst_59 : f32 to vector<1x256xf32>
    %173 = arith.addf %171, %172 : vector<1x256xf32>
    %174 = arith.mulf %153, %173 : vector<1x256xf32>
    %cst_60 = arith.constant 1.19825836E-6 : f32
    %175 = vector.broadcast %cst_60 : f32 to vector<1x256xf32>
    %176 = arith.mulf %154, %175 : vector<1x256xf32>
    %cst_61 = arith.constant 1.18534706E-4 : f32
    %177 = vector.broadcast %cst_61 : f32 to vector<1x256xf32>
    %178 = arith.addf %176, %177 : vector<1x256xf32>
    %179 = arith.mulf %154, %178 : vector<1x256xf32>
    %cst_62 = arith.constant 0.00226843474 : f32
    %180 = vector.broadcast %cst_62 : f32 to vector<1x256xf32>
    %181 = arith.addf %179, %180 : vector<1x256xf32>
    %182 = arith.mulf %154, %181 : vector<1x256xf32>
    %cst_63 = arith.constant 0.00489352504 : f32
    %183 = vector.broadcast %cst_63 : f32 to vector<1x256xf32>
    %184 = arith.addf %182, %183 : vector<1x256xf32>
    %185 = tpu.reciprocal %184 {approx = true} : vector<1x256xf32> -> vector<1x256xf32>
    %186 = arith.mulf %184, %185 : vector<1x256xf32>
    %cst_64 = arith.constant 2.000000e+00 : f32
    %187 = vector.broadcast %cst_64 : f32 to vector<1x256xf32>
    %188 = arith.subf %187, %186 : vector<1x256xf32>
    %189 = arith.mulf %185, %188 : vector<1x256xf32>
    %190 = arith.mulf %174, %189 : vector<1x256xf32>
    %c0_65 = arith.constant 0 : index
    %c0_66 = arith.constant 0 : index
    %c0_67 = arith.constant 0 : index
    %191 = vector.load %arg7[%c0_65, %c0_66, %c0_67] : memref<1x3x256xf32, #tpu.memory_space<vmem>>, vector<1x3x256xf32>
    %192 = vector.shape_cast %191 : vector<1x3x256xf32> to vector<3x256xf32>
    %193 = math.exp %43 : vector<1x256xf32>
    %194 = vector.extract_strided_slice %192 {offsets = [0, 0], sizes = [1, 256], strides = [1, 1]} : vector<3x256xf32> to vector<1x256xf32>
    %195 = arith.mulf %193, %194 : vector<1x256xf32>
    %196 = arith.addf %29, %195 : vector<1x256xf32>
    %197 = math.exp %49 : vector<1x256xf32>
    %198 = vector.extract_strided_slice %192 {offsets = [1, 0], sizes = [1, 256], strides = [1, 1]} : vector<3x256xf32> to vector<1x256xf32>
    %199 = arith.mulf %197, %198 : vector<1x256xf32>
    %200 = arith.addf %33, %199 : vector<1x256xf32>
    %201 = math.exp %55 : vector<1x256xf32>
    %202 = vector.extract_strided_slice %192 {offsets = [2, 0], sizes = [1, 256], strides = [1, 1]} : vector<3x256xf32> to vector<1x256xf32>
    %203 = arith.mulf %201, %202 : vector<1x256xf32>
    %204 = arith.addf %37, %203 : vector<1x256xf32>
    %cst_68 = arith.constant -1.000000e+00 : f32
    %cst_69 = arith.constant 1.000000e+00 : f32
    %205 = vector.broadcast %cst_68 : f32 to vector<1x256xf32>
    %206 = arith.maximumf %205, %196 : vector<1x256xf32>
    %207 = vector.broadcast %cst_69 : f32 to vector<1x256xf32>
    %208 = arith.minimumf %207, %206 : vector<1x256xf32>
    %209 = arith.mulf %100, %208 : vector<1x256xf32>
    %210 = arith.addf %200, %209 : vector<1x256xf32>
    %cst_70 = arith.constant -1.000000e+00 : f32
    %cst_71 = arith.constant 1.000000e+00 : f32
    %211 = vector.broadcast %cst_70 : f32 to vector<1x256xf32>
    %212 = arith.maximumf %211, %210 : vector<1x256xf32>
    %213 = vector.broadcast %cst_71 : f32 to vector<1x256xf32>
    %214 = arith.minimumf %213, %212 : vector<1x256xf32>
    %215 = arith.mulf %145, %208 : vector<1x256xf32>
    %216 = arith.addf %204, %215 : vector<1x256xf32>
    %217 = arith.mulf %190, %214 : vector<1x256xf32>
    %218 = arith.addf %216, %217 : vector<1x256xf32>
    %cst_72 = arith.constant -1.000000e+00 : f32
    %cst_73 = arith.constant 1.000000e+00 : f32
    %219 = vector.broadcast %cst_72 : f32 to vector<1x256xf32>
    %220 = arith.maximumf %219, %218 : vector<1x256xf32>
    %221 = vector.broadcast %cst_73 : f32 to vector<1x256xf32>
    %222 = arith.minimumf %221, %220 : vector<1x256xf32>
    %cst_74 = arith.constant 1.000000e+00 : f32
    %223 = vector.broadcast %cst_74 : f32 to vector<1x256xf32>
    %224 = arith.addf %208, %223 : vector<1x256xf32>
    %cst_75 = arith.constant 5.000000e-01 : f32
    %225 = vector.broadcast %cst_75 : f32 to vector<1x256xf32>
    %226 = arith.mulf %224, %225 : vector<1x256xf32>
    %cst_76 = arith.constant 0.000000e+00 : f32
    %cst_77 = arith.constant 1.000000e+00 : f32
    %227 = vector.broadcast %cst_76 : f32 to vector<1x256xf32>
    %228 = arith.maximumf %227, %226 : vector<1x256xf32>
    %229 = vector.broadcast %cst_77 : f32 to vector<1x256xf32>
    %230 = arith.minimumf %229, %228 : vector<1x256xf32>
    %c0_78 = arith.constant 0 : index
    %c0_79 = arith.constant 0 : index
    %c0_80 = arith.constant 0 : index
    %231 = vector.load %arg9[%c0_78, %c0_79, %c0_80] : memref<1x3x256xf32, #tpu.memory_space<vmem>>, vector<1x1x256xf32>
    %232 = vector.shape_cast %231 : vector<1x1x256xf32> to vector<1x256xf32>
    %233 = vector.shape_cast %230 : vector<1x256xf32> to vector<1x1x256xf32>
    tpu.vector_store %arg9[%c0_78, %c0_79, %c0_80], %233 {strides = array<i32>} : memref<1x3x256xf32, #tpu.memory_space<vmem>>, vector<1x1x256xf32>,
    %cst_81 = arith.constant 1.000000e+00 : f32
    %234 = vector.broadcast %cst_81 : f32 to vector<1x256xf32>
    %235 = arith.addf %214, %234 : vector<1x256xf32>
    %cst_82 = arith.constant 5.000000e-01 : f32
    %236 = vector.broadcast %cst_82 : f32 to vector<1x256xf32>
    %237 = arith.mulf %235, %236 : vector<1x256xf32>
    %cst_83 = arith.constant 0.000000e+00 : f32
    %cst_84 = arith.constant 1.000000e+00 : f32
    %238 = vector.broadcast %cst_83 : f32 to vector<1x256xf32>
    %239 = arith.maximumf %238, %237 : vector<1x256xf32>
    %240 = vector.broadcast %cst_84 : f32 to vector<1x256xf32>
    %241 = arith.minimumf %240, %239 : vector<1x256xf32>
    %c0_85 = arith.constant 0 : index
    %c1 = arith.constant 1 : index
    %c0_86 = arith.constant 0 : index
    %242 = vector.load %arg9[%c0_85, %c1, %c0_86] : memref<1x3x256xf32, #tpu.memory_space<vmem>>, vector<1x1x256xf32>
    %243 = vector.shape_cast %242 : vector<1x1x256xf32> to vector<1x256xf32>
    %244 = vector.shape_cast %241 : vector<1x256xf32> to vector<1x1x256xf32>
    tpu.vector_store %arg9[%c0_85, %c1, %c0_86], %244 {strides = array<i32>} : memref<1x3x256xf32, #tpu.memory_space<vmem>>, vector<1x1x256xf32>,
    %cst_87 = arith.constant 1.000000e+00 : f32
    %245 = vector.broadcast %cst_87 : f32 to vector<1x256xf32>
    %246 = arith.addf %222, %245 : vector<1x256xf32>
    %cst_88 = arith.constant 5.000000e-01 : f32
    %247 = vector.broadcast %cst_88 : f32 to vector<1x256xf32>
    %248 = arith.mulf %246, %247 : vector<1x256xf32>
    %cst_89 = arith.constant 0.000000e+00 : f32
    %cst_90 = arith.constant 1.000000e+00 : f32
    %249 = vector.broadcast %cst_89 : f32 to vector<1x256xf32>
    %250 = arith.maximumf %249, %248 : vector<1x256xf32>
    %251 = vector.broadcast %cst_90 : f32 to vector<1x256xf32>
    %252 = arith.minimumf %251, %250 : vector<1x256xf32>
    %c0_91 = arith.constant 0 : index
    %c2 = arith.constant 2 : index
    %c0_92 = arith.constant 0 : index
    %253 = vector.load %arg9[%c0_91, %c2, %c0_92] : memref<1x3x256xf32, #tpu.memory_space<vmem>>, vector<1x1x256xf32>
    %254 = vector.shape_cast %253 : vector<1x1x256xf32> to vector<1x256xf32>
    %255 = vector.shape_cast %252 : vector<1x256xf32> to vector<1x1x256xf32>
    tpu.vector_store %arg9[%c0_91, %c2, %c0_92], %255 {strides = array<i32>} : memref<1x3x256xf32, #tpu.memory_space<vmem>>, vector<1x1x256xf32>,
    %c0_93 = arith.constant 0 : index
    %c0_94 = arith.constant 0 : index
    %c0_95 = arith.constant 0 : index
    %256 = vector.load %arg3[%c0_93, %c0_94, %c0_95] : memref<1x3x256xf32, #tpu.memory_space<vmem>>, vector<1x3x256xf32>
    %257 = vector.shape_cast %256 : vector<1x3x256xf32> to vector<3x256xf32>
    %cst_96 = arith.constant 2.000000e+00 : f32
    %258 = vector.broadcast %cst_96 : f32 to vector<3x256xf32>
    %259 = arith.mulf %257, %258 : vector<3x256xf32>
    %cst_97 = arith.constant 1.000000e+00 : f32
    %260 = vector.broadcast %cst_97 : f32 to vector<3x256xf32>
    %261 = arith.subf %259, %260 : vector<3x256xf32>
    %262 = vector.extract_strided_slice %261 {offsets = [0, 0], sizes = [1, 256], strides = [1, 1]} : vector<3x256xf32> to vector<1x256xf32>
    %263 = vector.extract_strided_slice %261 {offsets = [1, 0], sizes = [1, 256], strides = [1, 1]} : vector<3x256xf32> to vector<1x256xf32>
    %264 = vector.extract_strided_slice %261 {offsets = [2, 0], sizes = [1, 256], strides = [1, 1]} : vector<3x256xf32> to vector<1x256xf32>
    %265 = vector.extract_strided_slice %6 {offsets = [16, 0], sizes = [16, 256], strides = [1, 1]} : vector<160x256xf32> to vector<16x256xf32>
    %266 = vector.extract_strided_slice %6 {offsets = [32, 0], sizes = [16, 256], strides = [1, 1]} : vector<160x256xf32> to vector<16x256xf32>
    %cst_98 = arith.constant -7.000000e+00 : f32
    %267 = vector.broadcast %cst_98 : f32 to vector<16x256xf32>
    %268 = arith.maximumf %266, %267 : vector<16x256xf32>
    %269 = vector.broadcast %262 : vector<1x256xf32> to vector<16x256xf32>
    %270 = arith.subf %269, %265 : vector<16x256xf32>
    %cst_99 = arith.constant 0.000000e+00 : f32
    %271 = vector.broadcast %cst_99 : f32 to vector<16x256xf32>
    %272 = arith.subf %271, %268 : vector<16x256xf32>
    %273 = math.exp %272 : vector<16x256xf32>
    %cst_100 = arith.constant 0.00392156886 : f32
    %274 = vector.broadcast %cst_100 : f32 to vector<16x256xf32>
    %275 = arith.addf %270, %274 : vector<16x256xf32>
    %276 = arith.mulf %273, %275 : vector<16x256xf32>
    %cst_101 = arith.constant 0.00392156886 : f32
    %277 = vector.broadcast %cst_101 : f32 to vector<16x256xf32>
    %278 = arith.subf %270, %277 : vector<16x256xf32>
    %279 = arith.mulf %273, %278 : vector<16x256xf32>
    %cst_102 = arith.constant 0.000000e+00 : f32
    %280 = vector.broadcast %cst_102 : f32 to vector<16x256xf32>
    %281 = arith.subf %280, %276 : vector<16x256xf32>
    %cst_103 = arith.constant 0.000000e+00 : f32
    %282 = vector.broadcast %cst_103 : f32 to vector<16x256xf32>
    %283 = arith.maximumf %281, %282 : vector<16x256xf32>
    %284 = vector.broadcast %cst_103 : f32 to vector<16x256xf32>
    %285 = arith.subf %281, %284 : vector<16x256xf32>
    %286 = arith.cmpf one, %285, %285 : vector<16x256xf32>
    %287 = vector.broadcast %cst_103 : f32 to vector<16x256xf32>
    %288 = arith.addf %281, %287 : vector<16x256xf32>
    %289 = math.absf %285 : vector<16x256xf32>
    %cst_104 = arith.constant 0.000000e+00 : f32
    %290 = vector.broadcast %cst_104 : f32 to vector<16x256xf32>
    %291 = arith.subf %290, %289 : vector<16x256xf32>
    %292 = math.exp %291 : vector<16x256xf32>
    %293 = math.log1p %292 : vector<16x256xf32>
    %294 = arith.addf %283, %293 : vector<16x256xf32>
    %295 = arith.select %286, %288, %294 : vector<16x256xi1>, vector<16x256xf32>
    %cst_105 = arith.constant 0.000000e+00 : f32
    %296 = vector.broadcast %cst_105 : f32 to vector<16x256xf32>
    %297 = arith.maximumf %279, %296 : vector<16x256xf32>
    %298 = vector.broadcast %cst_105 : f32 to vector<16x256xf32>
    %299 = arith.subf %279, %298 : vector<16x256xf32>
    %300 = arith.cmpf one, %299, %299 : vector<16x256xf32>
    %301 = vector.broadcast %cst_105 : f32 to vector<16x256xf32>
    %302 = arith.addf %279, %301 : vector<16x256xf32>
    %303 = math.absf %299 : vector<16x256xf32>
    %cst_106 = arith.constant 0.000000e+00 : f32
    %304 = vector.broadcast %cst_106 : f32 to vector<16x256xf32>
    %305 = arith.subf %304, %303 : vector<16x256xf32>
    %306 = math.exp %305 : vector<16x256xf32>
    %307 = math.log1p %306 : vector<16x256xf32>
    %308 = arith.addf %297, %307 : vector<16x256xf32>
    %309 = arith.select %300, %302, %308 : vector<16x256xi1>, vector<16x256xf32>
    %cst_107 = arith.constant 0.000000e+00 : f32
    %310 = vector.broadcast %cst_107 : f32 to vector<16x256xf32>
    %311 = arith.subf %310, %295 : vector<16x256xf32>
    %cst_108 = arith.constant 0.000000e+00 : f32
    %312 = vector.broadcast %cst_108 : f32 to vector<16x256xf32>
    %313 = arith.subf %312, %309 : vector<16x256xf32>
    %314 = arith.subf %279, %309 : vector<16x256xf32>
    %315 = arith.subf %314, %311 : vector<16x256xf32>
    %cst_109 = arith.constant 0.000000e+00 : f32
    %316 = vector.broadcast %cst_109 : f32 to vector<16x256xf32>
    %317 = arith.minimumf %315, %316 : vector<16x256xf32>
    %318 = math.exp %317 : vector<16x256xf32>
    %cst_110 = arith.constant 0.000000e+00 : f32
    %319 = vector.broadcast %cst_110 : f32 to vector<16x256xf32>
    %320 = arith.subf %319, %318 : vector<16x256xf32>
    %321 = math.log1p %320 : vector<16x256xf32>
    %322 = arith.addf %311, %321 : vector<16x256xf32>
    %323 = arith.mulf %273, %270 : vector<16x256xf32>
    %324 = arith.subf %323, %268 : vector<16x256xf32>
    %cst_111 = arith.constant 0.000000e+00 : f32
    %325 = vector.broadcast %cst_111 : f32 to vector<16x256xf32>
    %326 = arith.maximumf %323, %325 : vector<16x256xf32>
    %327 = vector.broadcast %cst_111 : f32 to vector<16x256xf32>
    %328 = arith.subf %323, %327 : vector<16x256xf32>
    %329 = arith.cmpf one, %328, %328 : vector<16x256xf32>
    %330 = vector.broadcast %cst_111 : f32 to vector<16x256xf32>
    %331 = arith.addf %323, %330 : vector<16x256xf32>
    %332 = math.absf %328 : vector<16x256xf32>
    %cst_112 = arith.constant 0.000000e+00 : f32
    %333 = vector.broadcast %cst_112 : f32 to vector<16x256xf32>
    %334 = arith.subf %333, %332 : vector<16x256xf32>
    %335 = math.exp %334 : vector<16x256xf32>
    %336 = math.log1p %335 : vector<16x256xf32>
    %337 = arith.addf %326, %336 : vector<16x256xf32>
    %338 = arith.select %329, %331, %337 : vector<16x256xi1>, vector<16x256xf32>
    %cst_113 = arith.constant 2.000000e+00 : f32
    %339 = vector.broadcast %cst_113 : f32 to vector<16x256xf32>
    %340 = arith.mulf %339, %338 : vector<16x256xf32>
    %341 = arith.subf %324, %340 : vector<16x256xf32>
    %cst_114 = arith.constant -11.5129251 : f32
    %342 = vector.broadcast %cst_114 : f32 to vector<16x256xf32>
    %343 = arith.cmpf ogt, %322, %342 : vector<16x256xf32>
    %cst_115 = arith.constant 4.8481164 : f32
    %344 = vector.broadcast %cst_115 : f32 to vector<16x256xf32>
    %345 = arith.subf %341, %344 : vector<16x256xf32>
    %346 = arith.select %343, %322, %345 : vector<16x256xi1>, vector<16x256xf32>
    %cst_116 = arith.constant 9.990000e-01 : f32
    %347 = vector.broadcast %cst_116 : f32 to vector<1x256xf32>
    %348 = arith.cmpf ogt, %262, %347 : vector<1x256xf32>
    %349 = vector.shape_cast %348 : vector<1x256xi1> to vector<1x256xi1>
    %350 = vector.broadcast %349 : vector<1x256xi1> to vector<16x256xi1>
    %351 = arith.select %350, %313, %346 : vector<16x256xi1>, vector<16x256xf32>
    %cst_117 = arith.constant -9.990000e-01 : f32
    %352 = vector.broadcast %cst_117 : f32 to vector<1x256xf32>
    %353 = arith.cmpf olt, %262, %352 : vector<1x256xf32>
    %354 = vector.shape_cast %353 : vector<1x256xi1> to vector<1x256xi1>
    %355 = vector.broadcast %354 : vector<1x256xi1> to vector<16x256xi1>
    %356 = arith.select %355, %311, %351 : vector<16x256xi1>, vector<16x256xf32>
    %357 = vector.extract_strided_slice %6 {offsets = [48, 0], sizes = [16, 256], strides = [1, 1]} : vector<160x256xf32> to vector<16x256xf32>
    %cst_118 = arith.constant -7.90531111 : f32
    %cst_119 = arith.constant 7.90531111 : f32
    %358 = vector.broadcast %cst_118 : f32 to vector<16x256xf32>
    %359 = arith.maximumf %358, %357 : vector<16x256xf32>
    %360 = vector.broadcast %cst_119 : f32 to vector<16x256xf32>
    %361 = arith.minimumf %360, %359 : vector<16x256xf32>
    %362 = arith.mulf %361, %361 : vector<16x256xf32>
    %cst_120 = arith.constant -2.76076837E-16 : f32
    %363 = vector.broadcast %cst_120 : f32 to vector<16x256xf32>
    %364 = arith.mulf %362, %363 : vector<16x256xf32>
    %cst_121 = arith.constant 2.00018794E-13 : f32
    %365 = vector.broadcast %cst_121 : f32 to vector<16x256xf32>
    %366 = arith.addf %364, %365 : vector<16x256xf32>
    %367 = arith.mulf %362, %366 : vector<16x256xf32>
    %cst_122 = arith.constant -8.60467184E-11 : f32
    %368 = vector.broadcast %cst_122 : f32 to vector<16x256xf32>
    %369 = arith.addf %367, %368 : vector<16x256xf32>
    %370 = arith.mulf %362, %369 : vector<16x256xf32>
    %cst_123 = arith.constant 5.12229725E-8 : f32
    %371 = vector.broadcast %cst_123 : f32 to vector<16x256xf32>
    %372 = arith.addf %370, %371 : vector<16x256xf32>
    %373 = arith.mulf %362, %372 : vector<16x256xf32>
    %cst_124 = arith.constant 1.48572235E-5 : f32
    %374 = vector.broadcast %cst_124 : f32 to vector<16x256xf32>
    %375 = arith.addf %373, %374 : vector<16x256xf32>
    %376 = arith.mulf %362, %375 : vector<16x256xf32>
    %cst_125 = arith.constant 6.37261954E-4 : f32
    %377 = vector.broadcast %cst_125 : f32 to vector<16x256xf32>
    %378 = arith.addf %376, %377 : vector<16x256xf32>
    %379 = arith.mulf %362, %378 : vector<16x256xf32>
    %cst_126 = arith.constant 0.00489352457 : f32
    %380 = vector.broadcast %cst_126 : f32 to vector<16x256xf32>
    %381 = arith.addf %379, %380 : vector<16x256xf32>
    %382 = arith.mulf %361, %381 : vector<16x256xf32>
    %cst_127 = arith.constant 1.19825836E-6 : f32
    %383 = vector.broadcast %cst_127 : f32 to vector<16x256xf32>
    %384 = arith.mulf %362, %383 : vector<16x256xf32>
    %cst_128 = arith.constant 1.18534706E-4 : f32
    %385 = vector.broadcast %cst_128 : f32 to vector<16x256xf32>
    %386 = arith.addf %384, %385 : vector<16x256xf32>
    %387 = arith.mulf %362, %386 : vector<16x256xf32>
    %cst_129 = arith.constant 0.00226843474 : f32
    %388 = vector.broadcast %cst_129 : f32 to vector<16x256xf32>
    %389 = arith.addf %387, %388 : vector<16x256xf32>
    %390 = arith.mulf %362, %389 : vector<16x256xf32>
    %cst_130 = arith.constant 0.00489352504 : f32
    %391 = vector.broadcast %cst_130 : f32 to vector<16x256xf32>
    %392 = arith.addf %390, %391 : vector<16x256xf32>
    %393 = tpu.reciprocal %392 {approx = true} : vector<16x256xf32> -> vector<16x256xf32>
    %394 = arith.mulf %392, %393 : vector<16x256xf32>
    %cst_131 = arith.constant 2.000000e+00 : f32
    %395 = vector.broadcast %cst_131 : f32 to vector<16x256xf32>
    %396 = arith.subf %395, %394 : vector<16x256xf32>
    %397 = arith.mulf %393, %396 : vector<16x256xf32>
    %398 = arith.mulf %382, %397 : vector<16x256xf32>
    %399 = vector.extract_strided_slice %6 {offsets = [64, 0], sizes = [16, 256], strides = [1, 1]} : vector<160x256xf32> to vector<16x256xf32>
    %400 = vector.broadcast %262 : vector<1x256xf32> to vector<16x256xf32>
    %401 = arith.mulf %398, %400 : vector<16x256xf32>
    %402 = arith.addf %399, %401 : vector<16x256xf32>
    %403 = vector.extract_strided_slice %6 {offsets = [80, 0], sizes = [16, 256], strides = [1, 1]} : vector<160x256xf32> to vector<16x256xf32>
    %cst_132 = arith.constant -7.000000e+00 : f32
    %404 = vector.broadcast %cst_132 : f32 to vector<16x256xf32>
    %405 = arith.maximumf %403, %404 : vector<16x256xf32>
    %406 = vector.broadcast %263 : vector<1x256xf32> to vector<16x256xf32>
    %407 = arith.subf %406, %402 : vector<16x256xf32>
    %cst_133 = arith.constant 0.000000e+00 : f32
    %408 = vector.broadcast %cst_133 : f32 to vector<16x256xf32>
    %409 = arith.subf %408, %405 : vector<16x256xf32>
    %410 = math.exp %409 : vector<16x256xf32>
    %cst_134 = arith.constant 0.00392156886 : f32
    %411 = vector.broadcast %cst_134 : f32 to vector<16x256xf32>
    %412 = arith.addf %407, %411 : vector<16x256xf32>
    %413 = arith.mulf %410, %412 : vector<16x256xf32>
    %cst_135 = arith.constant 0.00392156886 : f32
    %414 = vector.broadcast %cst_135 : f32 to vector<16x256xf32>
    %415 = arith.subf %407, %414 : vector<16x256xf32>
    %416 = arith.mulf %410, %415 : vector<16x256xf32>
    %cst_136 = arith.constant 0.000000e+00 : f32
    %417 = vector.broadcast %cst_136 : f32 to vector<16x256xf32>
    %418 = arith.subf %417, %413 : vector<16x256xf32>
    %cst_137 = arith.constant 0.000000e+00 : f32
    %419 = vector.broadcast %cst_137 : f32 to vector<16x256xf32>
    %420 = arith.maximumf %418, %419 : vector<16x256xf32>
    %421 = vector.broadcast %cst_137 : f32 to vector<16x256xf32>
    %422 = arith.subf %418, %421 : vector<16x256xf32>
    %423 = arith.cmpf one, %422, %422 : vector<16x256xf32>
    %424 = vector.broadcast %cst_137 : f32 to vector<16x256xf32>
    %425 = arith.addf %418, %424 : vector<16x256xf32>
    %426 = math.absf %422 : vector<16x256xf32>
    %cst_138 = arith.constant 0.000000e+00 : f32
    %427 = vector.broadcast %cst_138 : f32 to vector<16x256xf32>
    %428 = arith.subf %427, %426 : vector<16x256xf32>
    %429 = math.exp %428 : vector<16x256xf32>
    %430 = math.log1p %429 : vector<16x256xf32>
    %431 = arith.addf %420, %430 : vector<16x256xf32>
    %432 = arith.select %423, %425, %431 : vector<16x256xi1>, vector<16x256xf32>
    %cst_139 = arith.constant 0.000000e+00 : f32
    %433 = vector.broadcast %cst_139 : f32 to vector<16x256xf32>
    %434 = arith.maximumf %416, %433 : vector<16x256xf32>
    %435 = vector.broadcast %cst_139 : f32 to vector<16x256xf32>
    %436 = arith.subf %416, %435 : vector<16x256xf32>
    %437 = arith.cmpf one, %436, %436 : vector<16x256xf32>
    %438 = vector.broadcast %cst_139 : f32 to vector<16x256xf32>
    %439 = arith.addf %416, %438 : vector<16x256xf32>
    %440 = math.absf %436 : vector<16x256xf32>
    %cst_140 = arith.constant 0.000000e+00 : f32
    %441 = vector.broadcast %cst_140 : f32 to vector<16x256xf32>
    %442 = arith.subf %441, %440 : vector<16x256xf32>
    %443 = math.exp %442 : vector<16x256xf32>
    %444 = math.log1p %443 : vector<16x256xf32>
    %445 = arith.addf %434, %444 : vector<16x256xf32>
    %446 = arith.select %437, %439, %445 : vector<16x256xi1>, vector<16x256xf32>
    %cst_141 = arith.constant 0.000000e+00 : f32
    %447 = vector.broadcast %cst_141 : f32 to vector<16x256xf32>
    %448 = arith.subf %447, %432 : vector<16x256xf32>
    %cst_142 = arith.constant 0.000000e+00 : f32
    %449 = vector.broadcast %cst_142 : f32 to vector<16x256xf32>
    %450 = arith.subf %449, %446 : vector<16x256xf32>
    %451 = arith.subf %416, %446 : vector<16x256xf32>
    %452 = arith.subf %451, %448 : vector<16x256xf32>
    %cst_143 = arith.constant 0.000000e+00 : f32
    %453 = vector.broadcast %cst_143 : f32 to vector<16x256xf32>
    %454 = arith.minimumf %452, %453 : vector<16x256xf32>
    %455 = math.exp %454 : vector<16x256xf32>
    %cst_144 = arith.constant 0.000000e+00 : f32
    %456 = vector.broadcast %cst_144 : f32 to vector<16x256xf32>
    %457 = arith.subf %456, %455 : vector<16x256xf32>
    %458 = math.log1p %457 : vector<16x256xf32>
    %459 = arith.addf %448, %458 : vector<16x256xf32>
    %460 = arith.mulf %410, %407 : vector<16x256xf32>
    %461 = arith.subf %460, %405 : vector<16x256xf32>
    %cst_145 = arith.constant 0.000000e+00 : f32
    %462 = vector.broadcast %cst_145 : f32 to vector<16x256xf32>
    %463 = arith.maximumf %460, %462 : vector<16x256xf32>
    %464 = vector.broadcast %cst_145 : f32 to vector<16x256xf32>
    %465 = arith.subf %460, %464 : vector<16x256xf32>
    %466 = arith.cmpf one, %465, %465 : vector<16x256xf32>
    %467 = vector.broadcast %cst_145 : f32 to vector<16x256xf32>
    %468 = arith.addf %460, %467 : vector<16x256xf32>
    %469 = math.absf %465 : vector<16x256xf32>
    %cst_146 = arith.constant 0.000000e+00 : f32
    %470 = vector.broadcast %cst_146 : f32 to vector<16x256xf32>
    %471 = arith.subf %470, %469 : vector<16x256xf32>
    %472 = math.exp %471 : vector<16x256xf32>
    %473 = math.log1p %472 : vector<16x256xf32>
    %474 = arith.addf %463, %473 : vector<16x256xf32>
    %475 = arith.select %466, %468, %474 : vector<16x256xi1>, vector<16x256xf32>
    %cst_147 = arith.constant 2.000000e+00 : f32
    %476 = vector.broadcast %cst_147 : f32 to vector<16x256xf32>
    %477 = arith.mulf %476, %475 : vector<16x256xf32>
    %478 = arith.subf %461, %477 : vector<16x256xf32>
    %cst_148 = arith.constant -11.5129251 : f32
    %479 = vector.broadcast %cst_148 : f32 to vector<16x256xf32>
    %480 = arith.cmpf ogt, %459, %479 : vector<16x256xf32>
    %cst_149 = arith.constant 4.8481164 : f32
    %481 = vector.broadcast %cst_149 : f32 to vector<16x256xf32>
    %482 = arith.subf %478, %481 : vector<16x256xf32>
    %483 = arith.select %480, %459, %482 : vector<16x256xi1>, vector<16x256xf32>
    %cst_150 = arith.constant 9.990000e-01 : f32
    %484 = vector.broadcast %cst_150 : f32 to vector<1x256xf32>
    %485 = arith.cmpf ogt, %263, %484 : vector<1x256xf32>
    %486 = vector.shape_cast %485 : vector<1x256xi1> to vector<1x256xi1>
    %487 = vector.broadcast %486 : vector<1x256xi1> to vector<16x256xi1>
    %488 = arith.select %487, %450, %483 : vector<16x256xi1>, vector<16x256xf32>
    %cst_151 = arith.constant -9.990000e-01 : f32
    %489 = vector.broadcast %cst_151 : f32 to vector<1x256xf32>
    %490 = arith.cmpf olt, %263, %489 : vector<1x256xf32>
    %491 = vector.shape_cast %490 : vector<1x256xi1> to vector<1x256xi1>
    %492 = vector.broadcast %491 : vector<1x256xi1> to vector<16x256xi1>
    %493 = arith.select %492, %448, %488 : vector<16x256xi1>, vector<16x256xf32>
    %494 = arith.addf %356, %493 : vector<16x256xf32>
    %495 = vector.extract_strided_slice %6 {offsets = [96, 0], sizes = [16, 256], strides = [1, 1]} : vector<160x256xf32> to vector<16x256xf32>
    %cst_152 = arith.constant -7.90531111 : f32
    %cst_153 = arith.constant 7.90531111 : f32
    %496 = vector.broadcast %cst_152 : f32 to vector<16x256xf32>
    %497 = arith.maximumf %496, %495 : vector<16x256xf32>
    %498 = vector.broadcast %cst_153 : f32 to vector<16x256xf32>
    %499 = arith.minimumf %498, %497 : vector<16x256xf32>
    %500 = arith.mulf %499, %499 : vector<16x256xf32>
    %cst_154 = arith.constant -2.76076837E-16 : f32
    %501 = vector.broadcast %cst_154 : f32 to vector<16x256xf32>
    %502 = arith.mulf %500, %501 : vector<16x256xf32>
    %cst_155 = arith.constant 2.00018794E-13 : f32
    %503 = vector.broadcast %cst_155 : f32 to vector<16x256xf32>
    %504 = arith.addf %502, %503 : vector<16x256xf32>
    %505 = arith.mulf %500, %504 : vector<16x256xf32>
    %cst_156 = arith.constant -8.60467184E-11 : f32
    %506 = vector.broadcast %cst_156 : f32 to vector<16x256xf32>
    %507 = arith.addf %505, %506 : vector<16x256xf32>
    %508 = arith.mulf %500, %507 : vector<16x256xf32>
    %cst_157 = arith.constant 5.12229725E-8 : f32
    %509 = vector.broadcast %cst_157 : f32 to vector<16x256xf32>
    %510 = arith.addf %508, %509 : vector<16x256xf32>
    %511 = arith.mulf %500, %510 : vector<16x256xf32>
    %cst_158 = arith.constant 1.48572235E-5 : f32
    %512 = vector.broadcast %cst_158 : f32 to vector<16x256xf32>
    %513 = arith.addf %511, %512 : vector<16x256xf32>
    %514 = arith.mulf %500, %513 : vector<16x256xf32>
    %cst_159 = arith.constant 6.37261954E-4 : f32
    %515 = vector.broadcast %cst_159 : f32 to vector<16x256xf32>
    %516 = arith.addf %514, %515 : vector<16x256xf32>
    %517 = arith.mulf %500, %516 : vector<16x256xf32>
    %cst_160 = arith.constant 0.00489352457 : f32
    %518 = vector.broadcast %cst_160 : f32 to vector<16x256xf32>
    %519 = arith.addf %517, %518 : vector<16x256xf32>
    %520 = arith.mulf %499, %519 : vector<16x256xf32>
    %cst_161 = arith.constant 1.19825836E-6 : f32
    %521 = vector.broadcast %cst_161 : f32 to vector<16x256xf32>
    %522 = arith.mulf %500, %521 : vector<16x256xf32>
    %cst_162 = arith.constant 1.18534706E-4 : f32
    %523 = vector.broadcast %cst_162 : f32 to vector<16x256xf32>
    %524 = arith.addf %522, %523 : vector<16x256xf32>
    %525 = arith.mulf %500, %524 : vector<16x256xf32>
    %cst_163 = arith.constant 0.00226843474 : f32
    %526 = vector.broadcast %cst_163 : f32 to vector<16x256xf32>
    %527 = arith.addf %525, %526 : vector<16x256xf32>
    %528 = arith.mulf %500, %527 : vector<16x256xf32>
    %cst_164 = arith.constant 0.00489352504 : f32
    %529 = vector.broadcast %cst_164 : f32 to vector<16x256xf32>
    %530 = arith.addf %528, %529 : vector<16x256xf32>
    %531 = tpu.reciprocal %530 {approx = true} : vector<16x256xf32> -> vector<16x256xf32>
    %532 = arith.mulf %530, %531 : vector<16x256xf32>
    %cst_165 = arith.constant 2.000000e+00 : f32
    %533 = vector.broadcast %cst_165 : f32 to vector<16x256xf32>
    %534 = arith.subf %533, %532 : vector<16x256xf32>
    %535 = arith.mulf %531, %534 : vector<16x256xf32>
    %536 = arith.mulf %520, %535 : vector<16x256xf32>
    %537 = vector.extract_strided_slice %6 {offsets = [144, 0], sizes = [16, 256], strides = [1, 1]} : vector<160x256xf32> to vector<16x256xf32>
    %cst_166 = arith.constant -7.90531111 : f32
    %cst_167 = arith.constant 7.90531111 : f32
    %538 = vector.broadcast %cst_166 : f32 to vector<16x256xf32>
    %539 = arith.maximumf %538, %537 : vector<16x256xf32>
    %540 = vector.broadcast %cst_167 : f32 to vector<16x256xf32>
    %541 = arith.minimumf %540, %539 : vector<16x256xf32>
    %542 = arith.mulf %541, %541 : vector<16x256xf32>
    %cst_168 = arith.constant -2.76076837E-16 : f32
    %543 = vector.broadcast %cst_168 : f32 to vector<16x256xf32>
    %544 = arith.mulf %542, %543 : vector<16x256xf32>
    %cst_169 = arith.constant 2.00018794E-13 : f32
    %545 = vector.broadcast %cst_169 : f32 to vector<16x256xf32>
    %546 = arith.addf %544, %545 : vector<16x256xf32>
    %547 = arith.mulf %542, %546 : vector<16x256xf32>
    %cst_170 = arith.constant -8.60467184E-11 : f32
    %548 = vector.broadcast %cst_170 : f32 to vector<16x256xf32>
    %549 = arith.addf %547, %548 : vector<16x256xf32>
    %550 = arith.mulf %542, %549 : vector<16x256xf32>
    %cst_171 = arith.constant 5.12229725E-8 : f32
    %551 = vector.broadcast %cst_171 : f32 to vector<16x256xf32>
    %552 = arith.addf %550, %551 : vector<16x256xf32>
    %553 = arith.mulf %542, %552 : vector<16x256xf32>
    %cst_172 = arith.constant 1.48572235E-5 : f32
    %554 = vector.broadcast %cst_172 : f32 to vector<16x256xf32>
    %555 = arith.addf %553, %554 : vector<16x256xf32>
    %556 = arith.mulf %542, %555 : vector<16x256xf32>
    %cst_173 = arith.constant 6.37261954E-4 : f32
    %557 = vector.broadcast %cst_173 : f32 to vector<16x256xf32>
    %558 = arith.addf %556, %557 : vector<16x256xf32>
    %559 = arith.mulf %542, %558 : vector<16x256xf32>
    %cst_174 = arith.constant 0.00489352457 : f32
    %560 = vector.broadcast %cst_174 : f32 to vector<16x256xf32>
    %561 = arith.addf %559, %560 : vector<16x256xf32>
    %562 = arith.mulf %541, %561 : vector<16x256xf32>
    %cst_175 = arith.constant 1.19825836E-6 : f32
    %563 = vector.broadcast %cst_175 : f32 to vector<16x256xf32>
    %564 = arith.mulf %542, %563 : vector<16x256xf32>
    %cst_176 = arith.constant 1.18534706E-4 : f32
    %565 = vector.broadcast %cst_176 : f32 to vector<16x256xf32>
    %566 = arith.addf %564, %565 : vector<16x256xf32>
    %567 = arith.mulf %542, %566 : vector<16x256xf32>
    %cst_177 = arith.constant 0.00226843474 : f32
    %568 = vector.broadcast %cst_177 : f32 to vector<16x256xf32>
    %569 = arith.addf %567, %568 : vector<16x256xf32>
    %570 = arith.mulf %542, %569 : vector<16x256xf32>
    %cst_178 = arith.constant 0.00489352504 : f32
    %571 = vector.broadcast %cst_178 : f32 to vector<16x256xf32>
    %572 = arith.addf %570, %571 : vector<16x256xf32>
    %573 = tpu.reciprocal %572 {approx = true} : vector<16x256xf32> -> vector<16x256xf32>
    %574 = arith.mulf %572, %573 : vector<16x256xf32>
    %cst_179 = arith.constant 2.000000e+00 : f32
    %575 = vector.broadcast %cst_179 : f32 to vector<16x256xf32>
    %576 = arith.subf %575, %574 : vector<16x256xf32>
    %577 = arith.mulf %573, %576 : vector<16x256xf32>
    %578 = arith.mulf %562, %577 : vector<16x256xf32>
    %579 = vector.extract_strided_slice %6 {offsets = [112, 0], sizes = [16, 256], strides = [1, 1]} : vector<160x256xf32> to vector<16x256xf32>
    %580 = vector.broadcast %262 : vector<1x256xf32> to vector<16x256xf32>
    %581 = arith.mulf %536, %580 : vector<16x256xf32>
    %582 = arith.addf %579, %581 : vector<16x256xf32>
    %583 = vector.broadcast %263 : vector<1x256xf32> to vector<16x256xf32>
    %584 = arith.mulf %578, %583 : vector<16x256xf32>
    %585 = arith.addf %582, %584 : vector<16x256xf32>
    %586 = vector.extract_strided_slice %6 {offsets = [128, 0], sizes = [16, 256], strides = [1, 1]} : vector<160x256xf32> to vector<16x256xf32>
    %cst_180 = arith.constant -7.000000e+00 : f32
    %587 = vector.broadcast %cst_180 : f32 to vector<16x256xf32>
    %588 = arith.maximumf %586, %587 : vector<16x256xf32>
    %589 = vector.broadcast %264 : vector<1x256xf32> to vector<16x256xf32>
    %590 = arith.subf %589, %585 : vector<16x256xf32>
    %cst_181 = arith.constant 0.000000e+00 : f32
    %591 = vector.broadcast %cst_181 : f32 to vector<16x256xf32>
    %592 = arith.subf %591, %588 : vector<16x256xf32>
    %593 = math.exp %592 : vector<16x256xf32>
    %cst_182 = arith.constant 0.00392156886 : f32
    %594 = vector.broadcast %cst_182 : f32 to vector<16x256xf32>
    %595 = arith.addf %590, %594 : vector<16x256xf32>
    %596 = arith.mulf %593, %595 : vector<16x256xf32>
    %cst_183 = arith.constant 0.00392156886 : f32
    %597 = vector.broadcast %cst_183 : f32 to vector<16x256xf32>
    %598 = arith.subf %590, %597 : vector<16x256xf32>
    %599 = arith.mulf %593, %598 : vector<16x256xf32>
    %cst_184 = arith.constant 0.000000e+00 : f32
    %600 = vector.broadcast %cst_184 : f32 to vector<16x256xf32>
    %601 = arith.subf %600, %596 : vector<16x256xf32>
    %cst_185 = arith.constant 0.000000e+00 : f32
    %602 = vector.broadcast %cst_185 : f32 to vector<16x256xf32>
    %603 = arith.maximumf %601, %602 : vector<16x256xf32>
    %604 = vector.broadcast %cst_185 : f32 to vector<16x256xf32>
    %605 = arith.subf %601, %604 : vector<16x256xf32>
    %606 = arith.cmpf one, %605, %605 : vector<16x256xf32>
    %607 = vector.broadcast %cst_185 : f32 to vector<16x256xf32>
    %608 = arith.addf %601, %607 : vector<16x256xf32>
    %609 = math.absf %605 : vector<16x256xf32>
    %cst_186 = arith.constant 0.000000e+00 : f32
    %610 = vector.broadcast %cst_186 : f32 to vector<16x256xf32>
    %611 = arith.subf %610, %609 : vector<16x256xf32>
    %612 = math.exp %611 : vector<16x256xf32>
    %613 = math.log1p %612 : vector<16x256xf32>
    %614 = arith.addf %603, %613 : vector<16x256xf32>
    %615 = arith.select %606, %608, %614 : vector<16x256xi1>, vector<16x256xf32>
    %cst_187 = arith.constant 0.000000e+00 : f32
    %616 = vector.broadcast %cst_187 : f32 to vector<16x256xf32>
    %617 = arith.maximumf %599, %616 : vector<16x256xf32>
    %618 = vector.broadcast %cst_187 : f32 to vector<16x256xf32>
    %619 = arith.subf %599, %618 : vector<16x256xf32>
    %620 = arith.cmpf one, %619, %619 : vector<16x256xf32>
    %621 = vector.broadcast %cst_187 : f32 to vector<16x256xf32>
    %622 = arith.addf %599, %621 : vector<16x256xf32>
    %623 = math.absf %619 : vector<16x256xf32>
    %cst_188 = arith.constant 0.000000e+00 : f32
    %624 = vector.broadcast %cst_188 : f32 to vector<16x256xf32>
    %625 = arith.subf %624, %623 : vector<16x256xf32>
    %626 = math.exp %625 : vector<16x256xf32>
    %627 = math.log1p %626 : vector<16x256xf32>
    %628 = arith.addf %617, %627 : vector<16x256xf32>
    %629 = arith.select %620, %622, %628 : vector<16x256xi1>, vector<16x256xf32>
    %cst_189 = arith.constant 0.000000e+00 : f32
    %630 = vector.broadcast %cst_189 : f32 to vector<16x256xf32>
    %631 = arith.subf %630, %615 : vector<16x256xf32>
    %cst_190 = arith.constant 0.000000e+00 : f32
    %632 = vector.broadcast %cst_190 : f32 to vector<16x256xf32>
    %633 = arith.subf %632, %629 : vector<16x256xf32>
    %634 = arith.subf %599, %629 : vector<16x256xf32>
    %635 = arith.subf %634, %631 : vector<16x256xf32>
    %cst_191 = arith.constant 0.000000e+00 : f32
    %636 = vector.broadcast %cst_191 : f32 to vector<16x256xf32>
    %637 = arith.minimumf %635, %636 : vector<16x256xf32>
    %638 = math.exp %637 : vector<16x256xf32>
    %cst_192 = arith.constant 0.000000e+00 : f32
    %639 = vector.broadcast %cst_192 : f32 to vector<16x256xf32>
    %640 = arith.subf %639, %638 : vector<16x256xf32>
    %641 = math.log1p %640 : vector<16x256xf32>
    %642 = arith.addf %631, %641 : vector<16x256xf32>
    %643 = arith.mulf %593, %590 : vector<16x256xf32>
    %644 = arith.subf %643, %588 : vector<16x256xf32>
    %cst_193 = arith.constant 0.000000e+00 : f32
    %645 = vector.broadcast %cst_193 : f32 to vector<16x256xf32>
    %646 = arith.maximumf %643, %645 : vector<16x256xf32>
    %647 = vector.broadcast %cst_193 : f32 to vector<16x256xf32>
    %648 = arith.subf %643, %647 : vector<16x256xf32>
    %649 = arith.cmpf one, %648, %648 : vector<16x256xf32>
    %650 = vector.broadcast %cst_193 : f32 to vector<16x256xf32>
    %651 = arith.addf %643, %650 : vector<16x256xf32>
    %652 = math.absf %648 : vector<16x256xf32>
    %cst_194 = arith.constant 0.000000e+00 : f32
    %653 = vector.broadcast %cst_194 : f32 to vector<16x256xf32>
    %654 = arith.subf %653, %652 : vector<16x256xf32>
    %655 = math.exp %654 : vector<16x256xf32>
    %656 = math.log1p %655 : vector<16x256xf32>
    %657 = arith.addf %646, %656 : vector<16x256xf32>
    %658 = arith.select %649, %651, %657 : vector<16x256xi1>, vector<16x256xf32>
    %cst_195 = arith.constant 2.000000e+00 : f32
    %659 = vector.broadcast %cst_195 : f32 to vector<16x256xf32>
    %660 = arith.mulf %659, %658 : vector<16x256xf32>
    %661 = arith.subf %644, %660 : vector<16x256xf32>
    %cst_196 = arith.constant -11.5129251 : f32
    %662 = vector.broadcast %cst_196 : f32 to vector<16x256xf32>
    %663 = arith.cmpf ogt, %642, %662 : vector<16x256xf32>
    %cst_197 = arith.constant 4.8481164 : f32
    %664 = vector.broadcast %cst_197 : f32 to vector<16x256xf32>
    %665 = arith.subf %661, %664 : vector<16x256xf32>
    %666 = arith.select %663, %642, %665 : vector<16x256xi1>, vector<16x256xf32>
    %cst_198 = arith.constant 9.990000e-01 : f32
    %667 = vector.broadcast %cst_198 : f32 to vector<1x256xf32>
    %668 = arith.cmpf ogt, %264, %667 : vector<1x256xf32>
    %669 = vector.shape_cast %668 : vector<1x256xi1> to vector<1x256xi1>
    %670 = vector.broadcast %669 : vector<1x256xi1> to vector<16x256xi1>
    %671 = arith.select %670, %633, %666 : vector<16x256xi1>, vector<16x256xf32>
    %cst_199 = arith.constant -9.990000e-01 : f32
    %672 = vector.broadcast %cst_199 : f32 to vector<1x256xf32>
    %673 = arith.cmpf olt, %264, %672 : vector<1x256xf32>
    %674 = vector.shape_cast %673 : vector<1x256xi1> to vector<1x256xi1>
    %675 = vector.broadcast %674 : vector<1x256xi1> to vector<16x256xi1>
    %676 = arith.select %675, %631, %671 : vector<16x256xi1>, vector<16x256xf32>
    %677 = arith.addf %494, %676 : vector<16x256xf32>
    %cst_200 = arith.constant dense<0xFF800000> : vector<256xf32>
    %678 = vector.multi_reduction <maximumf>, %7, %cst_200 [0] : vector<16x256xf32> to vector<256xf32>
    %679 = vector.shape_cast %678 : vector<256xf32> to vector<1x256xf32>
    %680 = vector.broadcast %679 : vector<1x256xf32> to vector<16x256xf32>
    %681 = arith.subf %7, %680 : vector<16x256xf32>
    %682 = math.exp %681 : vector<16x256xf32>
    %cst_201 = arith.constant dense<0.000000e+00> : vector<256xf32>
    %683 = vector.multi_reduction <add>, %682, %cst_201 [0] : vector<16x256xf32> to vector<256xf32>
    %684 = vector.shape_cast %683 : vector<256xf32> to vector<1x256xf32>
    %685 = math.log %684 : vector<1x256xf32>
    %686 = arith.addf %679, %685 : vector<1x256xf32>
    %687 = vector.broadcast %686 : vector<1x256xf32> to vector<16x256xf32>
    %688 = arith.subf %7, %687 : vector<16x256xf32>
    %689 = arith.addf %677, %688 : vector<16x256xf32>
    %cst_202 = arith.constant dense<0xFF800000> : vector<256xf32>
    %690 = vector.multi_reduction <maximumf>, %689, %cst_202 [0] : vector<16x256xf32> to vector<256xf32>
    %691 = vector.shape_cast %690 : vector<256xf32> to vector<1x256xf32>
    %692 = vector.broadcast %691 : vector<1x256xf32> to vector<16x256xf32>
    %693 = arith.subf %689, %692 : vector<16x256xf32>
    %694 = math.exp %693 : vector<16x256xf32>
    %cst_203 = arith.constant dense<0.000000e+00> : vector<256xf32>
    %695 = vector.multi_reduction <add>, %694, %cst_203 [0] : vector<16x256xf32> to vector<256xf32>
    %696 = vector.shape_cast %695 : vector<256xf32> to vector<1x256xf32>
    %697 = math.log %696 : vector<1x256xf32>
    %698 = arith.addf %691, %697 : vector<1x256xf32>
    %c0_204 = arith.constant 0 : index
    %c0_205 = arith.constant 0 : index
    %c0_206 = arith.constant 0 : index
    %699 = vector.load %arg8[%c0_204, %c0_205, %c0_206] : memref<1x1x256xf32, #tpu.memory_space<vmem>>, vector<1x1x256xf32>
    %700 = vector.shape_cast %699 : vector<1x1x256xf32> to vector<1x256xf32>
    %701 = vector.shape_cast %698 : vector<1x256xf32> to vector<1x1x256xf32>
    tpu.vector_store %arg8[%c0_204, %c0_205, %c0_206], %701 {strides = array<i32>} : memref<1x1x256xf32, #tpu.memory_space<vmem>>, vector<1x1x256xf32>,
    return
  }
  func.func @transform_0(%arg0: i32, %arg1: i32) -> (i32, i32, i32) {
    %c0_i32 = arith.constant 0 : i32
    %c0_i32_0 = arith.constant 0 : i32
    return %arg0, %c0_i32, %arg1 : i32, i32, i32
  }
  func.func @transform_1(%arg0: i32, %arg1: i32) -> (i32, i32, i32) {
    %c0_i32 = arith.constant 0 : i32
    %c0_i32_0 = arith.constant 0 : i32
    return %arg0, %c0_i32, %arg1 : i32, i32, i32
  }
  func.func @transform_2(%arg0: i32, %arg1: i32) -> (i32, i32) {
    %c0_i32 = arith.constant 0 : i32
    %c0_i32_0 = arith.constant 0 : i32
    %c0_i32_1 = arith.constant 0 : i32
    return %c0_i32, %c0_i32_0 : i32, i32
  }
  func.func @transform_3(%arg0: i32, %arg1: i32) -> (i32, i32) {
    %c0_i32 = arith.constant 0 : i32
    %c0_i32_0 = arith.constant 0 : i32
    %c0_i32_1 = arith.constant 0 : i32
    return %c0_i32, %c0_i32_0 : i32, i32
  }
  func.func @transform_4(%arg0: i32, %arg1: i32) -> (i32, i32, i32) {
    %c0_i32 = arith.constant 0 : i32
    %c0_i32_0 = arith.constant 0 : i32
    return %arg0, %c0_i32, %arg1 : i32, i32, i32
  }
  func.func @transform_5(%arg0: i32, %arg1: i32) -> (i32, i32, i32) {
    %c0_i32 = arith.constant 0 : i32
    %c0_i32_0 = arith.constant 0 : i32
    return %arg0, %c0_i32, %arg1 : i32, i32, i32
  }
  func.func @transform_6(%arg0: i32, %arg1: i32) -> (i32, i32, i32) {
    %c0_i32 = arith.constant 0 : i32
    %c0_i32_0 = arith.constant 0 : i32
    return %arg0, %c0_i32, %arg1 : i32, i32, i32
  }
  func.func @transform_7(%arg0: i32, %arg1: i32) -> (i32, i32, i32) {
    %c0_i32 = arith.constant 0 : i32
    %c0_i32_0 = arith.constant 0 : i32
    return %arg0, %c0_i32, %arg1 : i32, i32, i32
  }
}

</mosaic_0001>

<llo_original>
// kernel: tpu_custom_call.1
$region0: #{tpu_custom_call.1}
  #allocation0 [shape = 'u32[]', space=smem, size = 0x4, offset = 0x4, fixed_abs, tag = 'smem constant byte address 0x4 - core index']
  #allocation1 [shape = 'u32[144,128]{1,0:T(1,128)}', space=vmem, size = 0x12000, scoped, tag = 'internal scratch']
  %s0 = inlined_call_operand.vmem [shape: f32[2,32,256], index: 0, kind: input, shape index: {}]
  %s1 = inlined_call_operand.vmem [shape: f32[2,3,256], index: 1, kind: input, shape index: {}]
  %s2 = inlined_call_operand.vmem [shape: f32[160,32], index: 2, kind: input, shape index: {}]
  %s3 = inlined_call_operand.vmem [shape: f32[160,1], index: 3, kind: input, shape index: {}]
  %s4 = inlined_call_operand.vmem [shape: f32[2,10,256], index: 4, kind: input, shape index: {}]
  %s5 = inlined_call_operand.vmem [shape: f32[2,3,256], index: 5, kind: input, shape index: {}]
  %s6 = inlined_call_operand.hbm [shape: f32[2,1,256], index: 6, kind: output, shape index: {0}]
  %s7 = inlined_call_operand.vmem [shape: f32[2,3,256], index: 7, kind: output, shape index: {1}]
  %8 = xla_tuple %s6, %s7
  %s9 = sld [smem:[#allocation0]]
  $region65: #{tpu_custom_call.1} parent=0
    _
  %s11 = ssub.s32 1, %s9
  %s12 = scalar_select 0, %s11, %s9
  $region1: #{tpu_custom_call.1} parent=0
    #allocation2 [shape = 'u8[2048]{0}', space=vmem, size = 0x800, scoped, tag = 'output window, operand 0']
    #allocation3 [shape = 's32[2]{0}', space=sflag, size = 0x8, scoped, tag = 'scoped memory for tpu_custom_call.1']
    %13 = vsyncpa [#allocation3], 0
    %s14 = scalar_lea.sflag [#allocation3], 1
    %15 = vsyncpa %s14, 0
    loop: start=0, step=1, limit=4
    $region2: #{tpu_custom_call.1} parent=1 // loop_pre_header
      _
    $region3: #{tpu_custom_call.1} parent=1 // loop_header
      %s17 = sphi 0, %s21
      %p18 = scmp.ge.s32.totalorder %s17, 4
      %s24 = sphi 0, %s36
      %s25 = sphi 0, %s32
      %s26 = sphi 0, %s24
      %s27 = sphi 0, %s25
      %s28 = sphi 0, %s26
      %s29 = sphi 0, %s27
      %s41 = sphi 0, %s43
      %s44 = sphi 0, %s41
      %s45 = sphi 0, %s44
      %s61 = sphi 0, %s45
      %s69 = sphi 0, %s71
      %s72 = sphi 0, %s69
      %s73 = sphi 0, %s72
      %s89 = sphi 0, %s73
      %s93 = sphi 0, %s93
      %s95 = sphi 0, %s93
      %s96 = sphi 0, %s95
      %s110 = sphi 0, %s96
      %s114 = sphi 0, %s114
      %s116 = sphi 0, %s114
      %s117 = sphi 0, %s116
      %s131 = sphi 0, %s117
      %s139 = sphi 0, %s141
      %s142 = sphi 0, %s139
      %s143 = sphi 0, %s142
      %s159 = sphi 0, %s143
      %s167 = sphi 0, %s169
      %s170 = sphi 0, %s167
      %s171 = sphi 0, %s170
      %s187 = sphi 0, %s171
      %s195 = sphi 0, %s197
      %s198 = sphi 0, %s195
      %s199 = sphi 0, %s198
      %s215 = sphi 0, %s199
      %s223 = sphi 0, %s225
      %s226 = sphi 0, %s223
      %s227 = sphi 0, %s226
      %s243 = sphi 0, %s227
    $region4: #{tpu_custom_call.1} parent=1 // loop_header_branch
      %20 = sbr.rel (%p18) target = $region8
    $region5: #{tpu_custom_call.1} parent=1 // loop_body
      %s22 = ssub.s32 %s17, 1
      %s23 = ssub.s32 %s17, 2
      %s30 = sadd.s32 1, %s25
      %p31 = scmp.ge.s32.totalorder %s30, 1
      %s32 = scalar_select %p31, 0, %s30
      %s33 = sadd.s32 1, %s24
      %s34 = scalar_select %p31, %s33, %s24
      %p35 = scmp.ge.s32.totalorder %s34, 2
      %s36 = scalar_select %p35, 0, %s34
      %s37 = ssub.s32 %s24, %s36
      %s38 = ssub.s32 %s25, %s32
      %s39 = sor.u32 %s37, %s38
      %p40 = scmp.eq.s32.totalorder %s39, 0
      %s42 = sadd.s32 %s41, 1
      %s43 = scalar_select %p40, %s41, %s42
      %p46 = pneg %p40
      %p47 = scmp.eq.s32.totalorder %s17, 1
      %p48 = por %p46, %p47
      %p49 = scmp.ne.s32.totalorder %s41, %s44
      %p50 = scmp.eq.s32.totalorder %s17, 0
      %p51 = por %p49, %p50
      %p52 = scmp.ne.s32.totalorder %s41, %s44
      %p53 = scmp.eq.s32.totalorder %s22, 1
      %p54 = por %p52, %p53
      %p55 = scmp.ne.s32.totalorder %s44, %s45
      %p56 = scmp.eq.s32.totalorder %s22, 0
      %p57 = por %p55, %p56
      %p58 = scmp.ne.s32.totalorder %s44, %s45
      %p59 = scmp.eq.s32.totalorder %s23, 1
      %p60 = por %p58, %p59
      %p62 = scmp.ne.s32.totalorder %s45, %s61
      %p63 = scmp.eq.s32.totalorder %s23, 0
      %p64 = por %p62, %p63
      %s65 = ssub.s32 %s24, %s36
      %s66 = ssub.s32 %s25, %s32
      %s67 = sor.u32 %s65, %s66
      %p68 = scmp.eq.s32.totalorder %s67, 0
      %s70 = sadd.s32 %s69, 1
      %s71 = scalar_select %p68, %s69, %s70
      %p74 = pneg %p68
      %p75 = scmp.eq.s32.totalorder %s17, 1
      %p76 = por %p74, %p75
      %p77 = scmp.ne.s32.totalorder %s69, %s72
      %p78 = scmp.eq.s32.totalorder %s17, 0
      %p79 = por %p77, %p78
      %p80 = scmp.ne.s32.totalorder %s69, %s72
      %p81 = scmp.eq.s32.totalorder %s22, 1
      %p82 = por %p80, %p81
      %p83 = scmp.ne.s32.totalorder %s72, %s73
      %p84 = scmp.eq.s32.totalorder %s22, 0
      %p85 = por %p83, %p84
      %p86 = scmp.ne.s32.totalorder %s72, %s73
      %p87 = scmp.eq.s32.totalorder %s23, 1
      %p88 = por %p86, %p87
      %p90 = scmp.ne.s32.totalorder %s73, %s89
      %p91 = scmp.eq.s32.totalorder %s23, 0
      %p92 = por %p90, %p91
      %s94 = sadd.s32 %s93, 1
      %p97 = scmp.eq.s32.totalorder %s17, 1
      %p98 = scmp.ne.s32.totalorder %s93, %s95
      %p99 = scmp.eq.s32.totalorder %s17, 0
      %p100 = por %p98, %p99
      %p101 = scmp.ne.s32.totalorder %s93, %s95
      %p102 = scmp.eq.s32.totalorder %s22, 1
      %p103 = por %p101, %p102
      %p104 = scmp.ne.s32.totalorder %s95, %s96
      %p105 = scmp.eq.s32.totalorder %s22, 0
      %p106 = por %p104, %p105
      %p107 = scmp.ne.s32.totalorder %s95, %s96
      %p108 = scmp.eq.s32.totalorder %s23, 1
      %p109 = por %p107, %p108
      %p111 = scmp.ne.s32.totalorder %s96, %s110
      %p112 = scmp.eq.s32.totalorder %s23, 0
      %p113 = por %p111, %p112
      %s115 = sadd.s32 %s114, 1
      %p118 = scmp.eq.s32.totalorder %s17, 1
      %p119 = scmp.ne.s32.totalorder %s114, %s116
      %p120 = scmp.eq.s32.totalorder %s17, 0
      %p121 = por %p119, %p120
      %p122 = scmp.ne.s32.totalorder %s114, %s116
      %p123 = scmp.eq.s32.totalorder %s22, 1
      %p124 = por %p122, %p123
      %p125 = scmp.ne.s32.totalorder %s116, %s117
      %p126 = scmp.eq.s32.totalorder %s22, 0
      %p127 = por %p125, %p126
      %p128 = scmp.ne.s32.totalorder %s116, %s117
      %p129 = scmp.eq.s32.totalorder %s23, 1
      %p130 = por %p128, %p129
      %p132 = scmp.ne.s32.totalorder %s117, %s131
      %p133 = scmp.eq.s32.totalorder %s23, 0
      %p134 = por %p132, %p133
      %s135 = ssub.s32 %s24, %s36
      %s136 = ssub.s32 %s25, %s32
      %s137 = sor.u32 %s135, %s136
      %p138 = scmp.eq.s32.totalorder %s137, 0
      %s140 = sadd.s32 %s139, 1
      %s141 = scalar_select %p138, %s139, %s140
      %p144 = pneg %p138
      %p145 = scmp.eq.s32.totalorder %s17, 1
      %p146 = por %p144, %p145
      %p147 = scmp.ne.s32.totalorder %s139, %s142
      %p148 = scmp.eq.s32.totalorder %s17, 0
      %p149 = por %p147, %p148
      %p150 = scmp.ne.s32.totalorder %s139, %s142
      %p151 = scmp.eq.s32.totalorder %s22, 1
      %p152 = por %p150, %p151
      %p153 = scmp.ne.s32.totalorder %s142, %s143
      %p154 = scmp.eq.s32.totalorder %s22, 0
      %p155 = por %p153, %p154
      %p156 = scmp.ne.s32.totalorder %s142, %s143
      %p157 = scmp.eq.s32.totalorder %s23, 1
      %p158 = por %p156, %p157
      %p160 = scmp.ne.s32.totalorder %s143, %s159
      %p161 = scmp.eq.s32.totalorder %s23, 0
      %p162 = por %p160, %p161
      %s163 = ssub.s32 %s24, %s36
      %s164 = ssub.s32 %s25, %s32
      %s165 = sor.u32 %s163, %s164
      %p166 = scmp.eq.s32.totalorder %s165, 0
      %s168 = sadd.s32 %s167, 1
      %s169 = scalar_select %p166, %s167, %s168
      %p172 = pneg %p166
      %p173 = scmp.eq.s32.totalorder %s17, 1
      %p174 = por %p172, %p173
      %p175 = scmp.ne.s32.totalorder %s167, %s170
      %p176 = scmp.eq.s32.totalorder %s17, 0
      %p177 = por %p175, %p176
      %p178 = scmp.ne.s32.totalorder %s167, %s170
      %p179 = scmp.eq.s32.totalorder %s22, 1
      %p180 = por %p178, %p179
      %p181 = scmp.ne.s32.totalorder %s170, %s171
      %p182 = scmp.eq.s32.totalorder %s22, 0
      %p183 = por %p181, %p182
      %p184 = scmp.ne.s32.totalorder %s170, %s171
      %p185 = scmp.eq.s32.totalorder %s23, 1
      %p186 = por %p184, %p185
      %p188 = scmp.ne.s32.totalorder %s171, %s187
      %p189 = scmp.eq.s32.totalorder %s23, 0
      %p190 = por %p188, %p189
      %s191 = ssub.s32 %s24, %s36
      %s192 = ssub.s32 %s25, %s32
      %s193 = sor.u32 %s191, %s192
      %p194 = scmp.eq.s32.totalorder %s193, 0
      %s196 = sadd.s32 %s195, 1
      %s197 = scalar_select %p194, %s195, %s196
      %p200 = pneg %p194
      %p201 = scmp.eq.s32.totalorder %s17, 1
      %p202 = por %p200, %p201
      %p203 = scmp.ne.s32.totalorder %s195, %s198
      %p204 = scmp.eq.s32.totalorder %s17, 0
      %p205 = por %p203, %p204
      %p206 = scmp.ne.s32.totalorder %s195, %s198
      %p207 = scmp.eq.s32.totalorder %s22, 1
      %p208 = por %p206, %p207
      %p209 = scmp.ne.s32.totalorder %s198, %s199
      %p210 = scmp.eq.s32.totalorder %s22, 0
      %p211 = por %p209, %p210
      %p212 = scmp.ne.s32.totalorder %s198, %s199
      %p213 = scmp.eq.s32.totalorder %s23, 1
      %p214 = por %p212, %p213
      %p216 = scmp.ne.s32.totalorder %s199, %s215
      %p217 = scmp.eq.s32.totalorder %s23, 0
      %p218 = por %p216, %p217
      %s219 = ssub.s32 %s24, %s36
      %s220 = ssub.s32 %s25, %s32
      %s221 = sor.u32 %s219, %s220
      %p222 = scmp.eq.s32.totalorder %s221, 0
      %s224 = sadd.s32 %s223, 1
      %s225 = scalar_select %p222, %s223, %s224
      %p228 = pneg %p222
      %p229 = scmp.eq.s32.totalorder %s17, 1
      %p230 = por %p228, %p229
      %p231 = scmp.ne.s32.totalorder %s223, %s226
      %p232 = scmp.eq.s32.totalorder %s17, 0
      %p233 = por %p231, %p232
      %p234 = scmp.ne.s32.totalorder %s223, %s226
      %p235 = scmp.eq.s32.totalorder %s22, 1
      %p236 = por %p234, %p235
      %p237 = scmp.ne.s32.totalorder %s226, %s227
      %p238 = scmp.eq.s32.totalorder %s22, 0
      %p239 = por %p237, %p238
      %p240 = scmp.ne.s32.totalorder %s226, %s227
      %p241 = scmp.eq.s32.totalorder %s23, 1
      %p242 = por %p240, %p241
      %p244 = scmp.ne.s32.totalorder %s227, %s243
      %p245 = scmp.eq.s32.totalorder %s23, 0
      %p246 = por %p244, %p245
      %p247 = scmp.le.s32.totalorder 1, %s17
      %p248 = scmp.lt.s32.totalorder %s17, 3
      %p249 = pnand %p247, %p248
      %p250 = pneg %p249
      // Predicated region
      $region9: #{tpu_custom_call.1} parent=5 // pred_check
        _
      $region10: #{tpu_custom_call.1} parent=5 // pred_check_branch
        %252 = sbr.rel (%p249) target = $region12
      $region11: #{tpu_custom_call.1} parent=5 // pred_region
        %s253 = ssub.s32 %s17, 1
        // Predicated region
        $region13: #{tpu_custom_call.1} parent=11 // pred_check
          %p254 = pneg %p106
        $region14: #{tpu_custom_call.1} parent=11 // pred_check_branch
          %256 = sbr.rel (%p254) target = $region16
        $region15: #{tpu_custom_call.1} parent=11 // pred_region
          _
        $region16: #{tpu_custom_call.1} parent=11 // pred_fallthru
          _
        // Predicated region
        $region17: #{tpu_custom_call.1} parent=11 // pred_check
          %p257 = pneg %p127
        $region18: #{tpu_custom_call.1} parent=11 // pred_check_branch
          %259 = sbr.rel (%p257) target = $region20
        $region19: #{tpu_custom_call.1} parent=11 // pred_region
          _
        $region20: #{tpu_custom_call.1} parent=11 // pred_fallthru
          _
      $region12: #{tpu_custom_call.1} parent=5 // pred_fallthru
        _
      %p260 = scmp.lt.s32.totalorder %s17, 2
      // Predicated region
      $region21: #{tpu_custom_call.1} parent=5 // pred_check
        %p261 = pneg %p260
      $region22: #{tpu_custom_call.1} parent=5 // pred_check_branch
        %263 = sbr.rel (%p261) target = $region24
      $region23: #{tpu_custom_call.1} parent=5 // pred_region
        // Predicated region
        $region25: #{tpu_custom_call.1} parent=23 // pred_check
          %p264 = pneg %p51
        $region26: #{tpu_custom_call.1} parent=23 // pred_check_branch
          %266 = sbr.rel (%p264) target = $region28
        $region27: #{tpu_custom_call.1} parent=23 // pred_region
          %s267 = smul.u32 2, %s25
          %p268 = scmp.lt.s32.totalorder %s24, 1
          %s269 = scalar_select %p268, %s24, 1
          %p270 = scmp.lt.s32.totalorder %s267, 1
          %s271 = scalar_select %p270, %s267, 1
          %s272 = smul.addr %s269, 8
          %s273 = sadd.s32 %s271, %s272
          %s274 = smul.addr %s273, 8
          %s275 = scalar_lea.vmem %s0, %s274
          %s276 = smul.u32 2, %s25
        $region28: #{tpu_custom_call.1} parent=23 // pred_fallthru
          _
        // Predicated region
        $region29: #{tpu_custom_call.1} parent=23 // pred_check
          %p277 = pneg %p79
        $region30: #{tpu_custom_call.1} parent=23 // pred_check_branch
          %279 = sbr.rel (%p277) target = $region32
        $region31: #{tpu_custom_call.1} parent=23 // pred_region
          %s280 = smul.u32 2, %s25
          %p281 = scmp.lt.s32.totalorder %s24, 1
          %s282 = scalar_select %p281, %s24, 1
          %p283 = scmp.lt.s32.totalorder %s280, 1
          %s284 = scalar_select %p283, %s280, 1
          %s285 = smul.addr %s282, 2
          %s286 = sadd.s32 %s284, %s285
          %s287 = smul.addr %s286, 4
          %s288 = scalar_lea.vmem %s1, %s287
          %s289 = smul.u32 2, %s25
        $region32: #{tpu_custom_call.1} parent=23 // pred_fallthru
          _
        // Predicated region
        $region33: #{tpu_custom_call.1} parent=23 // pred_check
          %p290 = pneg %p149
        $region34: #{tpu_custom_call.1} parent=23 // pred_check_branch
          %292 = sbr.rel (%p290) target = $region36
        $region35: #{tpu_custom_call.1} parent=23 // pred_region
          %s293 = smul.u32 2, %s25
          %p294 = scmp.lt.s32.totalorder %s24, 1
          %s295 = scalar_select %p294, %s24, 1
          %p296 = scmp.lt.s32.totalorder %s293, 1
          %s297 = scalar_select %p296, %s293, 1
          %s298 = smul.addr %s295, 4
          %s299 = sadd.s32 %s297, %s298
          %s300 = smul.addr %s299, 8
          %s301 = scalar_lea.vmem %s4, %s300
          %s302 = smul.u32 2, %s25
        $region36: #{tpu_custom_call.1} parent=23 // pred_fallthru
          _
        // Predicated region
        $region37: #{tpu_custom_call.1} parent=23 // pred_check
          %p303 = pneg %p177
        $region38: #{tpu_custom_call.1} parent=23 // pred_check_branch
          %305 = sbr.rel (%p303) target = $region40
        $region39: #{tpu_custom_call.1} parent=23 // pred_region
          %s306 = smul.u32 2, %s25
          %p307 = scmp.lt.s32.totalorder %s24, 1
          %s308 = scalar_select %p307, %s24, 1
          %p309 = scmp.lt.s32.totalorder %s306, 1
          %s310 = scalar_select %p309, %s306, 1
          %s311 = smul.addr %s308, 2
          %s312 = sadd.s32 %s310, %s311
          %s313 = smul.addr %s312, 4
          %s314 = scalar_lea.vmem %s5, %s313
          %s315 = smul.u32 2, %s25
        $region40: #{tpu_custom_call.1} parent=23 // pred_fallthru
          _
      $region24: #{tpu_custom_call.1} parent=5 // pred_fallthru
        _
      %p316 = scmp.le.s32.totalorder 1, %s17
      %p317 = scmp.lt.s32.totalorder %s17, 3
      %p318 = pnand %p316, %p317
      %p319 = pneg %p318
      // Predicated region
      $region41: #{tpu_custom_call.1} parent=5 // pred_check
        _
      $region42: #{tpu_custom_call.1} parent=5 // pred_check_branch
        %321 = sbr.rel (%p318) target = $region44
      $region43: #{tpu_custom_call.1} parent=5 // pred_region
        %s322 = ssub.s32 %s17, 1
        %s323 = smul.u32 2, %s27
        %p324 = scmp.lt.s32.totalorder %s26, 1
        %s325 = scalar_select %p324, %s26, 1
        %p326 = scmp.lt.s32.totalorder %s323, 1
        %s327 = scalar_select %p326, %s323, 1
        %s328 = smul.addr %s325, 8
        %s329 = sadd.s32 %s327, %s328
        %s330 = smul.addr %s329, 8
        %s331 = scalar_lea.vmem %s0, %s330
        %p332 = pneg %p57
        %p333 = pneg %p54
        %s334 = smul.u32 2, %s27
        %p335 = scmp.lt.s32.totalorder %s26, 1
        %s336 = scalar_select %p335, %s26, 1
        %p337 = scmp.lt.s32.totalorder %s334, 1
        %s338 = scalar_select %p337, %s334, 1
        %s339 = smul.addr %s336, 2
        %s340 = sadd.s32 %s338, %s339
        %s341 = smul.addr %s340, 4
        %s342 = scalar_lea.vmem %s1, %s341
        %p343 = pneg %p85
        %p344 = pneg %p82
        %p345 = pneg %p106
        %p346 = pneg %p103
        %p347 = pneg %p127
        %p348 = pneg %p124
        %s349 = smul.u32 2, %s27
        %p350 = scmp.lt.s32.totalorder %s26, 1
        %s351 = scalar_select %p350, %s26, 1
        %p352 = scmp.lt.s32.totalorder %s349, 1
        %s353 = scalar_select %p352, %s349, 1
        %s354 = smul.addr %s351, 4
        %s355 = sadd.s32 %s353, %s354
        %s356 = smul.addr %s355, 8
        %s357 = scalar_lea.vmem %s4, %s356
        %p358 = pneg %p155
        %p359 = pneg %p152
        %s360 = smul.u32 2, %s27
        %p361 = scmp.lt.s32.totalorder %s26, 1
        %s362 = scalar_select %p361, %s26, 1
        %p363 = scmp.lt.s32.totalorder %s360, 1
        %s364 = scalar_select %p363, %s360, 1
        %s365 = smul.addr %s362, 2
        %s366 = sadd.s32 %s364, %s365
        %s367 = smul.addr %s366, 4
        %s368 = scalar_lea.vmem %s5, %s367
        %p369 = pneg %p183
        %p370 = pneg %p180
        %p371 = pneg %p211
        %p372 = pneg %p208
        %s373 = sand.u32 %s198, 1
        %s374 = scalar_lea.sflag [#allocation3], %s373
        %s375 = sand.u32 %s198, 1
        %s376 = smul.addr %s375, 2
        %s377 = scalar_lea.vmem [#allocation2], %s376
        %p378 = pneg %p239
        %p379 = pneg %p236
        %s380 = smul.u32 2, %s27
        %p381 = scmp.lt.s32.totalorder %s26, 1
        %s382 = scalar_select %p381, %s26, 1
        %p383 = scmp.lt.s32.totalorder %s380, 1
        %s384 = scalar_select %p383, %s380, 1
        %s385 = smul.addr %s382, 2
        %s386 = sadd.s32 %s384, %s385
        %s387 = smul.addr %s386, 4
        %s388 = scalar_lea.vmem %s7, %s387
        %s389 = smul.u32 2, %s27
        %p390 = scmp.lt.s32.totalorder %s26, 1
        %s391 = scalar_select %p390, %s26, 1
        %p392 = scmp.lt.s32.totalorder %s389, 1
        %s393 = scalar_select %p392, %s389, 1
        %s394 = smul.addr %s391, 8
        %s395 = sadd.s32 %s393, %s394
        %s396 = smul.addr %s395, 8
        %s397 = scalar_lea.vmem %s0, %s396
        %s398 = smul.u32 2, %s27
        %s399 = smul.u32 2, %s27
        %p400 = scmp.lt.s32.totalorder %s26, 1
        %s401 = scalar_select %p400, %s26, 1
        %p402 = scmp.lt.s32.totalorder %s399, 1
        %s403 = scalar_select %p402, %s399, 1
        %s404 = smul.addr %s401, 2
        %s405 = sadd.s32 %s403, %s404
        %s406 = smul.addr %s405, 4
        %s407 = scalar_lea.vmem %s1, %s406
        %s408 = smul.u32 2, %s27
        %s409 = smul.u32 2, %s27
        %p410 = scmp.lt.s32.totalorder %s26, 1
        %s411 = scalar_select %p410, %s26, 1
        %p412 = scmp.lt.s32.totalorder %s409, 1
        %s413 = scalar_select %p412, %s409, 1
        %s414 = smul.addr %s411, 4
        %s415 = sadd.s32 %s413, %s414
        %s416 = smul.addr %s415, 8
        %s417 = scalar_lea.vmem %s4, %s416
        %s418 = smul.u32 2, %s27
        %s419 = smul.u32 2, %s27
        %p420 = scmp.lt.s32.totalorder %s26, 1
        %s421 = scalar_select %p420, %s26, 1
        %p422 = scmp.lt.s32.totalorder %s419, 1
        %s423 = scalar_select %p422, %s419, 1
        %s424 = smul.addr %s421, 2
        %s425 = sadd.s32 %s423, %s424
        %s426 = smul.addr %s425, 4
        %s427 = scalar_lea.vmem %s5, %s426
        %s428 = smul.u32 2, %s27
        %s429 = smul.u32 2, %s27
        %s430 = smul.u32 2, %s27
        %p431 = scmp.lt.s32.totalorder %s26, 1
        %s432 = scalar_select %p431, %s26, 1
        %p433 = scmp.lt.s32.totalorder %s430, 1
        %s434 = scalar_select %p433, %s430, 1
        %s435 = smul.addr %s432, 2
        %s436 = sadd.s32 %s434, %s435
        %s437 = smul.addr %s436, 4
        %s438 = scalar_lea.vmem %s7, %s437
        %s439 = smul.u32 2, %s27
        %v440 = vld [vmem:[%s397] sm:$0xff]
        %v441 = vld [vmem:[%s397 + $0x8] sm:$0xff]
        %v442 = vld [vmem:[%s397 + $0x10] sm:$0xff]
        %v443 = vld [vmem:[%s397 + $0x18] sm:$0xff]
        %v444 = vld [vmem:[%s397 + $0x20] sm:$0xff]
        %v445 = vld [vmem:[%s397 + $0x28] sm:$0xff]
        %v446 = vld [vmem:[%s397 + $0x30] sm:$0xff]
        %v447 = vld [vmem:[%s397 + $0x38] sm:$0xff]
        %v448 = vld [vmem:[%s2] sm:$0xff]
        %v449 = vld [vmem:[%s2 + $0x8] sm:$0xff]
        %v450 = vld [vmem:[%s2 + $0x10] sm:$0xff]
        %v451 = vld [vmem:[%s2 + $0x18] sm:$0xff]
        %v452 = vld [vmem:[%s2 + $0x20] sm:$0xff]
        %v453 = vld [vmem:[%s2 + $0x28] sm:$0xff]
        %v454 = vld [vmem:[%s2 + $0x30] sm:$0xff]
        %v455 = vld [vmem:[%s2 + $0x38] sm:$0xff]
        %v456 = vld [vmem:[%s2 + $0x40] sm:$0xff]
        %v457 = vld [vmem:[%s2 + $0x48] sm:$0xff]
        %v458 = vld [vmem:[%s2 + $0x50] sm:$0xff]
        %v459 = vld [vmem:[%s2 + $0x58] sm:$0xff]
        %v460 = vld [vmem:[%s2 + $0x60] sm:$0xff]
        %v461 = vld [vmem:[%s2 + $0x68] sm:$0xff]
        %v462 = vld [vmem:[%s2 + $0x70] sm:$0xff]
        %v463 = vld [vmem:[%s2 + $0x78] sm:$0xff]
        %v464 = vld [vmem:[%s2 + $0x80] sm:$0xff]
        %v465 = vld [vmem:[%s2 + $0x88] sm:$0xff]
        %v466 = vld [vmem:[%s2 + $0x90] sm:$0xff]
        %v467 = vld [vmem:[%s2 + $0x98] sm:$0xff]
        %v468 = vld [vmem:[%s3] sm:$0xff]
        %v469 = vld [vmem:[%s3 + $0x8] sm:$0xff]
        %v470 = vld [vmem:[%s3 + $0x10] sm:$0xff]
        %v471 = vld [vmem:[%s3 + $0x18] sm:$0xff]
        %v472 = vld [vmem:[%s3 + $0x20] sm:$0xff]
        %v473 = vld [vmem:[%s3 + $0x28] sm:$0xff]
        %v474 = vld [vmem:[%s3 + $0x30] sm:$0xff]
        %v475 = vld [vmem:[%s3 + $0x38] sm:$0xff]
        %v476 = vld [vmem:[%s3 + $0x40] sm:$0xff]
        %v477 = vld [vmem:[%s3 + $0x48] sm:$0xff]
        %v478 = vld [vmem:[%s3 + $0x50] sm:$0xff]
        %v479 = vld [vmem:[%s3 + $0x58] sm:$0xff]
        %v480 = vld [vmem:[%s3 + $0x60] sm:$0xff]
        %v481 = vld [vmem:[%s3 + $0x68] sm:$0xff]
        %v482 = vld [vmem:[%s3 + $0x70] sm:$0xff]
        %v483 = vld [vmem:[%s3 + $0x78] sm:$0xff]
        %v484 = vld [vmem:[%s3 + $0x80] sm:$0xff]
        %v485 = vld [vmem:[%s3 + $0x88] sm:$0xff]
        %v486 = vld [vmem:[%s3 + $0x90] sm:$0xff]
        %v487 = vld [vmem:[%s3 + $0x98] sm:$0xff]
        %489 = vset.pattern.permute.xlu0 0
        %490 = vperm.xlu0 %489, %v468
        %v491 = vpop.permute.xlu0 %490
        %494 = vset.pattern.permute.xlu0 0
        %495 = vperm.xlu0 %494, %v469
        %v496 = vpop.permute.xlu0 %495
        %499 = vset.pattern.permute.xlu0 0
        %500 = vperm.xlu0 %499, %v470
        %v501 = vpop.permute.xlu0 %500
        %504 = vset.pattern.permute.xlu0 0
        %505 = vperm.xlu0 %504, %v471
        %v506 = vpop.permute.xlu0 %505
        %509 = vset.pattern.permute.xlu0 0
        %510 = vperm.xlu0 %509, %v472
        %v511 = vpop.permute.xlu0 %510
        %514 = vset.pattern.permute.xlu0 0
        %515 = vperm.xlu0 %514, %v473
        %v516 = vpop.permute.xlu0 %515
        %519 = vset.pattern.permute.xlu0 0
        %520 = vperm.xlu0 %519, %v474
        %v521 = vpop.permute.xlu0 %520
        %524 = vset.pattern.permute.xlu0 0
        %525 = vperm.xlu0 %524, %v475
        %v526 = vpop.permute.xlu0 %525
        %529 = vset.pattern.permute.xlu0 0
        %530 = vperm.xlu0 %529, %v476
        %v531 = vpop.permute.xlu0 %530
        %534 = vset.pattern.permute.xlu0 0
        %535 = vperm.xlu0 %534, %v477
        %v536 = vpop.permute.xlu0 %535
        %539 = vset.pattern.permute.xlu0 0
        %540 = vperm.xlu0 %539, %v478
        %v541 = vpop.permute.xlu0 %540
        %544 = vset.pattern.permute.xlu0 0
        %545 = vperm.xlu0 %544, %v479
        %v546 = vpop.permute.xlu0 %545
        %549 = vset.pattern.permute.xlu0 0
        %550 = vperm.xlu0 %549, %v480
        %v551 = vpop.permute.xlu0 %550
        %554 = vset.pattern.permute.xlu0 0
        %555 = vperm.xlu0 %554, %v481
        %v556 = vpop.permute.xlu0 %555
        %559 = vset.pattern.permute.xlu0 0
        %560 = vperm.xlu0 %559, %v482
        %v561 = vpop.permute.xlu0 %560
        %564 = vset.pattern.permute.xlu0 0
        %565 = vperm.xlu0 %564, %v483
        %v566 = vpop.permute.xlu0 %565
        %569 = vset.pattern.permute.xlu0 0
        %570 = vperm.xlu0 %569, %v484
        %v571 = vpop.permute.xlu0 %570
        %574 = vset.pattern.permute.xlu0 0
        %575 = vperm.xlu0 %574, %v485
        %v576 = vpop.permute.xlu0 %575
        %579 = vset.pattern.permute.xlu0 0
        %580 = vperm.xlu0 %579, %v486
        %v581 = vpop.permute.xlu0 %580
        %584 = vset.pattern.permute.xlu0 0
        %585 = vperm.xlu0 %584, %v487
        %v586 = vpop.permute.xlu0 %585
        %vm588 = vcmask 261120
        %v590 = vsel %vm588, %v448, 0
        %v593 = vsel %vm588, %v449, 0
        %v596 = vsel %vm588, %v450, 0
        %v599 = vsel %vm588, %v451, 0
        %v602 = vsel %vm588, %v452, 0
        %v605 = vsel %vm588, %v453, 0
        %v608 = vsel %vm588, %v454, 0
        %v611 = vsel %vm588, %v455, 0
        %v614 = vsel %vm588, %v456, 0
        %v617 = vsel %vm588, %v457, 0
        %v620 = vsel %vm588, %v458, 0
        %v623 = vsel %vm588, %v459, 0
        %v626 = vsel %vm588, %v460, 0
        %v629 = vsel %vm588, %v461, 0
        %v632 = vsel %vm588, %v462, 0
        %v635 = vsel %vm588, %v463, 0
        %v638 = vsel %vm588, %v464, 0
        %v641 = vsel %vm588, %v465, 0
        %v644 = vsel %vm588, %v466, 0
        %v647 = vsel %vm588, %v467, 0
        %649 = vmatprep.subr.mxu0 0.0
        %650 = vmatpush1.msra.mxu0 0.0
        %651 = vmatprep.subr.mxu0 0.0
        %652 = vmatpush1.msra.mxu0 0.0
        %653 = vmatprep.subr.mxu0 0.0
        %654 = vmatpush1.msra.mxu0 0.0
        %655 = vmatprep.subr.mxu0 0.0
        %656 = vmatpush1.msra.mxu0 0.0
        %657 = vmatprep.subr.mxu0 0.0
        %658 = vmatpush1.msra.mxu0 0.0
        %659 = vmatprep.subr.mxu0 0.0
        %660 = vmatpush1.msra.mxu0 0.0
        %661 = vmatprep.subr.mxu0 0.0
        %662 = vmatpush1.msra.mxu0 0.0
        %663 = vmatprep.subr.mxu0 0.0
        %664 = vmatpush1.msra.mxu0 0.0
        %665 = vmatprep.subr.mxu0 0.0
        %666 = vmatpush1.msra.mxu0 0.0
        %667 = vmatprep.subr.mxu0 0.0
        %668 = vmatpush1.msra.mxu0 0.0
        %669 = vmatprep.subr.mxu0 0.0
        %670 = vmatpush1.msra.mxu0 0.0
        %671 = vmatprep.subr.mxu0 0.0
        %672 = vmatpush1.msra.mxu0 0.0
        %673 = vmatprep.subr.mxu0 %v447
        %674 = vmatpush1.msra.mxu0 %v446
        %675 = vmatprep.subr.mxu0 %v445
        %676 = vmatpush1.msra.mxu0 %v444
        %677 = vmatprep.subr.mxu0 %v443
        %678 = vmatpush1.msra.mxu0 %v442
        %679 = vmatprep.subr.mxu0 %v441
        %680 = vmatpush1.msra.mxu0 %v440
        %681 = vmatprep.subr.mxu0 0.0
        %682 = vmatpush2.msra.mxu0 0.0
        %683 = vmatprep.subr.mxu0 0.0
        %684 = vmatpush2.msra.mxu0 0.0
        %685 = vmatprep.subr.mxu0 0.0
        %686 = vmatpush2.msra.mxu0 0.0
        %687 = vmatprep.subr.mxu0 0.0
        %688 = vmatpush2.msra.mxu0 0.0
        %689 = vmatprep.subr.mxu0 0.0
        %690 = vmatpush2.msra.mxu0 0.0
        %691 = vmatprep.subr.mxu0 0.0
        %692 = vmatpush2.msra.mxu0 0.0
        %693 = vmatprep.subr.mxu0 0.0
        %694 = vmatpush2.msra.mxu0 0.0
        %695 = vmatprep.subr.mxu0 0.0
        %696 = vmatpush2.msra.mxu0 0.0
        %697 = vmatprep.subr.mxu0 0.0
        %698 = vmatpush2.msra.mxu0 0.0
        %699 = vmatprep.subr.mxu0 0.0
        %700 = vmatpush2.msra.mxu0 0.0
        %701 = vmatprep.subr.mxu0 0.0
        %702 = vmatpush2.msra.mxu0 0.0
        %703 = vmatprep.subr.mxu0 0.0
        %704 = vmatpush2.msra.mxu0 0.0
        %705 = vmatprep.subr.mxu0 0.0
        %706 = vmatpush2.msra.mxu0 0.0
        %707 = vmatprep.subr.mxu0 0.0
        %708 = vmatpush2.msra.mxu0 0.0
        %709 = vmatprep.subr.mxu0 0.0
        %710 = vmatpush2.msra.mxu0 0.0
        %711 = vmatprep.subr.mxu0 0.0
        %712 = vmatpush2.msra.mxu0 0.0
        %713 = vmatprep.mubr.f32.mxu0 0.0
        %714 = vmatmul.mubr.f32.gmra.mxu0 %v590
        %v715 = vpop.f32.mrf.mxu0
        %v716 = vadd.f32 %v491, %v715
        %v717 = vpop.f32.mrf.mxu0
        %v718 = vadd.f32 %v491, %v717
        %719 = vmatprep.mubr.f32.mxu0 0.0
        %720 = vmatmul.mubr.f32.gmra.mxu0 %v593
        %v721 = vpop.f32.mrf.mxu0
        %v722 = vadd.f32 %v496, %v721
        %v723 = vpop.f32.mrf.mxu0
        %v724 = vadd.f32 %v496, %v723
        %725 = vmatprep.mubr.f32.mxu0 0.0
        %726 = vmatmul.mubr.f32.gmra.mxu0 %v596
        %v727 = vpop.f32.mrf.mxu0
        %v728 = vadd.f32 %v501, %v727
        %v729 = vpop.f32.mrf.mxu0
        %v730 = vadd.f32 %v501, %v729
        %731 = vmatprep.mubr.f32.mxu0 0.0
        %732 = vmatmul.mubr.f32.gmra.mxu0 %v599
        %v733 = vpop.f32.mrf.mxu0
        %v734 = vadd.f32 %v506, %v733
        %v735 = vpop.f32.mrf.mxu0
        %v736 = vadd.f32 %v506, %v735
        %737 = vmatprep.mubr.f32.mxu0 0.0
        %738 = vmatmul.mubr.f32.gmra.mxu0 %v602
        %v739 = vpop.f32.mrf.mxu0
        %v740 = vadd.f32 %v511, %v739
        %v741 = vpop.f32.mrf.mxu0
        %v742 = vadd.f32 %v511, %v741
        %743 = vmatprep.mubr.f32.mxu0 0.0
        %744 = vmatmul.mubr.f32.gmra.mxu0 %v605
        %v745 = vpop.f32.mrf.mxu0
        %v746 = vadd.f32 %v516, %v745
        %v747 = vpop.f32.mrf.mxu0
        %v748 = vadd.f32 %v516, %v747
        %749 = vmatprep.mubr.f32.mxu0 0.0
        %750 = vmatmul.mubr.f32.gmra.mxu0 %v608
        %v751 = vpop.f32.mrf.mxu0
        %v752 = vadd.f32 %v521, %v751
        %v753 = vpop.f32.mrf.mxu0
        %v754 = vadd.f32 %v521, %v753
        %755 = vmatprep.mubr.f32.mxu0 0.0
        %756 = vmatmul.mubr.f32.gmra.mxu0 %v611
        %v757 = vpop.f32.mrf.mxu0
        %v758 = vadd.f32 %v526, %v757
        %v759 = vpop.f32.mrf.mxu0
        %v760 = vadd.f32 %v526, %v759
        %761 = vmatprep.mubr.f32.mxu0 0.0
        %762 = vmatmul.mubr.f32.gmra.mxu0 %v614
        %v763 = vpop.f32.mrf.mxu0
        %v764 = vadd.f32 %v531, %v763
        %v765 = vpop.f32.mrf.mxu0
        %v766 = vadd.f32 %v531, %v765
        %767 = vmatprep.mubr.f32.mxu0 0.0
        %768 = vmatmul.mubr.f32.gmra.mxu0 %v617
        %v769 = vpop.f32.mrf.mxu0
        %v770 = vadd.f32 %v536, %v769
        %v771 = vpop.f32.mrf.mxu0
        %v772 = vadd.f32 %v536, %v771
        %773 = vmatprep.mubr.f32.mxu0 0.0
        %774 = vmatmul.mubr.f32.gmra.mxu0 %v620
        %v775 = vpop.f32.mrf.mxu0
        %v776 = vadd.f32 %v541, %v775
        %v777 = vpop.f32.mrf.mxu0
        %v778 = vadd.f32 %v541, %v777
        %779 = vmatprep.mubr.f32.mxu0 0.0
        %780 = vmatmul.mubr.f32.gmra.mxu0 %v623
        %v781 = vpop.f32.mrf.mxu0
        %v782 = vadd.f32 %v546, %v781
        %v783 = vpop.f32.mrf.mxu0
        %v784 = vadd.f32 %v546, %v783
        %785 = vmatprep.mubr.f32.mxu0 0.0
        %786 = vmatmul.mubr.f32.gmra.mxu0 %v626
        %v787 = vpop.f32.mrf.mxu0
        %v788 = vadd.f32 %v551, %v787
        %v789 = vpop.f32.mrf.mxu0
        %v790 = vadd.f32 %v551, %v789
        %791 = vmatprep.mubr.f32.mxu0 0.0
        %792 = vmatmul.mubr.f32.gmra.mxu0 %v629
        %v793 = vpop.f32.mrf.mxu0
        %v794 = vadd.f32 %v556, %v793
        %v795 = vpop.f32.mrf.mxu0
        %v796 = vadd.f32 %v556, %v795
        %797 = vmatprep.mubr.f32.mxu0 0.0
        %798 = vmatmul.mubr.f32.gmra.mxu0 %v632
        %v799 = vpop.f32.mrf.mxu0
        %v800 = vadd.f32 %v561, %v799
        %v801 = vpop.f32.mrf.mxu0
        %v802 = vadd.f32 %v561, %v801
        %803 = vmatprep.mubr.f32.mxu0 0.0
        %804 = vmatmul.mubr.f32.gmra.mxu0 %v635
        %v805 = vpop.f32.mrf.mxu0
        %v806 = vadd.f32 %v566, %v805
        %v807 = vpop.f32.mrf.mxu0
        %v808 = vadd.f32 %v566, %v807
        %809 = vmatprep.mubr.f32.mxu0 0.0
        %810 = vmatmul.mubr.f32.gmra.mxu0 %v638
        %v811 = vpop.f32.mrf.mxu0
        %v812 = vadd.f32 %v571, %v811
        %v813 = vpop.f32.mrf.mxu0
        %v814 = vadd.f32 %v571, %v813
        %815 = vmatprep.mubr.f32.mxu0 0.0
        %816 = vmatmul.mubr.f32.gmra.mxu0 %v641
        %v817 = vpop.f32.mrf.mxu0
        %v818 = vadd.f32 %v576, %v817
        %v819 = vpop.f32.mrf.mxu0
        %v820 = vadd.f32 %v576, %v819
        %821 = vmatprep.mubr.f32.mxu0 0.0
        %822 = vmatmul.mubr.f32.gmra.mxu0 %v644
        %v823 = vpop.f32.mrf.mxu0
        %v824 = vadd.f32 %v581, %v823
        %v825 = vpop.f32.mrf.mxu0
        %v826 = vadd.f32 %v581, %v825
        %827 = vmatprep.mubr.f32.mxu0 0.0
        %828 = vmatmul.mubr.f32.gmra.mxu0 %v647
        %v829 = vpop.f32.mrf.mxu0
        %v830 = vadd.f32 %v586, %v829
        %v831 = vpop.f32.mrf.mxu0
        %v832 = vadd.f32 %v586, %v831
        %833 = vdwg.mxu0
        %v834 = vld [vmem:[%s417] sm:$0xff]
        %v835 = vld [vmem:[%s417 + $0x8] sm:$0xff]
        %v836 = vld [vmem:[%s417 + $0x10] sm:$0x3]
        %v837 = vld [vmem:[%s417 + $0x18] sm:$0x3]
        %v838 = vadd.f32 %v716, %v834
        %v839 = vadd.f32 %v718, %v835
        %v840 = vadd.f32 %v722, %v836
        %v841 = vadd.f32 %v724, %v837
        %vm842 = vcmask 1041408
        %v843 = vsel %vm842, %v840, -inf
        %v844 = vmax.f32 %v838, %v843
        %v845 = vrot.slane %v844, 4
        %v846 = vmax.f32 %v844, %v845
        %v847 = vrot.slane %v846, 2
        %v848 = vmax.f32 %v846, %v847
        %v849 = vrot.slane %v848, 1
        %v850 = vmax.f32 %v848, %v849
        %v851 = vsel %vm842, %v841, -inf
        %v852 = vmax.f32 %v839, %v851
        %v853 = vrot.slane %v852, 4
        %v854 = vmax.f32 %v852, %v853
        %v855 = vrot.slane %v854, 2
        %v856 = vmax.f32 %v854, %v855
        %v857 = vrot.slane %v856, 1
        %v858 = vmax.f32 %v856, %v857
        %v859 = vlaneseq
        %v860 = vshrl.u32 %v859, 7
        %v861 = vadd.s32 %v860, 8
        %vm862 = vcmp.ge.f32.partialorder %v838, %v850
        %vm863 = vcmp.ge.f32.partialorder %v839, %v858
        %vm864 = vcmp.ge.f32.partialorder %v840, %v850
        %vm865 = vcmp.ge.f32.partialorder %v841, %v858
        %v866 = vsel %vm862, %v860, 10
        %v867 = vsel %vm863, %v860, 10
        %v868 = vsel %vm864, %v861, 10
        %v869 = vsel %vm865, %v861, 10
        %v870 = vsel %vm842, %v868, 2147483647
        %vm871 = vcmp.lt.s32.totalorder %v866, %v870
        %v872 = vsel %vm871, %v866, %v870
        %v873 = vrot.slane %v872, 4
        %vm874 = vcmp.lt.s32.totalorder %v872, %v873
        %v875 = vsel %vm874, %v872, %v873
        %v876 = vrot.slane %v875, 2
        %vm877 = vcmp.lt.s32.totalorder %v875, %v876
        %v878 = vsel %vm877, %v875, %v876
        %v879 = vrot.slane %v878, 1
        %vm880 = vcmp.lt.s32.totalorder %v878, %v879
        %v881 = vsel %vm880, %v878, %v879
        %v882 = vsel %vm842, %v869, 2147483647
        %vm883 = vcmp.lt.s32.totalorder %v867, %v882
        %v884 = vsel %vm883, %v867, %v882
        %v885 = vrot.slane %v884, 4
        %vm886 = vcmp.lt.s32.totalorder %v884, %v885
        %v887 = vsel %vm886, %v884, %v885
        %v888 = vrot.slane %v887, 2
        %vm889 = vcmp.lt.s32.totalorder %v887, %v888
        %v890 = vsel %vm889, %v887, %v888
        %v891 = vrot.slane %v890, 1
        %vm892 = vcmp.lt.s32.totalorder %v890, %v891
        %v893 = vsel %vm892, %v890, %v891
        %vm894 = vcmp.eq.s32.totalorder %v860, %v881
        %vm895 = vcmp.eq.s32.totalorder %v860, %v893
        %vm896 = vcmp.eq.s32.totalorder %v861, %v881
        %vm897 = vcmp.eq.s32.totalorder %v861, %v893
        %v898 = vsel %vm894, 1, 0
        %v899 = vsel %vm895, 1, 0
        %v900 = vsel %vm896, 1, 0
        %v901 = vsel %vm897, 1, 0
        %v902 = vcvt.s32.f32 %v898
        %v903 = vcvt.s32.f32 %v899
        %v904 = vcvt.s32.f32 %v900
        %v905 = vcvt.s32.f32 %v901
        %v906 = vmul.f32 %v728, %v902
        %v907 = vmul.f32 %v730, %v903
        %v908 = vmul.f32 %v734, %v904
        %v909 = vmul.f32 %v736, %v905
        %v910 = vadd.f32 %v906, %v908
        %v911 = vrot.slane %v910, 4
        %v912 = vadd.f32 %v910, %v911
        %v913 = vrot.slane %v912, 2
        %v914 = vadd.f32 %v912, %v913
        %v915 = vrot.slane %v914, 1
        %v916 = vadd.f32 %v914, %v915
        %v917 = vadd.f32 %v907, %v909
        %v918 = vrot.slane %v917, 4
        %v919 = vadd.f32 %v917, %v918
        %v920 = vrot.slane %v919, 2
        %v921 = vadd.f32 %v919, %v920
        %v922 = vrot.slane %v921, 1
        %v923 = vadd.f32 %v921, %v922
        %v924 = vmul.f32 %v764, %v902
        %v925 = vmul.f32 %v766, %v903
        %v926 = vmul.f32 %v770, %v904
        %v927 = vmul.f32 %v772, %v905
        %v928 = vadd.f32 %v924, %v926
        %v929 = vrot.slane %v928, 4
        %v930 = vadd.f32 %v928, %v929
        %v931 = vrot.slane %v930, 2
        %v932 = vadd.f32 %v930, %v931
        %v933 = vrot.slane %v932, 1
        %v934 = vadd.f32 %v932, %v933
        %v935 = vadd.f32 %v925, %v927
        %v936 = vrot.slane %v935, 4
        %v937 = vadd.f32 %v935, %v936
        %v938 = vrot.slane %v937, 2
        %v939 = vadd.f32 %v937, %v938
        %v940 = vrot.slane %v939, 1
        %v941 = vadd.f32 %v939, %v940
        %v942 = vmul.f32 %v800, %v902
        %v943 = vmul.f32 %v802, %v903
        %v944 = vmul.f32 %v806, %v904
        %v945 = vmul.f32 %v808, %v905
        %v946 = vadd.f32 %v942, %v944
        %v947 = vrot.slane %v946, 4
        %v948 = vadd.f32 %v946, %v947
        %v949 = vrot.slane %v948, 2
        %v950 = vadd.f32 %v948, %v949
        %v951 = vrot.slane %v950, 1
        %v952 = vadd.f32 %v950, %v951
        %v953 = vadd.f32 %v943, %v945
        %v954 = vrot.slane %v953, 4
        %v955 = vadd.f32 %v953, %v954
        %v956 = vrot.slane %v955, 2
        %v957 = vadd.f32 %v955, %v956
        %v958 = vrot.slane %v957, 1
        %v959 = vadd.f32 %v957, %v958
        %v960 = vmul.f32 %v740, %v902
        %v961 = vmul.f32 %v742, %v903
        %v962 = vmul.f32 %v746, %v904
        %v963 = vmul.f32 %v748, %v905
        %v964 = vadd.f32 %v960, %v962
        %v965 = vrot.slane %v964, 4
        %v966 = vadd.f32 %v964, %v965
        %v967 = vrot.slane %v966, 2
        %v968 = vadd.f32 %v966, %v967
        %v969 = vrot.slane %v968, 1
        %v970 = vadd.f32 %v968, %v969
        %v971 = vadd.f32 %v961, %v963
        %v972 = vrot.slane %v971, 4
        %v973 = vadd.f32 %v971, %v972
        %v974 = vrot.slane %v973, 2
        %v975 = vadd.f32 %v973, %v974
        %v976 = vrot.slane %v975, 1
        %v977 = vadd.f32 %v975, %v976
        %v978 = vmax.f32 %v970, -7.0
        %v979 = vmax.f32 %v977, -7.0
        %v980 = vmul.f32 %v776, %v902
        %v981 = vmul.f32 %v778, %v903
        %v982 = vmul.f32 %v782, %v904
        %v983 = vmul.f32 %v784, %v905
        %v984 = vadd.f32 %v980, %v982
        %v985 = vrot.slane %v984, 4
        %v986 = vadd.f32 %v984, %v985
        %v987 = vrot.slane %v986, 2
        %v988 = vadd.f32 %v986, %v987
        %v989 = vrot.slane %v988, 1
        %v990 = vadd.f32 %v988, %v989
        %v991 = vadd.f32 %v981, %v983
        %v992 = vrot.slane %v991, 4
        %v993 = vadd.f32 %v991, %v992
        %v994 = vrot.slane %v993, 2
        %v995 = vadd.f32 %v993, %v994
        %v996 = vrot.slane %v995, 1
        %v997 = vadd.f32 %v995, %v996
        %v998 = vmax.f32 %v990, -7.0
        %v999 = vmax.f32 %v997, -7.0
        %v1000 = vmul.f32 %v812, %v902
        %v1001 = vmul.f32 %v814, %v903
        %v1002 = vmul.f32 %v818, %v904
        %v1003 = vmul.f32 %v820, %v905
        %v1004 = vadd.f32 %v1000, %v1002
        %v1005 = vrot.slane %v1004, 4
        %v1006 = vadd.f32 %v1004, %v1005
        %v1007 = vrot.slane %v1006, 2
        %v1008 = vadd.f32 %v1006, %v1007
        %v1009 = vrot.slane %v1008, 1
        %v1010 = vadd.f32 %v1008, %v1009
        %v1011 = vadd.f32 %v1001, %v1003
        %v1012 = vrot.slane %v1011, 4
        %v1013 = vadd.f32 %v1011, %v1012
        %v1014 = vrot.slane %v1013, 2
        %v1015 = vadd.f32 %v1013, %v1014
        %v1016 = vrot.slane %v1015, 1
        %v1017 = vadd.f32 %v1015, %v1016
        %v1018 = vmax.f32 %v1010, -7.0
        %v1019 = vmax.f32 %v1017, -7.0
        %v1020 = vmul.f32 %v752, %v902
        %v1021 = vmul.f32 %v754, %v903
        %v1022 = vmul.f32 %v758, %v904
        %v1023 = vmul.f32 %v760, %v905
        %v1024 = vadd.f32 %v1020, %v1022
        %v1025 = vrot.slane %v1024, 4
        %v1026 = vadd.f32 %v1024, %v1025
        %v1027 = vrot.slane %v1026, 2
        %v1028 = vadd.f32 %v1026, %v1027
        %v1029 = vrot.slane %v1028, 1
        %v1030 = vadd.f32 %v1028, %v1029
        %v1031 = vadd.f32 %v1021, %v1023
        %v1032 = vrot.slane %v1031, 4
        %v1033 = vadd.f32 %v1031, %v1032
        %v1034 = vrot.slane %v1033, 2
        %v1035 = vadd.f32 %v1033, %v1034
        %v1036 = vrot.slane %v1035, 1
        %v1037 = vadd.f32 %v1035, %v1036
        %v1038 = vmax.f32 %v1030, -7.905311
        %v1039 = vmax.f32 %v1037, -7.905311
        %v1040 = vmin.f32 %v1038, 7.905311
        %v1041 = vmin.f32 %v1039, 7.905311
        %v1042 = vmul.f32 %v1040, %v1040
        %v1043 = vmul.f32 %v1041, %v1041
        %v1044 = vmul.f32 %v1042, -2.7607684e-16
        %v1045 = vmul.f32 %v1043, -2.7607684e-16
        %v1046 = vadd.f32 %v1044, 2.000188e-13
        %v1047 = vadd.f32 %v1045, 2.000188e-13
        %v1048 = vmul.f32 %v1042, %v1046
        %v1049 = vmul.f32 %v1043, %v1047
        %v1050 = vadd.f32 %v1048, -8.604672e-11
        %v1051 = vadd.f32 %v1049, -8.604672e-11
        %v1052 = vmul.f32 %v1042, %v1050
        %v1053 = vmul.f32 %v1043, %v1051
        %v1054 = vadd.f32 %v1052, 5.1222973e-08
        %v1055 = vadd.f32 %v1053, 5.1222973e-08
        %v1056 = vmul.f32 %v1042, %v1054
        %v1057 = vmul.f32 %v1043, %v1055
        %v1058 = vadd.f32 %v1056, 1.48572235e-05
        %v1059 = vadd.f32 %v1057, 1.48572235e-05
        %v1060 = vmul.f32 %v1042, %v1058
        %v1061 = vmul.f32 %v1043, %v1059
        %v1062 = vadd.f32 %v1060, 0.00063726195
        %v1063 = vadd.f32 %v1061, 0.00063726195
        %v1064 = vmul.f32 %v1042, %v1062
        %v1065 = vmul.f32 %v1043, %v1063
        %v1066 = vadd.f32 %v1064, 0.0048935246
        %v1067 = vadd.f32 %v1065, 0.0048935246
        %v1068 = vmul.f32 %v1040, %v1066
        %v1069 = vmul.f32 %v1041, %v1067
        %v1070 = vmul.f32 %v1042, 1.1982584e-06
        %v1071 = vmul.f32 %v1043, 1.1982584e-06
        %v1072 = vadd.f32 %v1070, 0.00011853471
        %v1073 = vadd.f32 %v1071, 0.00011853471
        %v1074 = vmul.f32 %v1042, %v1072
        %v1075 = vmul.f32 %v1043, %v1073
        %v1076 = vadd.f32 %v1074, 0.0022684347
        %v1077 = vadd.f32 %v1075, 0.0022684347
        %v1078 = vmul.f32 %v1042, %v1076
        %v1079 = vmul.f32 %v1043, %v1077
        %v1080 = vadd.f32 %v1078, 0.004893525
        %v1081 = vadd.f32 %v1079, 0.004893525
        %v1082 = vrcp.pop %v1080
        %v1083 = vrcp.pop %v1081
        %v1084 = vmul.f32 %v1080, %v1082
        %v1085 = vmul.f32 %v1081, %v1083
        %v1086 = vsub.f32 2.0, %v1084
        %v1087 = vsub.f32 2.0, %v1085
        %v1088 = vmul.f32 %v1082, %v1086
        %v1089 = vmul.f32 %v1083, %v1087
        %v1090 = vmul.f32 %v1068, %v1088
        %v1091 = vmul.f32 %v1069, %v1089
        %v1092 = vmul.f32 %v788, %v902
        %v1093 = vmul.f32 %v790, %v903
        %v1094 = vmul.f32 %v794, %v904
        %v1095 = vmul.f32 %v796, %v905
        %v1096 = vadd.f32 %v1092, %v1094
        %v1097 = vrot.slane %v1096, 4
        %v1098 = vadd.f32 %v1096, %v1097
        %v1099 = vrot.slane %v1098, 2
        %v1100 = vadd.f32 %v1098, %v1099
        %v1101 = vrot.slane %v1100, 1
        %v1102 = vadd.f32 %v1100, %v1101
        %v1103 = vadd.f32 %v1093, %v1095
        %v1104 = vrot.slane %v1103, 4
        %v1105 = vadd.f32 %v1103, %v1104
        %v1106 = vrot.slane %v1105, 2
        %v1107 = vadd.f32 %v1105, %v1106
        %v1108 = vrot.slane %v1107, 1
        %v1109 = vadd.f32 %v1107, %v1108
        %v1110 = vmax.f32 %v1102, -7.905311
        %v1111 = vmax.f32 %v1109, -7.905311
        %v1112 = vmin.f32 %v1110, 7.905311
        %v1113 = vmin.f32 %v1111, 7.905311
        %v1114 = vmul.f32 %v1112, %v1112
        %v1115 = vmul.f32 %v1113, %v1113
        %v1116 = vmul.f32 %v1114, -2.7607684e-16
        %v1117 = vmul.f32 %v1115, -2.7607684e-16
        %v1118 = vadd.f32 %v1116, 2.000188e-13
        %v1119 = vadd.f32 %v1117, 2.000188e-13
        %v1120 = vmul.f32 %v1114, %v1118
        %v1121 = vmul.f32 %v1115, %v1119
        %v1122 = vadd.f32 %v1120, -8.604672e-11
        %v1123 = vadd.f32 %v1121, -8.604672e-11
        %v1124 = vmul.f32 %v1114, %v1122
        %v1125 = vmul.f32 %v1115, %v1123
        %v1126 = vadd.f32 %v1124, 5.1222973e-08
        %v1127 = vadd.f32 %v1125, 5.1222973e-08
        %v1128 = vmul.f32 %v1114, %v1126
        %v1129 = vmul.f32 %v1115, %v1127
        %v1130 = vadd.f32 %v1128, 1.48572235e-05
        %v1131 = vadd.f32 %v1129, 1.48572235e-05
        %v1132 = vmul.f32 %v1114, %v1130
        %v1133 = vmul.f32 %v1115, %v1131
        %v1134 = vadd.f32 %v1132, 0.00063726195
        %v1135 = vadd.f32 %v1133, 0.00063726195
        %v1136 = vmul.f32 %v1114, %v1134
        %v1137 = vmul.f32 %v1115, %v1135
        %v1138 = vadd.f32 %v1136, 0.0048935246
        %v1139 = vadd.f32 %v1137, 0.0048935246
        %v1140 = vmul.f32 %v1112, %v1138
        %v1141 = vmul.f32 %v1113, %v1139
        %v1142 = vmul.f32 %v1114, 1.1982584e-06
        %v1143 = vmul.f32 %v1115, 1.1982584e-06
        %v1144 = vadd.f32 %v1142, 0.00011853471
        %v1145 = vadd.f32 %v1143, 0.00011853471
        %v1146 = vmul.f32 %v1114, %v1144
        %v1147 = vmul.f32 %v1115, %v1145
        %v1148 = vadd.f32 %v1146, 0.0022684347
        %v1149 = vadd.f32 %v1147, 0.0022684347
        %v1150 = vmul.f32 %v1114, %v1148
        %v1151 = vmul.f32 %v1115, %v1149
        %v1152 = vadd.f32 %v1150, 0.004893525
        %v1153 = vadd.f32 %v1151, 0.004893525
        %v1154 = vrcp.pop %v1152
        %v1155 = vrcp.pop %v1153
        %v1156 = vmul.f32 %v1152, %v1154
        %v1157 = vmul.f32 %v1153, %v1155
        %v1158 = vsub.f32 2.0, %v1156
        %v1159 = vsub.f32 2.0, %v1157
        %v1160 = vmul.f32 %v1154, %v1158
        %v1161 = vmul.f32 %v1155, %v1159
        %v1162 = vmul.f32 %v1140, %v1160
        %v1163 = vmul.f32 %v1141, %v1161
        %v1164 = vmul.f32 %v824, %v902
        %v1165 = vmul.f32 %v826, %v903
        %v1166 = vmul.f32 %v830, %v904
        %v1167 = vmul.f32 %v832, %v905
        %v1168 = vadd.f32 %v1164, %v1166
        %v1169 = vrot.slane %v1168, 4
        %v1170 = vadd.f32 %v1168, %v1169
        %v1171 = vrot.slane %v1170, 2
        %v1172 = vadd.f32 %v1170, %v1171
        %v1173 = vrot.slane %v1172, 1
        %v1174 = vadd.f32 %v1172, %v1173
        %v1175 = vadd.f32 %v1165, %v1167
        %v1176 = vrot.slane %v1175, 4
        %v1177 = vadd.f32 %v1175, %v1176
        %v1178 = vrot.slane %v1177, 2
        %v1179 = vadd.f32 %v1177, %v1178
        %v1180 = vrot.slane %v1179, 1
        %v1181 = vadd.f32 %v1179, %v1180
        %v1182 = vmax.f32 %v1174, -7.905311
        %v1183 = vmax.f32 %v1181, -7.905311
        %v1184 = vmin.f32 %v1182, 7.905311
        %v1185 = vmin.f32 %v1183, 7.905311
        %v1186 = vmul.f32 %v1184, %v1184
        %v1187 = vmul.f32 %v1185, %v1185
        %v1188 = vmul.f32 %v1186, -2.7607684e-16
        %v1189 = vmul.f32 %v1187, -2.7607684e-16
        %v1190 = vadd.f32 %v1188, 2.000188e-13
        %v1191 = vadd.f32 %v1189, 2.000188e-13
        %v1192 = vmul.f32 %v1186, %v1190
        %v1193 = vmul.f32 %v1187, %v1191
        %v1194 = vadd.f32 %v1192, -8.604672e-11
        %v1195 = vadd.f32 %v1193, -8.604672e-11
        %v1196 = vmul.f32 %v1186, %v1194
        %v1197 = vmul.f32 %v1187, %v1195
        %v1198 = vadd.f32 %v1196, 5.1222973e-08
        %v1199 = vadd.f32 %v1197, 5.1222973e-08
        %v1200 = vmul.f32 %v1186, %v1198
        %v1201 = vmul.f32 %v1187, %v1199
        %v1202 = vadd.f32 %v1200, 1.48572235e-05
        %v1203 = vadd.f32 %v1201, 1.48572235e-05
        %v1204 = vmul.f32 %v1186, %v1202
        %v1205 = vmul.f32 %v1187, %v1203
        %v1206 = vadd.f32 %v1204, 0.00063726195
        %v1207 = vadd.f32 %v1205, 0.00063726195
        %v1208 = vmul.f32 %v1186, %v1206
        %v1209 = vmul.f32 %v1187, %v1207
        %v1210 = vadd.f32 %v1208, 0.0048935246
        %v1211 = vadd.f32 %v1209, 0.0048935246
        %v1212 = vmul.f32 %v1184, %v1210
        %v1213 = vmul.f32 %v1185, %v1211
        %v1214 = vmul.f32 %v1186, 1.1982584e-06
        %v1215 = vmul.f32 %v1187, 1.1982584e-06
        %v1216 = vadd.f32 %v1214, 0.00011853471
        %v1217 = vadd.f32 %v1215, 0.00011853471
        %v1218 = vmul.f32 %v1186, %v1216
        %v1219 = vmul.f32 %v1187, %v1217
        %v1220 = vadd.f32 %v1218, 0.0022684347
        %v1221 = vadd.f32 %v1219, 0.0022684347
        %v1222 = vmul.f32 %v1186, %v1220
        %v1223 = vmul.f32 %v1187, %v1221
        %v1224 = vadd.f32 %v1222, 0.004893525
        %v1225 = vadd.f32 %v1223, 0.004893525
        %v1226 = vrcp.pop %v1224
        %v1227 = vrcp.pop %v1225
        %v1228 = vmul.f32 %v1224, %v1226
        %v1229 = vmul.f32 %v1225, %v1227
        %v1230 = vsub.f32 2.0, %v1228
        %v1231 = vsub.f32 2.0, %v1229
        %v1232 = vmul.f32 %v1226, %v1230
        %v1233 = vmul.f32 %v1227, %v1231
        %v1234 = vmul.f32 %v1212, %v1232
        %v1235 = vmul.f32 %v1213, %v1233
        %v1236 = vld [vmem:[%s427] sm:$0x77]
        %v1237 = vmul.f32 %v978, 1.442695
        %v1238 = vpow.pop %v1237
        %v1239 = vmul.f32 %v979, 1.442695
        %v1240 = vpow.pop %v1239
        %v1242 = vlaneseq
        %v1243 = vshrl.u32 %v1242, 7
        %v1244 = vsub.s32 0, %v1243
        %v1245 = vrot.slane %v1236, %v1244
        %v1246 = vlaneseq
        %v1247 = vshrl.u32 %v1246, 7
        %v1248 = vsub.s32 4, %v1247
        %v1249 = vrot.slane %v1236, %v1248
        %v1252 = vmul.f32 %v1238, %v1245
        %v1253 = vmul.f32 %v1240, %v1249
        %v1254 = vadd.f32 %v916, %v1252
        %v1255 = vadd.f32 %v923, %v1253
        %v1256 = vmul.f32 %v998, 1.442695
        %v1257 = vpow.pop %v1256
        %v1258 = vmul.f32 %v999, 1.442695
        %v1259 = vpow.pop %v1258
        %v1260 = vlaneseq
        %v1261 = vshrl.u32 %v1260, 7
        %v1262 = vsub.s32 1, %v1261
        %v1263 = vrot.slane %v1236, %v1262
        %v1264 = vlaneseq
        %v1265 = vshrl.u32 %v1264, 7
        %v1266 = vsub.s32 5, %v1265
        %v1267 = vrot.slane %v1236, %v1266
        %v1270 = vmul.f32 %v1257, %v1263
        %v1271 = vmul.f32 %v1259, %v1267
        %v1272 = vadd.f32 %v934, %v1270
        %v1273 = vadd.f32 %v941, %v1271
        %v1274 = vmul.f32 %v1018, 1.442695
        %v1275 = vpow.pop %v1274
        %v1276 = vmul.f32 %v1019, 1.442695
        %v1277 = vpow.pop %v1276
        %v1278 = vlaneseq
        %v1279 = vshrl.u32 %v1278, 7
        %v1280 = vsub.s32 2, %v1279
        %v1281 = vrot.slane %v1236, %v1280
        %v1282 = vlaneseq
        %v1283 = vshrl.u32 %v1282, 7
        %v1284 = vsub.s32 6, %v1283
        %v1285 = vrot.slane %v1236, %v1284
        %v1288 = vmul.f32 %v1275, %v1281
        %v1289 = vmul.f32 %v1277, %v1285
        %v1290 = vadd.f32 %v952, %v1288
        %v1291 = vadd.f32 %v959, %v1289
        %v1292 = vmax.f32 %v1254, -1.0
        %v1293 = vmax.f32 %v1255, -1.0
        %v1294 = vmin.f32 %v1292, 1.0
        %v1295 = vmin.f32 %v1293, 1.0
        %v1296 = vmul.f32 %v1090, %v1294
        %v1297 = vmul.f32 %v1091, %v1295
        %v1298 = vadd.f32 %v1272, %v1296
        %v1299 = vadd.f32 %v1273, %v1297
        %v1300 = vmax.f32 %v1298, -1.0
        %v1301 = vmax.f32 %v1299, -1.0
        %v1302 = vmin.f32 %v1300, 1.0
        %v1303 = vmin.f32 %v1301, 1.0
        %v1304 = vmul.f32 %v1162, %v1294
        %v1305 = vmul.f32 %v1163, %v1295
        %v1306 = vadd.f32 %v1290, %v1304
        %v1307 = vadd.f32 %v1291, %v1305
        %v1308 = vmul.f32 %v1234, %v1302
        %v1309 = vmul.f32 %v1235, %v1303
        %v1310 = vadd.f32 %v1306, %v1308
        %v1311 = vadd.f32 %v1307, %v1309
        %v1312 = vmax.f32 %v1310, -1.0
        %v1313 = vmax.f32 %v1311, -1.0
        %v1314 = vmin.f32 %v1312, 1.0
        %v1315 = vmin.f32 %v1313, 1.0
        %v1316 = vadd.f32 %v1294, 1.0
        %v1317 = vadd.f32 %v1295, 1.0
        %v1318 = vmul.f32 %v1316, 0.5
        %v1319 = vmul.f32 %v1317, 0.5
        %v1320 = vmax.f32 %v1318, 0.0
        %v1321 = vmax.f32 %v1319, 0.0
        %v1322 = vmin.f32 %v1320, 1.0
        %v1323 = vmin.f32 %v1321, 1.0
        %v1326 = vcombine.low %v1322, %v1323
        %v1328 = vunpack.c.l.s4 1966171168
        %v1329 = vunpack.c.0.s8 %v1328
        %v1330 = vlaneseq
        %v1331 = vshrl.u32 %v1330, 7
        %v1332 = vsub.s32 %v1329, %v1331
        %v1333 = vrot.slane %v1326, %v1332
        %v1335 = vunpack.c.l.s4 1966171168
        %v1336 = vunpack.c.0.s8 %v1335
        %v1337 = vlaneseq
        %v1338 = vshrl.u32 %v1337, 7
        %v1339 = vsub.s32 %v1336, %v1338
        %v1340 = vrot.slane %v1333, %v1339
        %v1342 = vlaneseq
        %vm1343 = vcmp.ge.s32.totalorder %v1342, 0
        %vm1344 = vcmp.lt.s32.totalorder %v1342, 256
        %vm1345 = vmand %vm1343, %vm1344
        %1346 = vst.msk [vmem:[%s438] ss:$4 sm:$0x3] %vm1345, %v1340
        %v1347 = vadd.f32 %v1302, 1.0
        %v1348 = vadd.f32 %v1303, 1.0
        %v1349 = vmul.f32 %v1347, 0.5
        %v1350 = vmul.f32 %v1348, 0.5
        %v1351 = vmax.f32 %v1349, 0.0
        %v1352 = vmax.f32 %v1350, 0.0
        %v1353 = vmin.f32 %v1351, 1.0
        %v1354 = vmin.f32 %v1352, 1.0
        %v1357 = vcombine.low %v1353, %v1354
        %v1359 = vunpack.c.l.s4 1966171168
        %v1360 = vunpack.c.0.s8 %v1359
        %v1361 = vlaneseq
        %v1362 = vshrl.u32 %v1361, 7
        %v1363 = vsub.s32 %v1360, %v1362
        %v1364 = vrot.slane %v1357, %v1363
        %v1366 = vunpack.c.l.s4 1966171168
        %v1367 = vunpack.c.0.s8 %v1366
        %v1368 = vlaneseq
        %v1369 = vshrl.u32 %v1368, 7
        %v1370 = vsub.s32 %v1367, %v1369
        %v1371 = vrot.slane %v1364, %v1370
        %s1373 = scalar_lea.vmem %s438, 1
        %1374 = vst.msk [vmem:[%s1373] ss:$4 sm:$0x3] %vm1345, %v1371
        %v1375 = vadd.f32 %v1314, 1.0
        %v1376 = vadd.f32 %v1315, 1.0
        %v1377 = vmul.f32 %v1375, 0.5
        %v1378 = vmul.f32 %v1376, 0.5
        %v1379 = vmax.f32 %v1377, 0.0
        %v1380 = vmax.f32 %v1378, 0.0
        %v1381 = vmin.f32 %v1379, 1.0
        %v1382 = vmin.f32 %v1380, 1.0
        %v1385 = vcombine.low %v1381, %v1382
        %v1387 = vunpack.c.l.s4 1966171168
        %v1388 = vunpack.c.0.s8 %v1387
        %v1389 = vlaneseq
        %v1390 = vshrl.u32 %v1389, 7
        %v1391 = vsub.s32 %v1388, %v1390
        %v1392 = vrot.slane %v1385, %v1391
        %v1394 = vunpack.c.l.s4 1966171168
        %v1395 = vunpack.c.0.s8 %v1394
        %v1396 = vlaneseq
        %v1397 = vshrl.u32 %v1396, 7
        %v1398 = vsub.s32 %v1395, %v1397
        %v1399 = vrot.slane %v1392, %v1398
        %s1401 = scalar_lea.vmem %s438, 2
        %1402 = vst.msk [vmem:[%s1401] ss:$4 sm:$0x3] %vm1345, %v1399
        %v1403 = vld [vmem:[%s407] sm:$0x77]
        %v1404 = vmul.f32 %v1403, 2.0
        %v1405 = vsub.f32 %v1404, 1.0
        %v1406 = vmax.f32 %v740, -7.0
        %v1407 = vmax.f32 %v742, -7.0
        %v1408 = vmax.f32 %v746, -7.0
        %v1409 = vmax.f32 %v748, -7.0
        %v1411 = vlaneseq
        %v1412 = vshrl.u32 %v1411, 7
        %v1413 = vsub.s32 0, %v1412
        %v1414 = vrot.slane %v1405, %v1413
        %v1415 = vlaneseq
        %v1416 = vshrl.u32 %v1415, 7
        %v1417 = vsub.s32 4, %v1416
        %v1418 = vrot.slane %v1405, %v1417
        %v1421 = vlaneseq
        %v1422 = vshrl.u32 %v1421, 7
        %v1423 = vsub.s32 0, %v1422
        %v1424 = vrot.slane %v1414, %v1423
        %v1425 = vlaneseq
        %v1426 = vshrl.u32 %v1425, 7
        %v1427 = vsub.s32 0, %v1426
        %v1428 = vrot.slane %v1418, %v1427
        %v1429 = vsub.f32 %v1424, %v728
        %v1430 = vsub.f32 %v1428, %v730
        %v1431 = vsub.f32 %v1424, %v734
        %v1432 = vsub.f32 %v1428, %v736
        %v1433 = vsub.f32 0.0, %v1406
        %v1434 = vsub.f32 0.0, %v1407
        %v1435 = vsub.f32 0.0, %v1408
        %v1436 = vsub.f32 0.0, %v1409
        %v1437 = vmul.f32 %v1433, 1.442695
        %v1438 = vpow.pop %v1437
        %v1439 = vmul.f32 %v1434, 1.442695
        %v1440 = vpow.pop %v1439
        %v1441 = vmul.f32 %v1435, 1.442695
        %v1442 = vpow.pop %v1441
        %v1443 = vmul.f32 %v1436, 1.442695
        %v1444 = vpow.pop %v1443
        %v1445 = vadd.f32 %v1429, 0.003921569
        %v1446 = vadd.f32 %v1430, 0.003921569
        %v1447 = vadd.f32 %v1431, 0.003921569
        %v1448 = vadd.f32 %v1432, 0.003921569
        %v1449 = vmul.f32 %v1438, %v1445
        %v1450 = vmul.f32 %v1440, %v1446
        %v1451 = vmul.f32 %v1442, %v1447
        %v1452 = vmul.f32 %v1444, %v1448
        %v1453 = vsub.f32 %v1429, 0.003921569
        %v1454 = vsub.f32 %v1430, 0.003921569
        %v1455 = vsub.f32 %v1431, 0.003921569
        %v1456 = vsub.f32 %v1432, 0.003921569
        %v1457 = vmul.f32 %v1438, %v1453
        %v1458 = vmul.f32 %v1440, %v1454
        %v1459 = vmul.f32 %v1442, %v1455
        %v1460 = vmul.f32 %v1444, %v1456
        %v1461 = vsub.f32 0.0, %v1449
        %v1462 = vsub.f32 0.0, %v1450
        %v1463 = vsub.f32 0.0, %v1451
        %v1464 = vsub.f32 0.0, %v1452
        %v1465 = vmax.f32 %v1461, 0.0
        %v1466 = vmax.f32 %v1462, 0.0
        %v1467 = vmax.f32 %v1463, 0.0
        %v1468 = vmax.f32 %v1464, 0.0
        %vm1469 = vcmp.ne.f32.partialorder %v1461, %v1461
        %vm1470 = vcmp.ne.f32.partialorder %v1462, %v1462
        %vm1471 = vcmp.ne.f32.partialorder %v1463, %v1463
        %vm1472 = vcmp.ne.f32.partialorder %v1464, %v1464
        %v1473 = vadd.f32 %v1461, 0.0
        %v1474 = vadd.f32 %v1462, 0.0
        %v1475 = vadd.f32 %v1463, 0.0
        %v1476 = vadd.f32 %v1464, 0.0
        %v1477 = vand.u32 2147483647, %v1461
        %v1478 = vand.u32 2147483647, %v1462
        %v1479 = vand.u32 2147483647, %v1463
        %v1480 = vand.u32 2147483647, %v1464
        %v1481 = vsub.f32 0.0, %v1477
        %v1482 = vsub.f32 0.0, %v1478
        %v1483 = vsub.f32 0.0, %v1479
        %v1484 = vsub.f32 0.0, %v1480
        %v1485 = vmul.f32 %v1481, 1.442695
        %v1486 = vpow.pop %v1485
        %v1487 = vmul.f32 %v1482, 1.442695
        %v1488 = vpow.pop %v1487
        %v1489 = vmul.f32 %v1483, 1.442695
        %v1490 = vpow.pop %v1489
        %v1491 = vmul.f32 %v1484, 1.442695
        %v1492 = vpow.pop %v1491
        %v1493 = vadd.f32 %v1486, 1.0
        %v1494 = vlog2.pop %v1493
        %v1495 = vmul.f32 %v1494, 0.6931472
        %v1496 = vmul.f32 -0.5, %v1486
        %v1497 = vadd.f32 %v1496, 1.0
        %v1498 = vmul.f32 %v1497, %v1486
        %v1499 = vand.u32 2147483647, %v1486
        %vm1500 = vcmp.lt.f32.partialorder %v1499, 0.0004427343
        %v1501 = vsel %vm1500, %v1498, %v1495
        %v1502 = vadd.f32 %v1488, 1.0
        %v1503 = vlog2.pop %v1502
        %v1504 = vmul.f32 %v1503, 0.6931472
        %v1505 = vmul.f32 -0.5, %v1488
        %v1506 = vadd.f32 %v1505, 1.0
        %v1507 = vmul.f32 %v1506, %v1488
        %v1508 = vand.u32 2147483647, %v1488
        %vm1509 = vcmp.lt.f32.partialorder %v1508, 0.0004427343
        %v1510 = vsel %vm1509, %v1507, %v1504
        %v1511 = vadd.f32 %v1490, 1.0
        %v1512 = vlog2.pop %v1511
        %v1513 = vmul.f32 %v1512, 0.6931472
        %v1514 = vmul.f32 -0.5, %v1490
        %v1515 = vadd.f32 %v1514, 1.0
        %v1516 = vmul.f32 %v1515, %v1490
        %v1517 = vand.u32 2147483647, %v1490
        %vm1518 = vcmp.lt.f32.partialorder %v1517, 0.0004427343
        %v1519 = vsel %vm1518, %v1516, %v1513
        %v1520 = vadd.f32 %v1492, 1.0
        %v1521 = vlog2.pop %v1520
        %v1522 = vmul.f32 %v1521, 0.6931472
        %v1523 = vmul.f32 -0.5, %v1492
        %v1524 = vadd.f32 %v1523, 1.0
        %v1525 = vmul.f32 %v1524, %v1492
        %v1526 = vand.u32 2147483647, %v1492
        %vm1527 = vcmp.lt.f32.partialorder %v1526, 0.0004427343
        %v1528 = vsel %vm1527, %v1525, %v1522
        %v1529 = vadd.f32 %v1465, %v1501
        %v1530 = vadd.f32 %v1466, %v1510
        %v1531 = vadd.f32 %v1467, %v1519
        %v1532 = vadd.f32 %v1468, %v1528
        %v1533 = vsel %vm1469, %v1473, %v1529
        %v1534 = vsel %vm1470, %v1474, %v1530
        %v1535 = vsel %vm1471, %v1475, %v1531
        %v1536 = vsel %vm1472, %v1476, %v1532
        %v1537 = vmax.f32 %v1457, 0.0
        %v1538 = vmax.f32 %v1458, 0.0
        %v1539 = vmax.f32 %v1459, 0.0
        %v1540 = vmax.f32 %v1460, 0.0
        %vm1541 = vcmp.ne.f32.partialorder %v1457, %v1457
        %vm1542 = vcmp.ne.f32.partialorder %v1458, %v1458
        %vm1543 = vcmp.ne.f32.partialorder %v1459, %v1459
        %vm1544 = vcmp.ne.f32.partialorder %v1460, %v1460
        %v1545 = vadd.f32 %v1457, 0.0
        %v1546 = vadd.f32 %v1458, 0.0
        %v1547 = vadd.f32 %v1459, 0.0
        %v1548 = vadd.f32 %v1460, 0.0
        %v1549 = vand.u32 2147483647, %v1457
        %v1550 = vand.u32 2147483647, %v1458
        %v1551 = vand.u32 2147483647, %v1459
        %v1552 = vand.u32 2147483647, %v1460
        %v1553 = vsub.f32 0.0, %v1549
        %v1554 = vsub.f32 0.0, %v1550
        %v1555 = vsub.f32 0.0, %v1551
        %v1556 = vsub.f32 0.0, %v1552
        %v1557 = vmul.f32 %v1553, 1.442695
        %v1558 = vpow.pop %v1557
        %v1559 = vmul.f32 %v1554, 1.442695
        %v1560 = vpow.pop %v1559
        %v1561 = vmul.f32 %v1555, 1.442695
        %v1562 = vpow.pop %v1561
        %v1563 = vmul.f32 %v1556, 1.442695
        %v1564 = vpow.pop %v1563
        %v1565 = vadd.f32 %v1558, 1.0
        %v1566 = vlog2.pop %v1565
        %v1567 = vmul.f32 %v1566, 0.6931472
        %v1568 = vmul.f32 -0.5, %v1558
        %v1569 = vadd.f32 %v1568, 1.0
        %v1570 = vmul.f32 %v1569, %v1558
        %v1571 = vand.u32 2147483647, %v1558
        %vm1572 = vcmp.lt.f32.partialorder %v1571, 0.0004427343
        %v1573 = vsel %vm1572, %v1570, %v1567
        %v1574 = vadd.f32 %v1560, 1.0
        %v1575 = vlog2.pop %v1574
        %v1576 = vmul.f32 %v1575, 0.6931472
        %v1577 = vmul.f32 -0.5, %v1560
        %v1578 = vadd.f32 %v1577, 1.0
        %v1579 = vmul.f32 %v1578, %v1560
        %v1580 = vand.u32 2147483647, %v1560
        %vm1581 = vcmp.lt.f32.partialorder %v1580, 0.0004427343
        %v1582 = vsel %vm1581, %v1579, %v1576
        %v1583 = vadd.f32 %v1562, 1.0
        %v1584 = vlog2.pop %v1583
        %v1585 = vmul.f32 %v1584, 0.6931472
        %v1586 = vmul.f32 -0.5, %v1562
        %v1587 = vadd.f32 %v1586, 1.0
        %v1588 = vmul.f32 %v1587, %v1562
        %v1589 = vand.u32 2147483647, %v1562
        %vm1590 = vcmp.lt.f32.partialorder %v1589, 0.0004427343
        %v1591 = vsel %vm1590, %v1588, %v1585
        %v1592 = vadd.f32 %v1564, 1.0
        %v1593 = vlog2.pop %v1592
        %v1594 = vmul.f32 %v1593, 0.6931472
        %v1595 = vmul.f32 -0.5, %v1564
        %v1596 = vadd.f32 %v1595, 1.0
        %v1597 = vmul.f32 %v1596, %v1564
        %v1598 = vand.u32 2147483647, %v1564
        %vm1599 = vcmp.lt.f32.partialorder %v1598, 0.0004427343
        %v1600 = vsel %vm1599, %v1597, %v1594
        %v1601 = vadd.f32 %v1537, %v1573
        %v1602 = vadd.f32 %v1538, %v1582
        %v1603 = vadd.f32 %v1539, %v1591
        %v1604 = vadd.f32 %v1540, %v1600
        %v1605 = vsel %vm1541, %v1545, %v1601
        %v1606 = vsel %vm1542, %v1546, %v1602
        %v1607 = vsel %vm1543, %v1547, %v1603
        %v1608 = vsel %vm1544, %v1548, %v1604
        %v1609 = vsub.f32 0.0, %v1533
        %v1610 = vsub.f32 0.0, %v1534
        %v1611 = vsub.f32 0.0, %v1535
        %v1612 = vsub.f32 0.0, %v1536
        %v1613 = vsub.f32 0.0, %v1605
        %v1614 = vsub.f32 0.0, %v1606
        %v1615 = vsub.f32 0.0, %v1607
        %v1616 = vsub.f32 0.0, %v1608
        %v1617 = vsub.f32 %v1457, %v1605
        %v1618 = vsub.f32 %v1458, %v1606
        %v1619 = vsub.f32 %v1459, %v1607
        %v1620 = vsub.f32 %v1460, %v1608
        %v1621 = vsub.f32 %v1617, %v1609
        %v1622 = vsub.f32 %v1618, %v1610
        %v1623 = vsub.f32 %v1619, %v1611
        %v1624 = vsub.f32 %v1620, %v1612
        %v1625 = vmin.f32 %v1621, 0.0
        %v1626 = vmin.f32 %v1622, 0.0
        %v1627 = vmin.f32 %v1623, 0.0
        %v1628 = vmin.f32 %v1624, 0.0
        %v1629 = vmul.f32 %v1625, 1.442695
        %v1630 = vpow.pop %v1629
        %v1631 = vmul.f32 %v1626, 1.442695
        %v1632 = vpow.pop %v1631
        %v1633 = vmul.f32 %v1627, 1.442695
        %v1634 = vpow.pop %v1633
        %v1635 = vmul.f32 %v1628, 1.442695
        %v1636 = vpow.pop %v1635
        %v1637 = vsub.f32 0.0, %v1630
        %v1638 = vsub.f32 0.0, %v1632
        %v1639 = vsub.f32 0.0, %v1634
        %v1640 = vsub.f32 0.0, %v1636
        %v1641 = vadd.f32 %v1637, 1.0
        %v1642 = vlog2.pop %v1641
        %v1643 = vmul.f32 %v1642, 0.6931472
        %v1644 = vmul.f32 -0.5, %v1637
        %v1645 = vadd.f32 %v1644, 1.0
        %v1646 = vmul.f32 %v1645, %v1637
        %v1647 = vand.u32 2147483647, %v1637
        %vm1648 = vcmp.lt.f32.partialorder %v1647, 0.0004427343
        %v1649 = vsel %vm1648, %v1646, %v1643
        %v1650 = vadd.f32 %v1638, 1.0
        %v1651 = vlog2.pop %v1650
        %v1652 = vmul.f32 %v1651, 0.6931472
        %v1653 = vmul.f32 -0.5, %v1638
        %v1654 = vadd.f32 %v1653, 1.0
        %v1655 = vmul.f32 %v1654, %v1638
        %v1656 = vand.u32 2147483647, %v1638
        %vm1657 = vcmp.lt.f32.partialorder %v1656, 0.0004427343
        %v1658 = vsel %vm1657, %v1655, %v1652
        %v1659 = vadd.f32 %v1639, 1.0
        %v1660 = vlog2.pop %v1659
        %v1661 = vmul.f32 %v1660, 0.6931472
        %v1662 = vmul.f32 -0.5, %v1639
        %v1663 = vadd.f32 %v1662, 1.0
        %v1664 = vmul.f32 %v1663, %v1639
        %v1665 = vand.u32 2147483647, %v1639
        %vm1666 = vcmp.lt.f32.partialorder %v1665, 0.0004427343
        %v1667 = vsel %vm1666, %v1664, %v1661
        %v1668 = vadd.f32 %v1640, 1.0
        %v1669 = vlog2.pop %v1668
        %v1670 = vmul.f32 %v1669, 0.6931472
        %v1671 = vmul.f32 -0.5, %v1640
        %v1672 = vadd.f32 %v1671, 1.0
        %v1673 = vmul.f32 %v1672, %v1640
        %v1674 = vand.u32 2147483647, %v1640
        %vm1675 = vcmp.lt.f32.partialorder %v1674, 0.0004427343
        %v1676 = vsel %vm1675, %v1673, %v1670
        %v1677 = vadd.f32 %v1609, %v1649
        %v1678 = vadd.f32 %v1610, %v1658
        %v1679 = vadd.f32 %v1611, %v1667
        %v1680 = vadd.f32 %v1612, %v1676
        %v1681 = vmul.f32 %v1438, %v1429
        %v1682 = vmul.f32 %v1440, %v1430
        %v1683 = vmul.f32 %v1442, %v1431
        %v1684 = vmul.f32 %v1444, %v1432
        %v1685 = vsub.f32 %v1681, %v1406
        %v1686 = vsub.f32 %v1682, %v1407
        %v1687 = vsub.f32 %v1683, %v1408
        %v1688 = vsub.f32 %v1684, %v1409
        %v1689 = vmax.f32 %v1681, 0.0
        %v1690 = vmax.f32 %v1682, 0.0
        %v1691 = vmax.f32 %v1683, 0.0
        %v1692 = vmax.f32 %v1684, 0.0
        %vm1693 = vcmp.ne.f32.partialorder %v1681, %v1681
        %vm1694 = vcmp.ne.f32.partialorder %v1682, %v1682
        %vm1695 = vcmp.ne.f32.partialorder %v1683, %v1683
        %vm1696 = vcmp.ne.f32.partialorder %v1684, %v1684
        %v1697 = vadd.f32 %v1681, 0.0
        %v1698 = vadd.f32 %v1682, 0.0
        %v1699 = vadd.f32 %v1683, 0.0
        %v1700 = vadd.f32 %v1684, 0.0
        %v1701 = vand.u32 2147483647, %v1681
        %v1702 = vand.u32 2147483647, %v1682
        %v1703 = vand.u32 2147483647, %v1683
        %v1704 = vand.u32 2147483647, %v1684
        %v1705 = vsub.f32 0.0, %v1701
        %v1706 = vsub.f32 0.0, %v1702
        %v1707 = vsub.f32 0.0, %v1703
        %v1708 = vsub.f32 0.0, %v1704
        %v1709 = vmul.f32 %v1705, 1.442695
        %v1710 = vpow.pop %v1709
        %v1711 = vmul.f32 %v1706, 1.442695
        %v1712 = vpow.pop %v1711
        %v1713 = vmul.f32 %v1707, 1.442695
        %v1714 = vpow.pop %v1713
        %v1715 = vmul.f32 %v1708, 1.442695
        %v1716 = vpow.pop %v1715
        %v1717 = vadd.f32 %v1710, 1.0
        %v1718 = vlog2.pop %v1717
        %v1719 = vmul.f32 %v1718, 0.6931472
        %v1720 = vmul.f32 -0.5, %v1710
        %v1721 = vadd.f32 %v1720, 1.0
        %v1722 = vmul.f32 %v1721, %v1710
        %v1723 = vand.u32 2147483647, %v1710
        %vm1724 = vcmp.lt.f32.partialorder %v1723, 0.0004427343
        %v1725 = vsel %vm1724, %v1722, %v1719
        %v1726 = vadd.f32 %v1712, 1.0
        %v1727 = vlog2.pop %v1726
        %v1728 = vmul.f32 %v1727, 0.6931472
        %v1729 = vmul.f32 -0.5, %v1712
        %v1730 = vadd.f32 %v1729, 1.0
        %v1731 = vmul.f32 %v1730, %v1712
        %v1732 = vand.u32 2147483647, %v1712
        %vm1733 = vcmp.lt.f32.partialorder %v1732, 0.0004427343
        %v1734 = vsel %vm1733, %v1731, %v1728
        %v1735 = vadd.f32 %v1714, 1.0
        %v1736 = vlog2.pop %v1735
        %v1737 = vmul.f32 %v1736, 0.6931472
        %v1738 = vmul.f32 -0.5, %v1714
        %v1739 = vadd.f32 %v1738, 1.0
        %v1740 = vmul.f32 %v1739, %v1714
        %v1741 = vand.u32 2147483647, %v1714
        %vm1742 = vcmp.lt.f32.partialorder %v1741, 0.0004427343
        %v1743 = vsel %vm1742, %v1740, %v1737
        %v1744 = vadd.f32 %v1716, 1.0
        %v1745 = vlog2.pop %v1744
        %v1746 = vmul.f32 %v1745, 0.6931472
        %v1747 = vmul.f32 -0.5, %v1716
        %v1748 = vadd.f32 %v1747, 1.0
        %v1749 = vmul.f32 %v1748, %v1716
        %v1750 = vand.u32 2147483647, %v1716
        %vm1751 = vcmp.lt.f32.partialorder %v1750, 0.0004427343
        %v1752 = vsel %vm1751, %v1749, %v1746
        %v1753 = vadd.f32 %v1689, %v1725
        %v1754 = vadd.f32 %v1690, %v1734
        %v1755 = vadd.f32 %v1691, %v1743
        %v1756 = vadd.f32 %v1692, %v1752
        %v1757 = vsel %vm1693, %v1697, %v1753
        %v1758 = vsel %vm1694, %v1698, %v1754
        %v1759 = vsel %vm1695, %v1699, %v1755
        %v1760 = vsel %vm1696, %v1700, %v1756
        %v1761 = vmul.f32 %v1757, 2.0
        %v1762 = vmul.f32 %v1758, 2.0
        %v1763 = vmul.f32 %v1759, 2.0
        %v1764 = vmul.f32 %v1760, 2.0
        %v1765 = vsub.f32 %v1685, %v1761
        %v1766 = vsub.f32 %v1686, %v1762
        %v1767 = vsub.f32 %v1687, %v1763
        %v1768 = vsub.f32 %v1688, %v1764
        %vm1769 = vcmp.gt.f32.partialorder %v1677, -11.512925
        %vm1770 = vcmp.gt.f32.partialorder %v1678, -11.512925
        %vm1771 = vcmp.gt.f32.partialorder %v1679, -11.512925
        %vm1772 = vcmp.gt.f32.partialorder %v1680, -11.512925
        %v1773 = vsub.f32 %v1765, 4.8481164
        %v1774 = vsub.f32 %v1766, 4.8481164
        %v1775 = vsub.f32 %v1767, 4.8481164
        %v1776 = vsub.f32 %v1768, 4.8481164
        %v1777 = vsel %vm1769, %v1677, %v1773
        %v1778 = vsel %vm1770, %v1678, %v1774
        %v1779 = vsel %vm1771, %v1679, %v1775
        %v1780 = vsel %vm1772, %v1680, %v1776
        %vm1781 = vcmp.gt.f32.partialorder %v1405, 0.999
        %v1782 = vsel %vm1781, 1, 0
        %v1783 = vlaneseq
        %v1784 = vshrl.u32 %v1783, 7
        %v1785 = vsub.s32 0, %v1784
        %v1786 = vrot.slane %v1782, %v1785
        %v1787 = vlaneseq
        %v1788 = vshrl.u32 %v1787, 7
        %v1789 = vsub.s32 4, %v1788
        %v1790 = vrot.slane %v1782, %v1789
        %v1791 = vlaneseq
        %v1792 = vshrl.u32 %v1791, 7
        %v1793 = vsub.s32 0, %v1792
        %v1794 = vrot.slane %v1786, %v1793
        %v1795 = vlaneseq
        %v1796 = vshrl.u32 %v1795, 7
        %v1797 = vsub.s32 0, %v1796
        %v1798 = vrot.slane %v1790, %v1797
        %vm1799 = vcmp.eq.s32.totalorder %v1794, 1
        %vm1800 = vcmp.eq.s32.totalorder %v1798, 1
        %v1801 = vsel %vm1799, %v1613, %v1777
        %v1802 = vsel %vm1800, %v1614, %v1778
        %v1803 = vsel %vm1799, %v1615, %v1779
        %v1804 = vsel %vm1800, %v1616, %v1780
        %vm1805 = vcmp.lt.f32.partialorder %v1405, -0.999
        %v1806 = vsel %vm1805, 1, 0
        %v1807 = vlaneseq
        %v1808 = vshrl.u32 %v1807, 7
        %v1809 = vsub.s32 0, %v1808
        %v1810 = vrot.slane %v1806, %v1809
        %v1811 = vlaneseq
        %v1812 = vshrl.u32 %v1811, 7
        %v1813 = vsub.s32 4, %v1812
        %v1814 = vrot.slane %v1806, %v1813
        %v1815 = vlaneseq
        %v1816 = vshrl.u32 %v1815, 7
        %v1817 = vsub.s32 0, %v1816
        %v1818 = vrot.slane %v1810, %v1817
        %v1819 = vlaneseq
        %v1820 = vshrl.u32 %v1819, 7
        %v1821 = vsub.s32 0, %v1820
        %v1822 = vrot.slane %v1814, %v1821
        %vm1823 = vcmp.eq.s32.totalorder %v1818, 1
        %vm1824 = vcmp.eq.s32.totalorder %v1822, 1
        %v1825 = vsel %vm1823, %v1609, %v1801
        %v1826 = vsel %vm1824, %v1610, %v1802
        %v1827 = vsel %vm1823, %v1611, %v1803
        %v1828 = vsel %vm1824, %v1612, %v1804
        %v1829 = vmax.f32 %v752, -7.905311
        %v1830 = vmax.f32 %v754, -7.905311
        %v1831 = vmax.f32 %v758, -7.905311
        %v1832 = vmax.f32 %v760, -7.905311
        %v1833 = vmin.f32 %v1829, 7.905311
        %v1834 = vmin.f32 %v1830, 7.905311
        %v1835 = vmin.f32 %v1831, 7.905311
        %v1836 = vmin.f32 %v1832, 7.905311
        %v1837 = vmul.f32 %v1833, %v1833
        %v1838 = vmul.f32 %v1834, %v1834
        %v1839 = vmul.f32 %v1835, %v1835
        %v1840 = vmul.f32 %v1836, %v1836
        %v1841 = vmul.f32 %v1837, -2.7607684e-16
        %v1842 = vmul.f32 %v1838, -2.7607684e-16
        %v1843 = vmul.f32 %v1839, -2.7607684e-16
        %v1844 = vmul.f32 %v1840, -2.7607684e-16
        %v1845 = vadd.f32 %v1841, 2.000188e-13
        %v1846 = vadd.f32 %v1842, 2.000188e-13
        %v1847 = vadd.f32 %v1843, 2.000188e-13
        %v1848 = vadd.f32 %v1844, 2.000188e-13
        %v1849 = vmul.f32 %v1837, %v1845
        %v1850 = vmul.f32 %v1838, %v1846
        %v1851 = vmul.f32 %v1839, %v1847
        %v1852 = vmul.f32 %v1840, %v1848
        %v1853 = vadd.f32 %v1849, -8.604672e-11
        %v1854 = vadd.f32 %v1850, -8.604672e-11
        %v1855 = vadd.f32 %v1851, -8.604672e-11
        %v1856 = vadd.f32 %v1852, -8.604672e-11
        %v1857 = vmul.f32 %v1837, %v1853
        %v1858 = vmul.f32 %v1838, %v1854
        %v1859 = vmul.f32 %v1839, %v1855
        %v1860 = vmul.f32 %v1840, %v1856
        %v1861 = vadd.f32 %v1857, 5.1222973e-08
        %v1862 = vadd.f32 %v1858, 5.1222973e-08
        %v1863 = vadd.f32 %v1859, 5.1222973e-08
        %v1864 = vadd.f32 %v1860, 5.1222973e-08
        %v1865 = vmul.f32 %v1837, %v1861
        %v1866 = vmul.f32 %v1838, %v1862
        %v1867 = vmul.f32 %v1839, %v1863
        %v1868 = vmul.f32 %v1840, %v1864
        %v1869 = vadd.f32 %v1865, 1.48572235e-05
        %v1870 = vadd.f32 %v1866, 1.48572235e-05
        %v1871 = vadd.f32 %v1867, 1.48572235e-05
        %v1872 = vadd.f32 %v1868, 1.48572235e-05
        %v1873 = vmul.f32 %v1837, %v1869
        %v1874 = vmul.f32 %v1838, %v1870
        %v1875 = vmul.f32 %v1839, %v1871
        %v1876 = vmul.f32 %v1840, %v1872
        %v1877 = vadd.f32 %v1873, 0.00063726195
        %v1878 = vadd.f32 %v1874, 0.00063726195
        %v1879 = vadd.f32 %v1875, 0.00063726195
        %v1880 = vadd.f32 %v1876, 0.00063726195
        %v1881 = vmul.f32 %v1837, %v1877
        %v1882 = vmul.f32 %v1838, %v1878
        %v1883 = vmul.f32 %v1839, %v1879
        %v1884 = vmul.f32 %v1840, %v1880
        %v1885 = vadd.f32 %v1881, 0.0048935246
        %v1886 = vadd.f32 %v1882, 0.0048935246
        %v1887 = vadd.f32 %v1883, 0.0048935246
        %v1888 = vadd.f32 %v1884, 0.0048935246
        %v1889 = vmul.f32 %v1833, %v1885
        %v1890 = vmul.f32 %v1834, %v1886
        %v1891 = vmul.f32 %v1835, %v1887
        %v1892 = vmul.f32 %v1836, %v1888
        %v1893 = vmul.f32 %v1837, 1.1982584e-06
        %v1894 = vmul.f32 %v1838, 1.1982584e-06
        %v1895 = vmul.f32 %v1839, 1.1982584e-06
        %v1896 = vmul.f32 %v1840, 1.1982584e-06
        %v1897 = vadd.f32 %v1893, 0.00011853471
        %v1898 = vadd.f32 %v1894, 0.00011853471
        %v1899 = vadd.f32 %v1895, 0.00011853471
        %v1900 = vadd.f32 %v1896, 0.00011853471
        %v1901 = vmul.f32 %v1837, %v1897
        %v1902 = vmul.f32 %v1838, %v1898
        %v1903 = vmul.f32 %v1839, %v1899
        %v1904 = vmul.f32 %v1840, %v1900
        %v1905 = vadd.f32 %v1901, 0.0022684347
        %v1906 = vadd.f32 %v1902, 0.0022684347
        %v1907 = vadd.f32 %v1903, 0.0022684347
        %v1908 = vadd.f32 %v1904, 0.0022684347
        %v1909 = vmul.f32 %v1837, %v1905
        %v1910 = vmul.f32 %v1838, %v1906
        %v1911 = vmul.f32 %v1839, %v1907
        %v1912 = vmul.f32 %v1840, %v1908
        %v1913 = vadd.f32 %v1909, 0.004893525
        %v1914 = vadd.f32 %v1910, 0.004893525
        %v1915 = vadd.f32 %v1911, 0.004893525
        %v1916 = vadd.f32 %v1912, 0.004893525
        %v1917 = vrcp.pop %v1913
        %v1918 = vrcp.pop %v1914
        %v1919 = vrcp.pop %v1915
        %v1920 = vrcp.pop %v1916
        %v1921 = vmul.f32 %v1913, %v1917
        %v1922 = vmul.f32 %v1914, %v1918
        %v1923 = vmul.f32 %v1915, %v1919
        %v1924 = vmul.f32 %v1916, %v1920
        %v1925 = vsub.f32 2.0, %v1921
        %v1926 = vsub.f32 2.0, %v1922
        %v1927 = vsub.f32 2.0, %v1923
        %v1928 = vsub.f32 2.0, %v1924
        %v1929 = vmul.f32 %v1917, %v1925
        %v1930 = vmul.f32 %v1918, %v1926
        %v1931 = vmul.f32 %v1919, %v1927
        %v1932 = vmul.f32 %v1920, %v1928
        %v1933 = vmul.f32 %v1889, %v1929
        %v1934 = vmul.f32 %v1890, %v1930
        %v1935 = vmul.f32 %v1891, %v1931
        %v1936 = vmul.f32 %v1892, %v1932
        %v1937 = vmul.f32 %v1933, %v1424
        %v1938 = vmul.f32 %v1934, %v1428
        %v1939 = vmul.f32 %v1935, %v1424
        %v1940 = vmul.f32 %v1936, %v1428
        %v1941 = vadd.f32 %v764, %v1937
        %v1942 = vadd.f32 %v766, %v1938
        %v1943 = vadd.f32 %v770, %v1939
        %v1944 = vadd.f32 %v772, %v1940
        %v1945 = vmax.f32 %v776, -7.0
        %v1946 = vmax.f32 %v778, -7.0
        %v1947 = vmax.f32 %v782, -7.0
        %v1948 = vmax.f32 %v784, -7.0
        %v1949 = vlaneseq
        %v1950 = vshrl.u32 %v1949, 7
        %v1951 = vsub.s32 1, %v1950
        %v1952 = vrot.slane %v1405, %v1951
        %v1953 = vlaneseq
        %v1954 = vshrl.u32 %v1953, 7
        %v1955 = vsub.s32 5, %v1954
        %v1956 = vrot.slane %v1405, %v1955
        %v1959 = vlaneseq
        %v1960 = vshrl.u32 %v1959, 7
        %v1961 = vsub.s32 1, %v1960
        %v1962 = vrot.slane %v1952, %v1961
        %v1963 = vlaneseq
        %v1964 = vshrl.u32 %v1963, 7
        %v1965 = vsub.s32 1, %v1964
        %v1966 = vrot.slane %v1956, %v1965
        %v1967 = vsub.f32 %v1962, %v1941
        %v1968 = vsub.f32 %v1966, %v1942
        %v1969 = vsub.f32 %v1962, %v1943
        %v1970 = vsub.f32 %v1966, %v1944
        %v1971 = vsub.f32 0.0, %v1945
        %v1972 = vsub.f32 0.0, %v1946
        %v1973 = vsub.f32 0.0, %v1947
        %v1974 = vsub.f32 0.0, %v1948
        %v1975 = vmul.f32 %v1971, 1.442695
        %v1976 = vpow.pop %v1975
        %v1977 = vmul.f32 %v1972, 1.442695
        %v1978 = vpow.pop %v1977
        %v1979 = vmul.f32 %v1973, 1.442695
        %v1980 = vpow.pop %v1979
        %v1981 = vmul.f32 %v1974, 1.442695
        %v1982 = vpow.pop %v1981
        %v1983 = vadd.f32 %v1967, 0.003921569
        %v1984 = vadd.f32 %v1968, 0.003921569
        %v1985 = vadd.f32 %v1969, 0.003921569
        %v1986 = vadd.f32 %v1970, 0.003921569
        %v1987 = vmul.f32 %v1976, %v1983
        %v1988 = vmul.f32 %v1978, %v1984
        %v1989 = vmul.f32 %v1980, %v1985
        %v1990 = vmul.f32 %v1982, %v1986
        %v1991 = vsub.f32 %v1967, 0.003921569
        %v1992 = vsub.f32 %v1968, 0.003921569
        %v1993 = vsub.f32 %v1969, 0.003921569
        %v1994 = vsub.f32 %v1970, 0.003921569
        %v1995 = vmul.f32 %v1976, %v1991
        %v1996 = vmul.f32 %v1978, %v1992
        %v1997 = vmul.f32 %v1980, %v1993
        %v1998 = vmul.f32 %v1982, %v1994
        %v1999 = vsub.f32 0.0, %v1987
        %v2000 = vsub.f32 0.0, %v1988
        %v2001 = vsub.f32 0.0, %v1989
        %v2002 = vsub.f32 0.0, %v1990
        %v2003 = vmax.f32 %v1999, 0.0
        %v2004 = vmax.f32 %v2000, 0.0
        %v2005 = vmax.f32 %v2001, 0.0
        %v2006 = vmax.f32 %v2002, 0.0
        %vm2007 = vcmp.ne.f32.partialorder %v1999, %v1999
        %vm2008 = vcmp.ne.f32.partialorder %v2000, %v2000
        %vm2009 = vcmp.ne.f32.partialorder %v2001, %v2001
        %vm2010 = vcmp.ne.f32.partialorder %v2002, %v2002
        %v2011 = vadd.f32 %v1999, 0.0
        %v2012 = vadd.f32 %v2000, 0.0
        %v2013 = vadd.f32 %v2001, 0.0
        %v2014 = vadd.f32 %v2002, 0.0
        %v2015 = vand.u32 2147483647, %v1999
        %v2016 = vand.u32 2147483647, %v2000
        %v2017 = vand.u32 2147483647, %v2001
        %v2018 = vand.u32 2147483647, %v2002
        %v2019 = vsub.f32 0.0, %v2015
        %v2020 = vsub.f32 0.0, %v2016
        %v2021 = vsub.f32 0.0, %v2017
        %v2022 = vsub.f32 0.0, %v2018
        %v2023 = vmul.f32 %v2019, 1.442695
        %v2024 = vpow.pop %v2023
        %v2025 = vmul.f32 %v2020, 1.442695
        %v2026 = vpow.pop %v2025
        %v2027 = vmul.f32 %v2021, 1.442695
        %v2028 = vpow.pop %v2027
        %v2029 = vmul.f32 %v2022, 1.442695
        %v2030 = vpow.pop %v2029
        %v2031 = vadd.f32 %v2024, 1.0
        %v2032 = vlog2.pop %v2031
        %v2033 = vmul.f32 %v2032, 0.6931472
        %v2034 = vmul.f32 -0.5, %v2024
        %v2035 = vadd.f32 %v2034, 1.0
        %v2036 = vmul.f32 %v2035, %v2024
        %v2037 = vand.u32 2147483647, %v2024
        %vm2038 = vcmp.lt.f32.partialorder %v2037, 0.0004427343
        %v2039 = vsel %vm2038, %v2036, %v2033
        %v2040 = vadd.f32 %v2026, 1.0
        %v2041 = vlog2.pop %v2040
        %v2042 = vmul.f32 %v2041, 0.6931472
        %v2043 = vmul.f32 -0.5, %v2026
        %v2044 = vadd.f32 %v2043, 1.0
        %v2045 = vmul.f32 %v2044, %v2026
        %v2046 = vand.u32 2147483647, %v2026
        %vm2047 = vcmp.lt.f32.partialorder %v2046, 0.0004427343
        %v2048 = vsel %vm2047, %v2045, %v2042
        %v2049 = vadd.f32 %v2028, 1.0
        %v2050 = vlog2.pop %v2049
        %v2051 = vmul.f32 %v2050, 0.6931472
        %v2052 = vmul.f32 -0.5, %v2028
        %v2053 = vadd.f32 %v2052, 1.0
        %v2054 = vmul.f32 %v2053, %v2028
        %v2055 = vand.u32 2147483647, %v2028
        %vm2056 = vcmp.lt.f32.partialorder %v2055, 0.0004427343
        %v2057 = vsel %vm2056, %v2054, %v2051
        %v2058 = vadd.f32 %v2030, 1.0
        %v2059 = vlog2.pop %v2058
        %v2060 = vmul.f32 %v2059, 0.6931472
        %v2061 = vmul.f32 -0.5, %v2030
        %v2062 = vadd.f32 %v2061, 1.0
        %v2063 = vmul.f32 %v2062, %v2030
        %v2064 = vand.u32 2147483647, %v2030
        %vm2065 = vcmp.lt.f32.partialorder %v2064, 0.0004427343
        %v2066 = vsel %vm2065, %v2063, %v2060
        %v2067 = vadd.f32 %v2003, %v2039
        %v2068 = vadd.f32 %v2004, %v2048
        %v2069 = vadd.f32 %v2005, %v2057
        %v2070 = vadd.f32 %v2006, %v2066
        %v2071 = vsel %vm2007, %v2011, %v2067
        %v2072 = vsel %vm2008, %v2012, %v2068
        %v2073 = vsel %vm2009, %v2013, %v2069
        %v2074 = vsel %vm2010, %v2014, %v2070
        %v2075 = vmax.f32 %v1995, 0.0
        %v2076 = vmax.f32 %v1996, 0.0
        %v2077 = vmax.f32 %v1997, 0.0
        %v2078 = vmax.f32 %v1998, 0.0
        %vm2079 = vcmp.ne.f32.partialorder %v1995, %v1995
        %vm2080 = vcmp.ne.f32.partialorder %v1996, %v1996
        %vm2081 = vcmp.ne.f32.partialorder %v1997, %v1997
        %vm2082 = vcmp.ne.f32.partialorder %v1998, %v1998
        %v2083 = vadd.f32 %v1995, 0.0
        %v2084 = vadd.f32 %v1996, 0.0
        %v2085 = vadd.f32 %v1997, 0.0
        %v2086 = vadd.f32 %v1998, 0.0
        %v2087 = vand.u32 2147483647, %v1995
        %v2088 = vand.u32 2147483647, %v1996
        %v2089 = vand.u32 2147483647, %v1997
        %v2090 = vand.u32 2147483647, %v1998
        %v2091 = vsub.f32 0.0, %v2087
        %v2092 = vsub.f32 0.0, %v2088
        %v2093 = vsub.f32 0.0, %v2089
        %v2094 = vsub.f32 0.0, %v2090
        %v2095 = vmul.f32 %v2091, 1.442695
        %v2096 = vpow.pop %v2095
        %v2097 = vmul.f32 %v2092, 1.442695
        %v2098 = vpow.pop %v2097
        %v2099 = vmul.f32 %v2093, 1.442695
        %v2100 = vpow.pop %v2099
        %v2101 = vmul.f32 %v2094, 1.442695
        %v2102 = vpow.pop %v2101
        %v2103 = vadd.f32 %v2096, 1.0
        %v2104 = vlog2.pop %v2103
        %v2105 = vmul.f32 %v2104, 0.6931472
        %v2106 = vmul.f32 -0.5, %v2096
        %v2107 = vadd.f32 %v2106, 1.0
        %v2108 = vmul.f32 %v2107, %v2096
        %v2109 = vand.u32 2147483647, %v2096
        %vm2110 = vcmp.lt.f32.partialorder %v2109, 0.0004427343
        %v2111 = vsel %vm2110, %v2108, %v2105
        %v2112 = vadd.f32 %v2098, 1.0
        %v2113 = vlog2.pop %v2112
        %v2114 = vmul.f32 %v2113, 0.6931472
        %v2115 = vmul.f32 -0.5, %v2098
        %v2116 = vadd.f32 %v2115, 1.0
        %v2117 = vmul.f32 %v2116, %v2098
        %v2118 = vand.u32 2147483647, %v2098
        %vm2119 = vcmp.lt.f32.partialorder %v2118, 0.0004427343
        %v2120 = vsel %vm2119, %v2117, %v2114
        %v2121 = vadd.f32 %v2100, 1.0
        %v2122 = vlog2.pop %v2121
        %v2123 = vmul.f32 %v2122, 0.6931472
        %v2124 = vmul.f32 -0.5, %v2100
        %v2125 = vadd.f32 %v2124, 1.0
        %v2126 = vmul.f32 %v2125, %v2100
        %v2127 = vand.u32 2147483647, %v2100
        %vm2128 = vcmp.lt.f32.partialorder %v2127, 0.0004427343
        %v2129 = vsel %vm2128, %v2126, %v2123
        %v2130 = vadd.f32 %v2102, 1.0
        %v2131 = vlog2.pop %v2130
        %v2132 = vmul.f32 %v2131, 0.6931472
        %v2133 = vmul.f32 -0.5, %v2102
        %v2134 = vadd.f32 %v2133, 1.0
        %v2135 = vmul.f32 %v2134, %v2102
        %v2136 = vand.u32 2147483647, %v2102
        %vm2137 = vcmp.lt.f32.partialorder %v2136, 0.0004427343
        %v2138 = vsel %vm2137, %v2135, %v2132
        %v2139 = vadd.f32 %v2075, %v2111
        %v2140 = vadd.f32 %v2076, %v2120
        %v2141 = vadd.f32 %v2077, %v2129
        %v2142 = vadd.f32 %v2078, %v2138
        %v2143 = vsel %vm2079, %v2083, %v2139
        %v2144 = vsel %vm2080, %v2084, %v2140
        %v2145 = vsel %vm2081, %v2085, %v2141
        %v2146 = vsel %vm2082, %v2086, %v2142
        %v2147 = vsub.f32 0.0, %v2071
        %v2148 = vsub.f32 0.0, %v2072
        %v2149 = vsub.f32 0.0, %v2073
        %v2150 = vsub.f32 0.0, %v2074
        %v2151 = vsub.f32 0.0, %v2143
        %v2152 = vsub.f32 0.0, %v2144
        %v2153 = vsub.f32 0.0, %v2145
        %v2154 = vsub.f32 0.0, %v2146
        %v2155 = vsub.f32 %v1995, %v2143
        %v2156 = vsub.f32 %v1996, %v2144
        %v2157 = vsub.f32 %v1997, %v2145
        %v2158 = vsub.f32 %v1998, %v2146
        %v2159 = vsub.f32 %v2155, %v2147
        %v2160 = vsub.f32 %v2156, %v2148
        %v2161 = vsub.f32 %v2157, %v2149
        %v2162 = vsub.f32 %v2158, %v2150
        %v2163 = vmin.f32 %v2159, 0.0
        %v2164 = vmin.f32 %v2160, 0.0
        %v2165 = vmin.f32 %v2161, 0.0
        %v2166 = vmin.f32 %v2162, 0.0
        %v2167 = vmul.f32 %v2163, 1.442695
        %v2168 = vpow.pop %v2167
        %v2169 = vmul.f32 %v2164, 1.442695
        %v2170 = vpow.pop %v2169
        %v2171 = vmul.f32 %v2165, 1.442695
        %v2172 = vpow.pop %v2171
        %v2173 = vmul.f32 %v2166, 1.442695
        %v2174 = vpow.pop %v2173
        %v2175 = vsub.f32 0.0, %v2168
        %v2176 = vsub.f32 0.0, %v2170
        %v2177 = vsub.f32 0.0, %v2172
        %v2178 = vsub.f32 0.0, %v2174
        %v2179 = vadd.f32 %v2175, 1.0
        %v2180 = vlog2.pop %v2179
        %v2181 = vmul.f32 %v2180, 0.6931472
        %v2182 = vmul.f32 -0.5, %v2175
        %v2183 = vadd.f32 %v2182, 1.0
        %v2184 = vmul.f32 %v2183, %v2175
        %v2185 = vand.u32 2147483647, %v2175
        %vm2186 = vcmp.lt.f32.partialorder %v2185, 0.0004427343
        %v2187 = vsel %vm2186, %v2184, %v2181
        %v2188 = vadd.f32 %v2176, 1.0
        %v2189 = vlog2.pop %v2188
        %v2190 = vmul.f32 %v2189, 0.6931472
        %v2191 = vmul.f32 -0.5, %v2176
        %v2192 = vadd.f32 %v2191, 1.0
        %v2193 = vmul.f32 %v2192, %v2176
        %v2194 = vand.u32 2147483647, %v2176
        %vm2195 = vcmp.lt.f32.partialorder %v2194, 0.0004427343
        %v2196 = vsel %vm2195, %v2193, %v2190
        %v2197 = vadd.f32 %v2177, 1.0
        %v2198 = vlog2.pop %v2197
        %v2199 = vmul.f32 %v2198, 0.6931472
        %v2200 = vmul.f32 -0.5, %v2177
        %v2201 = vadd.f32 %v2200, 1.0
        %v2202 = vmul.f32 %v2201, %v2177
        %v2203 = vand.u32 2147483647, %v2177
        %vm2204 = vcmp.lt.f32.partialorder %v2203, 0.0004427343
        %v2205 = vsel %vm2204, %v2202, %v2199
        %v2206 = vadd.f32 %v2178, 1.0
        %v2207 = vlog2.pop %v2206
        %v2208 = vmul.f32 %v2207, 0.6931472
        %v2209 = vmul.f32 -0.5, %v2178
        %v2210 = vadd.f32 %v2209, 1.0
        %v2211 = vmul.f32 %v2210, %v2178
        %v2212 = vand.u32 2147483647, %v2178
        %vm2213 = vcmp.lt.f32.partialorder %v2212, 0.0004427343
        %v2214 = vsel %vm2213, %v2211, %v2208
        %v2215 = vadd.f32 %v2147, %v2187
        %v2216 = vadd.f32 %v2148, %v2196
        %v2217 = vadd.f32 %v2149, %v2205
        %v2218 = vadd.f32 %v2150, %v2214
        %v2219 = vmul.f32 %v1976, %v1967
        %v2220 = vmul.f32 %v1978, %v1968
        %v2221 = vmul.f32 %v1980, %v1969
        %v2222 = vmul.f32 %v1982, %v1970
        %v2223 = vsub.f32 %v2219, %v1945
        %v2224 = vsub.f32 %v2220, %v1946
        %v2225 = vsub.f32 %v2221, %v1947
        %v2226 = vsub.f32 %v2222, %v1948
        %v2227 = vmax.f32 %v2219, 0.0
        %v2228 = vmax.f32 %v2220, 0.0
        %v2229 = vmax.f32 %v2221, 0.0
        %v2230 = vmax.f32 %v2222, 0.0
        %vm2231 = vcmp.ne.f32.partialorder %v2219, %v2219
        %vm2232 = vcmp.ne.f32.partialorder %v2220, %v2220
        %vm2233 = vcmp.ne.f32.partialorder %v2221, %v2221
        %vm2234 = vcmp.ne.f32.partialorder %v2222, %v2222
        %v2235 = vadd.f32 %v2219, 0.0
        %v2236 = vadd.f32 %v2220, 0.0
        %v2237 = vadd.f32 %v2221, 0.0
        %v2238 = vadd.f32 %v2222, 0.0
        %v2239 = vand.u32 2147483647, %v2219
        %v2240 = vand.u32 2147483647, %v2220
        %v2241 = vand.u32 2147483647, %v2221
        %v2242 = vand.u32 2147483647, %v2222
        %v2243 = vsub.f32 0.0, %v2239
        %v2244 = vsub.f32 0.0, %v2240
        %v2245 = vsub.f32 0.0, %v2241
        %v2246 = vsub.f32 0.0, %v2242
        %v2247 = vmul.f32 %v2243, 1.442695
        %v2248 = vpow.pop %v2247
        %v2249 = vmul.f32 %v2244, 1.442695
        %v2250 = vpow.pop %v2249
        %v2251 = vmul.f32 %v2245, 1.442695
        %v2252 = vpow.pop %v2251
        %v2253 = vmul.f32 %v2246, 1.442695
        %v2254 = vpow.pop %v2253
        %v2255 = vadd.f32 %v2248, 1.0
        %v2256 = vlog2.pop %v2255
        %v2257 = vmul.f32 %v2256, 0.6931472
        %v2258 = vmul.f32 -0.5, %v2248
        %v2259 = vadd.f32 %v2258, 1.0
        %v2260 = vmul.f32 %v2259, %v2248
        %v2261 = vand.u32 2147483647, %v2248
        %vm2262 = vcmp.lt.f32.partialorder %v2261, 0.0004427343
        %v2263 = vsel %vm2262, %v2260, %v2257
        %v2264 = vadd.f32 %v2250, 1.0
        %v2265 = vlog2.pop %v2264
        %v2266 = vmul.f32 %v2265, 0.6931472
        %v2267 = vmul.f32 -0.5, %v2250
        %v2268 = vadd.f32 %v2267, 1.0
        %v2269 = vmul.f32 %v2268, %v2250
        %v2270 = vand.u32 2147483647, %v2250
        %vm2271 = vcmp.lt.f32.partialorder %v2270, 0.0004427343
        %v2272 = vsel %vm2271, %v2269, %v2266
        %v2273 = vadd.f32 %v2252, 1.0
        %v2274 = vlog2.pop %v2273
        %v2275 = vmul.f32 %v2274, 0.6931472
        %v2276 = vmul.f32 -0.5, %v2252
        %v2277 = vadd.f32 %v2276, 1.0
        %v2278 = vmul.f32 %v2277, %v2252
        %v2279 = vand.u32 2147483647, %v2252
        %vm2280 = vcmp.lt.f32.partialorder %v2279, 0.0004427343
        %v2281 = vsel %vm2280, %v2278, %v2275
        %v2282 = vadd.f32 %v2254, 1.0
        %v2283 = vlog2.pop %v2282
        %v2284 = vmul.f32 %v2283, 0.6931472
        %v2285 = vmul.f32 -0.5, %v2254
        %v2286 = vadd.f32 %v2285, 1.0
        %v2287 = vmul.f32 %v2286, %v2254
        %v2288 = vand.u32 2147483647, %v2254
        %vm2289 = vcmp.lt.f32.partialorder %v2288, 0.0004427343
        %v2290 = vsel %vm2289, %v2287, %v2284
        %v2291 = vadd.f32 %v2227, %v2263
        %v2292 = vadd.f32 %v2228, %v2272
        %v2293 = vadd.f32 %v2229, %v2281
        %v2294 = vadd.f32 %v2230, %v2290
        %v2295 = vsel %vm2231, %v2235, %v2291
        %v2296 = vsel %vm2232, %v2236, %v2292
        %v2297 = vsel %vm2233, %v2237, %v2293
        %v2298 = vsel %vm2234, %v2238, %v2294
        %v2299 = vmul.f32 %v2295, 2.0
        %v2300 = vmul.f32 %v2296, 2.0
        %v2301 = vmul.f32 %v2297, 2.0
        %v2302 = vmul.f32 %v2298, 2.0
        %v2303 = vsub.f32 %v2223, %v2299
        %v2304 = vsub.f32 %v2224, %v2300
        %v2305 = vsub.f32 %v2225, %v2301
        %v2306 = vsub.f32 %v2226, %v2302
        %vm2307 = vcmp.gt.f32.partialorder %v2215, -11.512925
        %vm2308 = vcmp.gt.f32.partialorder %v2216, -11.512925
        %vm2309 = vcmp.gt.f32.partialorder %v2217, -11.512925
        %vm2310 = vcmp.gt.f32.partialorder %v2218, -11.512925
        %v2311 = vsub.f32 %v2303, 4.8481164
        %v2312 = vsub.f32 %v2304, 4.8481164
        %v2313 = vsub.f32 %v2305, 4.8481164
        %v2314 = vsub.f32 %v2306, 4.8481164
        %v2315 = vsel %vm2307, %v2215, %v2311
        %v2316 = vsel %vm2308, %v2216, %v2312
        %v2317 = vsel %vm2309, %v2217, %v2313
        %v2318 = vsel %vm2310, %v2218, %v2314
        %v2319 = vlaneseq
        %v2320 = vshrl.u32 %v2319, 7
        %v2321 = vsub.s32 1, %v2320
        %v2322 = vrot.slane %v1782, %v2321
        %v2323 = vlaneseq
        %v2324 = vshrl.u32 %v2323, 7
        %v2325 = vsub.s32 5, %v2324
        %v2326 = vrot.slane %v1782, %v2325
        %v2327 = vlaneseq
        %v2328 = vshrl.u32 %v2327, 7
        %v2329 = vsub.s32 1, %v2328
        %v2330 = vrot.slane %v2322, %v2329
        %v2331 = vlaneseq
        %v2332 = vshrl.u32 %v2331, 7
        %v2333 = vsub.s32 1, %v2332
        %v2334 = vrot.slane %v2326, %v2333
        %vm2335 = vcmp.eq.s32.totalorder %v2330, 1
        %vm2336 = vcmp.eq.s32.totalorder %v2334, 1
        %v2337 = vsel %vm2335, %v2151, %v2315
        %v2338 = vsel %vm2336, %v2152, %v2316
        %v2339 = vsel %vm2335, %v2153, %v2317
        %v2340 = vsel %vm2336, %v2154, %v2318
        %v2341 = vlaneseq
        %v2342 = vshrl.u32 %v2341, 7
        %v2343 = vsub.s32 1, %v2342
        %v2344 = vrot.slane %v1806, %v2343
        %v2345 = vlaneseq
        %v2346 = vshrl.u32 %v2345, 7
        %v2347 = vsub.s32 5, %v2346
        %v2348 = vrot.slane %v1806, %v2347
        %v2349 = vlaneseq
        %v2350 = vshrl.u32 %v2349, 7
        %v2351 = vsub.s32 1, %v2350
        %v2352 = vrot.slane %v2344, %v2351
        %v2353 = vlaneseq
        %v2354 = vshrl.u32 %v2353, 7
        %v2355 = vsub.s32 1, %v2354
        %v2356 = vrot.slane %v2348, %v2355
        %vm2357 = vcmp.eq.s32.totalorder %v2352, 1
        %vm2358 = vcmp.eq.s32.totalorder %v2356, 1
        %v2359 = vsel %vm2357, %v2147, %v2337
        %v2360 = vsel %vm2358, %v2148, %v2338
        %v2361 = vsel %vm2357, %v2149, %v2339
        %v2362 = vsel %vm2358, %v2150, %v2340
        %v2363 = vadd.f32 %v1825, %v2359
        %v2364 = vadd.f32 %v1826, %v2360
        %v2365 = vadd.f32 %v1827, %v2361
        %v2366 = vadd.f32 %v1828, %v2362
        %v2367 = vmax.f32 %v788, -7.905311
        %v2368 = vmax.f32 %v790, -7.905311
        %v2369 = vmax.f32 %v794, -7.905311
        %v2370 = vmax.f32 %v796, -7.905311
        %v2371 = vmin.f32 %v2367, 7.905311
        %v2372 = vmin.f32 %v2368, 7.905311
        %v2373 = vmin.f32 %v2369, 7.905311
        %v2374 = vmin.f32 %v2370, 7.905311
        %v2375 = vmul.f32 %v2371, %v2371
        %v2376 = vmul.f32 %v2372, %v2372
        %v2377 = vmul.f32 %v2373, %v2373
        %v2378 = vmul.f32 %v2374, %v2374
        %v2379 = vmul.f32 %v2375, -2.7607684e-16
        %v2380 = vmul.f32 %v2376, -2.7607684e-16
        %v2381 = vmul.f32 %v2377, -2.7607684e-16
        %v2382 = vmul.f32 %v2378, -2.7607684e-16
        %v2383 = vadd.f32 %v2379, 2.000188e-13
        %v2384 = vadd.f32 %v2380, 2.000188e-13
        %v2385 = vadd.f32 %v2381, 2.000188e-13
        %v2386 = vadd.f32 %v2382, 2.000188e-13
        %v2387 = vmul.f32 %v2375, %v2383
        %v2388 = vmul.f32 %v2376, %v2384
        %v2389 = vmul.f32 %v2377, %v2385
        %v2390 = vmul.f32 %v2378, %v2386
        %v2391 = vadd.f32 %v2387, -8.604672e-11
        %v2392 = vadd.f32 %v2388, -8.604672e-11
        %v2393 = vadd.f32 %v2389, -8.604672e-11
        %v2394 = vadd.f32 %v2390, -8.604672e-11
        %v2395 = vmul.f32 %v2375, %v2391
        %v2396 = vmul.f32 %v2376, %v2392
        %v2397 = vmul.f32 %v2377, %v2393
        %v2398 = vmul.f32 %v2378, %v2394
        %v2399 = vadd.f32 %v2395, 5.1222973e-08
        %v2400 = vadd.f32 %v2396, 5.1222973e-08
        %v2401 = vadd.f32 %v2397, 5.1222973e-08
        %v2402 = vadd.f32 %v2398, 5.1222973e-08
        %v2403 = vmul.f32 %v2375, %v2399
        %v2404 = vmul.f32 %v2376, %v2400
        %v2405 = vmul.f32 %v2377, %v2401
        %v2406 = vmul.f32 %v2378, %v2402
        %v2407 = vadd.f32 %v2403, 1.48572235e-05
        %v2408 = vadd.f32 %v2404, 1.48572235e-05
        %v2409 = vadd.f32 %v2405, 1.48572235e-05
        %v2410 = vadd.f32 %v2406, 1.48572235e-05
        %v2411 = vmul.f32 %v2375, %v2407
        %v2412 = vmul.f32 %v2376, %v2408
        %v2413 = vmul.f32 %v2377, %v2409
        %v2414 = vmul.f32 %v2378, %v2410
        %v2415 = vadd.f32 %v2411, 0.00063726195
        %v2416 = vadd.f32 %v2412, 0.00063726195
        %v2417 = vadd.f32 %v2413, 0.00063726195
        %v2418 = vadd.f32 %v2414, 0.00063726195
        %v2419 = vmul.f32 %v2375, %v2415
        %v2420 = vmul.f32 %v2376, %v2416
        %v2421 = vmul.f32 %v2377, %v2417
        %v2422 = vmul.f32 %v2378, %v2418
        %v2423 = vadd.f32 %v2419, 0.0048935246
        %v2424 = vadd.f32 %v2420, 0.0048935246
        %v2425 = vadd.f32 %v2421, 0.0048935246
        %v2426 = vadd.f32 %v2422, 0.0048935246
        %v2427 = vmul.f32 %v2371, %v2423
        %v2428 = vmul.f32 %v2372, %v2424
        %v2429 = vmul.f32 %v2373, %v2425
        %v2430 = vmul.f32 %v2374, %v2426
        %v2431 = vmul.f32 %v2375, 1.1982584e-06
        %v2432 = vmul.f32 %v2376, 1.1982584e-06
        %v2433 = vmul.f32 %v2377, 1.1982584e-06
        %v2434 = vmul.f32 %v2378, 1.1982584e-06
        %v2435 = vadd.f32 %v2431, 0.00011853471
        %v2436 = vadd.f32 %v2432, 0.00011853471
        %v2437 = vadd.f32 %v2433, 0.00011853471
        %v2438 = vadd.f32 %v2434, 0.00011853471
        %v2439 = vmul.f32 %v2375, %v2435
        %v2440 = vmul.f32 %v2376, %v2436
        %v2441 = vmul.f32 %v2377, %v2437
        %v2442 = vmul.f32 %v2378, %v2438
        %v2443 = vadd.f32 %v2439, 0.0022684347
        %v2444 = vadd.f32 %v2440, 0.0022684347
        %v2445 = vadd.f32 %v2441, 0.0022684347
        %v2446 = vadd.f32 %v2442, 0.0022684347
        %v2447 = vmul.f32 %v2375, %v2443
        %v2448 = vmul.f32 %v2376, %v2444
        %v2449 = vmul.f32 %v2377, %v2445
        %v2450 = vmul.f32 %v2378, %v2446
        %v2451 = vadd.f32 %v2447, 0.004893525
        %v2452 = vadd.f32 %v2448, 0.004893525
        %v2453 = vadd.f32 %v2449, 0.004893525
        %v2454 = vadd.f32 %v2450, 0.004893525
        %v2455 = vrcp.pop %v2451
        %v2456 = vrcp.pop %v2452
        %v2457 = vrcp.pop %v2453
        %v2458 = vrcp.pop %v2454
        %v2459 = vmul.f32 %v2451, %v2455
        %v2460 = vmul.f32 %v2452, %v2456
        %v2461 = vmul.f32 %v2453, %v2457
        %v2462 = vmul.f32 %v2454, %v2458
        %v2463 = vsub.f32 2.0, %v2459
        %v2464 = vsub.f32 2.0, %v2460
        %v2465 = vsub.f32 2.0, %v2461
        %v2466 = vsub.f32 2.0, %v2462
        %v2467 = vmul.f32 %v2455, %v2463
        %v2468 = vmul.f32 %v2456, %v2464
        %v2469 = vmul.f32 %v2457, %v2465
        %v2470 = vmul.f32 %v2458, %v2466
        %v2471 = vmul.f32 %v2427, %v2467
        %v2472 = vmul.f32 %v2428, %v2468
        %v2473 = vmul.f32 %v2429, %v2469
        %v2474 = vmul.f32 %v2430, %v2470
        %v2475 = vmax.f32 %v824, -7.905311
        %v2476 = vmax.f32 %v826, -7.905311
        %v2477 = vmax.f32 %v830, -7.905311
        %v2478 = vmax.f32 %v832, -7.905311
        %v2479 = vmin.f32 %v2475, 7.905311
        %v2480 = vmin.f32 %v2476, 7.905311
        %v2481 = vmin.f32 %v2477, 7.905311
        %v2482 = vmin.f32 %v2478, 7.905311
        %v2483 = vmul.f32 %v2479, %v2479
        %v2484 = vmul.f32 %v2480, %v2480
        %v2485 = vmul.f32 %v2481, %v2481
        %v2486 = vmul.f32 %v2482, %v2482
        %v2487 = vmul.f32 %v2483, -2.7607684e-16
        %v2488 = vmul.f32 %v2484, -2.7607684e-16
        %v2489 = vmul.f32 %v2485, -2.7607684e-16
        %v2490 = vmul.f32 %v2486, -2.7607684e-16
        %v2491 = vadd.f32 %v2487, 2.000188e-13
        %v2492 = vadd.f32 %v2488, 2.000188e-13
        %v2493 = vadd.f32 %v2489, 2.000188e-13
        %v2494 = vadd.f32 %v2490, 2.000188e-13
        %v2495 = vmul.f32 %v2483, %v2491
        %v2496 = vmul.f32 %v2484, %v2492
        %v2497 = vmul.f32 %v2485, %v2493
        %v2498 = vmul.f32 %v2486, %v2494
        %v2499 = vadd.f32 %v2495, -8.604672e-11
        %v2500 = vadd.f32 %v2496, -8.604672e-11
        %v2501 = vadd.f32 %v2497, -8.604672e-11
        %v2502 = vadd.f32 %v2498, -8.604672e-11
        %v2503 = vmul.f32 %v2483, %v2499
        %v2504 = vmul.f32 %v2484, %v2500
        %v2505 = vmul.f32 %v2485, %v2501
        %v2506 = vmul.f32 %v2486, %v2502
        %v2507 = vadd.f32 %v2503, 5.1222973e-08
        %v2508 = vadd.f32 %v2504, 5.1222973e-08
        %v2509 = vadd.f32 %v2505, 5.1222973e-08
        %v2510 = vadd.f32 %v2506, 5.1222973e-08
        %v2511 = vmul.f32 %v2483, %v2507
        %v2512 = vmul.f32 %v2484, %v2508
        %v2513 = vmul.f32 %v2485, %v2509
        %v2514 = vmul.f32 %v2486, %v2510
        %v2515 = vadd.f32 %v2511, 1.48572235e-05
        %v2516 = vadd.f32 %v2512, 1.48572235e-05
        %v2517 = vadd.f32 %v2513, 1.48572235e-05
        %v2518 = vadd.f32 %v2514, 1.48572235e-05
        %v2519 = vmul.f32 %v2483, %v2515
        %v2520 = vmul.f32 %v2484, %v2516
        %v2521 = vmul.f32 %v2485, %v2517
        %v2522 = vmul.f32 %v2486, %v2518
        %v2523 = vadd.f32 %v2519, 0.00063726195
        %v2524 = vadd.f32 %v2520, 0.00063726195
        %v2525 = vadd.f32 %v2521, 0.00063726195
        %v2526 = vadd.f32 %v2522, 0.00063726195
        %v2527 = vmul.f32 %v2483, %v2523
        %v2528 = vmul.f32 %v2484, %v2524
        %v2529 = vmul.f32 %v2485, %v2525
        %v2530 = vmul.f32 %v2486, %v2526
        %v2531 = vadd.f32 %v2527, 0.0048935246
        %v2532 = vadd.f32 %v2528, 0.0048935246
        %v2533 = vadd.f32 %v2529, 0.0048935246
        %v2534 = vadd.f32 %v2530, 0.0048935246
        %v2535 = vmul.f32 %v2479, %v2531
        %v2536 = vmul.f32 %v2480, %v2532
        %v2537 = vmul.f32 %v2481, %v2533
        %v2538 = vmul.f32 %v2482, %v2534
        %v2539 = vmul.f32 %v2483, 1.1982584e-06
        %v2540 = vmul.f32 %v2484, 1.1982584e-06
        %v2541 = vmul.f32 %v2485, 1.1982584e-06
        %v2542 = vmul.f32 %v2486, 1.1982584e-06
        %v2543 = vadd.f32 %v2539, 0.00011853471
        %v2544 = vadd.f32 %v2540, 0.00011853471
        %v2545 = vadd.f32 %v2541, 0.00011853471
        %v2546 = vadd.f32 %v2542, 0.00011853471
        %v2547 = vmul.f32 %v2483, %v2543
        %v2548 = vmul.f32 %v2484, %v2544
        %v2549 = vmul.f32 %v2485, %v2545
        %v2550 = vmul.f32 %v2486, %v2546
        %v2551 = vadd.f32 %v2547, 0.0022684347
        %v2552 = vadd.f32 %v2548, 0.0022684347
        %v2553 = vadd.f32 %v2549, 0.0022684347
        %v2554 = vadd.f32 %v2550, 0.0022684347
        %v2555 = vmul.f32 %v2483, %v2551
        %v2556 = vmul.f32 %v2484, %v2552
        %v2557 = vmul.f32 %v2485, %v2553
        %v2558 = vmul.f32 %v2486, %v2554
        %v2559 = vadd.f32 %v2555, 0.004893525
        %v2560 = vadd.f32 %v2556, 0.004893525
        %v2561 = vadd.f32 %v2557, 0.004893525
        %v2562 = vadd.f32 %v2558, 0.004893525
        %v2563 = vrcp.pop %v2559
        %v2564 = vrcp.pop %v2560
        %v2565 = vrcp.pop %v2561
        %v2566 = vrcp.pop %v2562
        %v2567 = vmul.f32 %v2559, %v2563
        %v2568 = vmul.f32 %v2560, %v2564
        %v2569 = vmul.f32 %v2561, %v2565
        %v2570 = vmul.f32 %v2562, %v2566
        %v2571 = vsub.f32 2.0, %v2567
        %v2572 = vsub.f32 2.0, %v2568
        %v2573 = vsub.f32 2.0, %v2569
        %v2574 = vsub.f32 2.0, %v2570
        %v2575 = vmul.f32 %v2563, %v2571
        %v2576 = vmul.f32 %v2564, %v2572
        %v2577 = vmul.f32 %v2565, %v2573
        %v2578 = vmul.f32 %v2566, %v2574
        %v2579 = vmul.f32 %v2535, %v2575
        %v2580 = vmul.f32 %v2536, %v2576
        %v2581 = vmul.f32 %v2537, %v2577
        %v2582 = vmul.f32 %v2538, %v2578
        %v2583 = vmul.f32 %v2471, %v1424
        %v2584 = vmul.f32 %v2472, %v1428
        %v2585 = vmul.f32 %v2473, %v1424
        %v2586 = vmul.f32 %v2474, %v1428
        %v2587 = vadd.f32 %v800, %v2583
        %v2588 = vadd.f32 %v802, %v2584
        %v2589 = vadd.f32 %v806, %v2585
        %v2590 = vadd.f32 %v808, %v2586
        %v2591 = vmul.f32 %v2579, %v1962
        %v2592 = vmul.f32 %v2580, %v1966
        %v2593 = vmul.f32 %v2581, %v1962
        %v2594 = vmul.f32 %v2582, %v1966
        %v2595 = vadd.f32 %v2587, %v2591
        %v2596 = vadd.f32 %v2588, %v2592
        %v2597 = vadd.f32 %v2589, %v2593
        %v2598 = vadd.f32 %v2590, %v2594
        %v2599 = vmax.f32 %v812, -7.0
        %v2600 = vmax.f32 %v814, -7.0
        %v2601 = vmax.f32 %v818, -7.0
        %v2602 = vmax.f32 %v820, -7.0
        %v2603 = vlaneseq
        %v2604 = vshrl.u32 %v2603, 7
        %v2605 = vsub.s32 2, %v2604
        %v2606 = vrot.slane %v1405, %v2605
        %v2607 = vlaneseq
        %v2608 = vshrl.u32 %v2607, 7
        %v2609 = vsub.s32 6, %v2608
        %v2610 = vrot.slane %v1405, %v2609
        %v2613 = vlaneseq
        %v2614 = vshrl.u32 %v2613, 7
        %v2615 = vsub.s32 2, %v2614
        %v2616 = vrot.slane %v2606, %v2615
        %v2617 = vlaneseq
        %v2618 = vshrl.u32 %v2617, 7
        %v2619 = vsub.s32 2, %v2618
        %v2620 = vrot.slane %v2610, %v2619
        %v2621 = vsub.f32 %v2616, %v2595
        %v2622 = vsub.f32 %v2620, %v2596
        %v2623 = vsub.f32 %v2616, %v2597
        %v2624 = vsub.f32 %v2620, %v2598
        %v2625 = vsub.f32 0.0, %v2599
        %v2626 = vsub.f32 0.0, %v2600
        %v2627 = vsub.f32 0.0, %v2601
        %v2628 = vsub.f32 0.0, %v2602
        %v2629 = vmul.f32 %v2625, 1.442695
        %v2630 = vpow.pop %v2629
        %v2631 = vmul.f32 %v2626, 1.442695
        %v2632 = vpow.pop %v2631
        %v2633 = vmul.f32 %v2627, 1.442695
        %v2634 = vpow.pop %v2633
        %v2635 = vmul.f32 %v2628, 1.442695
        %v2636 = vpow.pop %v2635
        %v2637 = vadd.f32 %v2621, 0.003921569
        %v2638 = vadd.f32 %v2622, 0.003921569
        %v2639 = vadd.f32 %v2623, 0.003921569
        %v2640 = vadd.f32 %v2624, 0.003921569
        %v2641 = vmul.f32 %v2630, %v2637
        %v2642 = vmul.f32 %v2632, %v2638
        %v2643 = vmul.f32 %v2634, %v2639
        %v2644 = vmul.f32 %v2636, %v2640
        %v2645 = vsub.f32 %v2621, 0.003921569
        %v2646 = vsub.f32 %v2622, 0.003921569
        %v2647 = vsub.f32 %v2623, 0.003921569
        %v2648 = vsub.f32 %v2624, 0.003921569
        %v2649 = vmul.f32 %v2630, %v2645
        %v2650 = vmul.f32 %v2632, %v2646
        %v2651 = vmul.f32 %v2634, %v2647
        %v2652 = vmul.f32 %v2636, %v2648
        %v2653 = vsub.f32 0.0, %v2641
        %v2654 = vsub.f32 0.0, %v2642
        %v2655 = vsub.f32 0.0, %v2643
        %v2656 = vsub.f32 0.0, %v2644
        %v2657 = vmax.f32 %v2653, 0.0
        %v2658 = vmax.f32 %v2654, 0.0
        %v2659 = vmax.f32 %v2655, 0.0
        %v2660 = vmax.f32 %v2656, 0.0
        %vm2661 = vcmp.ne.f32.partialorder %v2653, %v2653
        %vm2662 = vcmp.ne.f32.partialorder %v2654, %v2654
        %vm2663 = vcmp.ne.f32.partialorder %v2655, %v2655
        %vm2664 = vcmp.ne.f32.partialorder %v2656, %v2656
        %v2665 = vadd.f32 %v2653, 0.0
        %v2666 = vadd.f32 %v2654, 0.0
        %v2667 = vadd.f32 %v2655, 0.0
        %v2668 = vadd.f32 %v2656, 0.0
        %v2669 = vand.u32 2147483647, %v2653
        %v2670 = vand.u32 2147483647, %v2654
        %v2671 = vand.u32 2147483647, %v2655
        %v2672 = vand.u32 2147483647, %v2656
        %v2673 = vsub.f32 0.0, %v2669
        %v2674 = vsub.f32 0.0, %v2670
        %v2675 = vsub.f32 0.0, %v2671
        %v2676 = vsub.f32 0.0, %v2672
        %v2677 = vmul.f32 %v2673, 1.442695
        %v2678 = vpow.pop %v2677
        %v2679 = vmul.f32 %v2674, 1.442695
        %v2680 = vpow.pop %v2679
        %v2681 = vmul.f32 %v2675, 1.442695
        %v2682 = vpow.pop %v2681
        %v2683 = vmul.f32 %v2676, 1.442695
        %v2684 = vpow.pop %v2683
        %v2685 = vadd.f32 %v2678, 1.0
        %v2686 = vlog2.pop %v2685
        %v2687 = vmul.f32 %v2686, 0.6931472
        %v2688 = vmul.f32 -0.5, %v2678
        %v2689 = vadd.f32 %v2688, 1.0
        %v2690 = vmul.f32 %v2689, %v2678
        %v2691 = vand.u32 2147483647, %v2678
        %vm2692 = vcmp.lt.f32.partialorder %v2691, 0.0004427343
        %v2693 = vsel %vm2692, %v2690, %v2687
        %v2694 = vadd.f32 %v2680, 1.0
        %v2695 = vlog2.pop %v2694
        %v2696 = vmul.f32 %v2695, 0.6931472
        %v2697 = vmul.f32 -0.5, %v2680
        %v2698 = vadd.f32 %v2697, 1.0
        %v2699 = vmul.f32 %v2698, %v2680
        %v2700 = vand.u32 2147483647, %v2680
        %vm2701 = vcmp.lt.f32.partialorder %v2700, 0.0004427343
        %v2702 = vsel %vm2701, %v2699, %v2696
        %v2703 = vadd.f32 %v2682, 1.0
        %v2704 = vlog2.pop %v2703
        %v2705 = vmul.f32 %v2704, 0.6931472
        %v2706 = vmul.f32 -0.5, %v2682
        %v2707 = vadd.f32 %v2706, 1.0
        %v2708 = vmul.f32 %v2707, %v2682
        %v2709 = vand.u32 2147483647, %v2682
        %vm2710 = vcmp.lt.f32.partialorder %v2709, 0.0004427343
        %v2711 = vsel %vm2710, %v2708, %v2705
        %v2712 = vadd.f32 %v2684, 1.0
        %v2713 = vlog2.pop %v2712
        %v2714 = vmul.f32 %v2713, 0.6931472
        %v2715 = vmul.f32 -0.5, %v2684
        %v2716 = vadd.f32 %v2715, 1.0
        %v2717 = vmul.f32 %v2716, %v2684
        %v2718 = vand.u32 2147483647, %v2684
        %vm2719 = vcmp.lt.f32.partialorder %v2718, 0.0004427343
        %v2720 = vsel %vm2719, %v2717, %v2714
        %v2721 = vadd.f32 %v2657, %v2693
        %v2722 = vadd.f32 %v2658, %v2702
        %v2723 = vadd.f32 %v2659, %v2711
        %v2724 = vadd.f32 %v2660, %v2720
        %v2725 = vsel %vm2661, %v2665, %v2721
        %v2726 = vsel %vm2662, %v2666, %v2722
        %v2727 = vsel %vm2663, %v2667, %v2723
        %v2728 = vsel %vm2664, %v2668, %v2724
        %v2729 = vmax.f32 %v2649, 0.0
        %v2730 = vmax.f32 %v2650, 0.0
        %v2731 = vmax.f32 %v2651, 0.0
        %v2732 = vmax.f32 %v2652, 0.0
        %vm2733 = vcmp.ne.f32.partialorder %v2649, %v2649
        %vm2734 = vcmp.ne.f32.partialorder %v2650, %v2650
        %vm2735 = vcmp.ne.f32.partialorder %v2651, %v2651
        %vm2736 = vcmp.ne.f32.partialorder %v2652, %v2652
        %v2737 = vadd.f32 %v2649, 0.0
        %v2738 = vadd.f32 %v2650, 0.0
        %v2739 = vadd.f32 %v2651, 0.0
        %v2740 = vadd.f32 %v2652, 0.0
        %v2741 = vand.u32 2147483647, %v2649
        %v2742 = vand.u32 2147483647, %v2650
        %v2743 = vand.u32 2147483647, %v2651
        %v2744 = vand.u32 2147483647, %v2652
        %v2745 = vsub.f32 0.0, %v2741
        %v2746 = vsub.f32 0.0, %v2742
        %v2747 = vsub.f32 0.0, %v2743
        %v2748 = vsub.f32 0.0, %v2744
        %v2749 = vmul.f32 %v2745, 1.442695
        %v2750 = vpow.pop %v2749
        %v2751 = vmul.f32 %v2746, 1.442695
        %v2752 = vpow.pop %v2751
        %v2753 = vmul.f32 %v2747, 1.442695
        %v2754 = vpow.pop %v2753
        %v2755 = vmul.f32 %v2748, 1.442695
        %v2756 = vpow.pop %v2755
        %v2757 = vadd.f32 %v2750, 1.0
        %v2758 = vlog2.pop %v2757
        %v2759 = vmul.f32 %v2758, 0.6931472
        %v2760 = vmul.f32 -0.5, %v2750
        %v2761 = vadd.f32 %v2760, 1.0
        %v2762 = vmul.f32 %v2761, %v2750
        %v2763 = vand.u32 2147483647, %v2750
        %vm2764 = vcmp.lt.f32.partialorder %v2763, 0.0004427343
        %v2765 = vsel %vm2764, %v2762, %v2759
        %v2766 = vadd.f32 %v2752, 1.0
        %v2767 = vlog2.pop %v2766
        %v2768 = vmul.f32 %v2767, 0.6931472
        %v2769 = vmul.f32 -0.5, %v2752
        %v2770 = vadd.f32 %v2769, 1.0
        %v2771 = vmul.f32 %v2770, %v2752
        %v2772 = vand.u32 2147483647, %v2752
        %vm2773 = vcmp.lt.f32.partialorder %v2772, 0.0004427343
        %v2774 = vsel %vm2773, %v2771, %v2768
        %v2775 = vadd.f32 %v2754, 1.0
        %v2776 = vlog2.pop %v2775
        %v2777 = vmul.f32 %v2776, 0.6931472
        %v2778 = vmul.f32 -0.5, %v2754
        %v2779 = vadd.f32 %v2778, 1.0
        %v2780 = vmul.f32 %v2779, %v2754
        %v2781 = vand.u32 2147483647, %v2754
        %vm2782 = vcmp.lt.f32.partialorder %v2781, 0.0004427343
        %v2783 = vsel %vm2782, %v2780, %v2777
        %v2784 = vadd.f32 %v2756, 1.0
        %v2785 = vlog2.pop %v2784
        %v2786 = vmul.f32 %v2785, 0.6931472
        %v2787 = vmul.f32 -0.5, %v2756
        %v2788 = vadd.f32 %v2787, 1.0
        %v2789 = vmul.f32 %v2788, %v2756
        %v2790 = vand.u32 2147483647, %v2756
        %vm2791 = vcmp.lt.f32.partialorder %v2790, 0.0004427343
        %v2792 = vsel %vm2791, %v2789, %v2786
        %v2793 = vadd.f32 %v2729, %v2765
        %v2794 = vadd.f32 %v2730, %v2774
        %v2795 = vadd.f32 %v2731, %v2783
        %v2796 = vadd.f32 %v2732, %v2792
        %v2797 = vsel %vm2733, %v2737, %v2793
        %v2798 = vsel %vm2734, %v2738, %v2794
        %v2799 = vsel %vm2735, %v2739, %v2795
        %v2800 = vsel %vm2736, %v2740, %v2796
        %v2801 = vsub.f32 0.0, %v2725
        %v2802 = vsub.f32 0.0, %v2726
        %v2803 = vsub.f32 0.0, %v2727
        %v2804 = vsub.f32 0.0, %v2728
        %v2805 = vsub.f32 0.0, %v2797
        %v2806 = vsub.f32 0.0, %v2798
        %v2807 = vsub.f32 0.0, %v2799
        %v2808 = vsub.f32 0.0, %v2800
        %v2809 = vsub.f32 %v2649, %v2797
        %v2810 = vsub.f32 %v2650, %v2798
        %v2811 = vsub.f32 %v2651, %v2799
        %v2812 = vsub.f32 %v2652, %v2800
        %v2813 = vsub.f32 %v2809, %v2801
        %v2814 = vsub.f32 %v2810, %v2802
        %v2815 = vsub.f32 %v2811, %v2803
        %v2816 = vsub.f32 %v2812, %v2804
        %v2817 = vmin.f32 %v2813, 0.0
        %v2818 = vmin.f32 %v2814, 0.0
        %v2819 = vmin.f32 %v2815, 0.0
        %v2820 = vmin.f32 %v2816, 0.0
        %v2821 = vmul.f32 %v2817, 1.442695
        %v2822 = vpow.pop %v2821
        %v2823 = vmul.f32 %v2818, 1.442695
        %v2824 = vpow.pop %v2823
        %v2825 = vmul.f32 %v2819, 1.442695
        %v2826 = vpow.pop %v2825
        %v2827 = vmul.f32 %v2820, 1.442695
        %v2828 = vpow.pop %v2827
        %v2829 = vsub.f32 0.0, %v2822
        %v2830 = vsub.f32 0.0, %v2824
        %v2831 = vsub.f32 0.0, %v2826
        %v2832 = vsub.f32 0.0, %v2828
        %v2833 = vadd.f32 %v2829, 1.0
        %v2834 = vlog2.pop %v2833
        %v2835 = vmul.f32 %v2834, 0.6931472
        %v2836 = vmul.f32 -0.5, %v2829
        %v2837 = vadd.f32 %v2836, 1.0
        %v2838 = vmul.f32 %v2837, %v2829
        %v2839 = vand.u32 2147483647, %v2829
        %vm2840 = vcmp.lt.f32.partialorder %v2839, 0.0004427343
        %v2841 = vsel %vm2840, %v2838, %v2835
        %v2842 = vadd.f32 %v2830, 1.0
        %v2843 = vlog2.pop %v2842
        %v2844 = vmul.f32 %v2843, 0.6931472
        %v2845 = vmul.f32 -0.5, %v2830
        %v2846 = vadd.f32 %v2845, 1.0
        %v2847 = vmul.f32 %v2846, %v2830
        %v2848 = vand.u32 2147483647, %v2830
        %vm2849 = vcmp.lt.f32.partialorder %v2848, 0.0004427343
        %v2850 = vsel %vm2849, %v2847, %v2844
        %v2851 = vadd.f32 %v2831, 1.0
        %v2852 = vlog2.pop %v2851
        %v2853 = vmul.f32 %v2852, 0.6931472
        %v2854 = vmul.f32 -0.5, %v2831
        %v2855 = vadd.f32 %v2854, 1.0
        %v2856 = vmul.f32 %v2855, %v2831
        %v2857 = vand.u32 2147483647, %v2831
        %vm2858 = vcmp.lt.f32.partialorder %v2857, 0.0004427343
        %v2859 = vsel %vm2858, %v2856, %v2853
        %v2860 = vadd.f32 %v2832, 1.0
        %v2861 = vlog2.pop %v2860
        %v2862 = vmul.f32 %v2861, 0.6931472
        %v2863 = vmul.f32 -0.5, %v2832
        %v2864 = vadd.f32 %v2863, 1.0
        %v2865 = vmul.f32 %v2864, %v2832
        %v2866 = vand.u32 2147483647, %v2832
        %vm2867 = vcmp.lt.f32.partialorder %v2866, 0.0004427343
        %v2868 = vsel %vm2867, %v2865, %v2862
        %v2869 = vadd.f32 %v2801, %v2841
        %v2870 = vadd.f32 %v2802, %v2850
        %v2871 = vadd.f32 %v2803, %v2859
        %v2872 = vadd.f32 %v2804, %v2868
        %v2873 = vmul.f32 %v2630, %v2621
        %v2874 = vmul.f32 %v2632, %v2622
        %v2875 = vmul.f32 %v2634, %v2623
        %v2876 = vmul.f32 %v2636, %v2624
        %v2877 = vsub.f32 %v2873, %v2599
        %v2878 = vsub.f32 %v2874, %v2600
        %v2879 = vsub.f32 %v2875, %v2601
        %v2880 = vsub.f32 %v2876, %v2602
        %v2881 = vmax.f32 %v2873, 0.0
        %v2882 = vmax.f32 %v2874, 0.0
        %v2883 = vmax.f32 %v2875, 0.0
        %v2884 = vmax.f32 %v2876, 0.0
        %vm2885 = vcmp.ne.f32.partialorder %v2873, %v2873
        %vm2886 = vcmp.ne.f32.partialorder %v2874, %v2874
        %vm2887 = vcmp.ne.f32.partialorder %v2875, %v2875
        %vm2888 = vcmp.ne.f32.partialorder %v2876, %v2876
        %v2889 = vadd.f32 %v2873, 0.0
        %v2890 = vadd.f32 %v2874, 0.0
        %v2891 = vadd.f32 %v2875, 0.0
        %v2892 = vadd.f32 %v2876, 0.0
        %v2893 = vand.u32 2147483647, %v2873
        %v2894 = vand.u32 2147483647, %v2874
        %v2895 = vand.u32 2147483647, %v2875
        %v2896 = vand.u32 2147483647, %v2876
        %v2897 = vsub.f32 0.0, %v2893
        %v2898 = vsub.f32 0.0, %v2894
        %v2899 = vsub.f32 0.0, %v2895
        %v2900 = vsub.f32 0.0, %v2896
        %v2901 = vmul.f32 %v2897, 1.442695
        %v2902 = vpow.pop %v2901
        %v2903 = vmul.f32 %v2898, 1.442695
        %v2904 = vpow.pop %v2903
        %v2905 = vmul.f32 %v2899, 1.442695
        %v2906 = vpow.pop %v2905
        %v2907 = vmul.f32 %v2900, 1.442695
        %v2908 = vpow.pop %v2907
        %v2909 = vadd.f32 %v2902, 1.0
        %v2910 = vlog2.pop %v2909
        %v2911 = vmul.f32 %v2910, 0.6931472
        %v2912 = vmul.f32 -0.5, %v2902
        %v2913 = vadd.f32 %v2912, 1.0
        %v2914 = vmul.f32 %v2913, %v2902
        %v2915 = vand.u32 2147483647, %v2902
        %vm2916 = vcmp.lt.f32.partialorder %v2915, 0.0004427343
        %v2917 = vsel %vm2916, %v2914, %v2911
        %v2918 = vadd.f32 %v2904, 1.0
        %v2919 = vlog2.pop %v2918
        %v2920 = vmul.f32 %v2919, 0.6931472
        %v2921 = vmul.f32 -0.5, %v2904
        %v2922 = vadd.f32 %v2921, 1.0
        %v2923 = vmul.f32 %v2922, %v2904
        %v2924 = vand.u32 2147483647, %v2904
        %vm2925 = vcmp.lt.f32.partialorder %v2924, 0.0004427343
        %v2926 = vsel %vm2925, %v2923, %v2920
        %v2927 = vadd.f32 %v2906, 1.0
        %v2928 = vlog2.pop %v2927
        %v2929 = vmul.f32 %v2928, 0.6931472
        %v2930 = vmul.f32 -0.5, %v2906
        %v2931 = vadd.f32 %v2930, 1.0
        %v2932 = vmul.f32 %v2931, %v2906
        %v2933 = vand.u32 2147483647, %v2906
        %vm2934 = vcmp.lt.f32.partialorder %v2933, 0.0004427343
        %v2935 = vsel %vm2934, %v2932, %v2929
        %v2936 = vadd.f32 %v2908, 1.0
        %v2937 = vlog2.pop %v2936
        %v2938 = vmul.f32 %v2937, 0.6931472
        %v2939 = vmul.f32 -0.5, %v2908
        %v2940 = vadd.f32 %v2939, 1.0
        %v2941 = vmul.f32 %v2940, %v2908
        %v2942 = vand.u32 2147483647, %v2908
        %vm2943 = vcmp.lt.f32.partialorder %v2942, 0.0004427343
        %v2944 = vsel %vm2943, %v2941, %v2938
        %v2945 = vadd.f32 %v2881, %v2917
        %v2946 = vadd.f32 %v2882, %v2926
        %v2947 = vadd.f32 %v2883, %v2935
        %v2948 = vadd.f32 %v2884, %v2944
        %v2949 = vsel %vm2885, %v2889, %v2945
        %v2950 = vsel %vm2886, %v2890, %v2946
        %v2951 = vsel %vm2887, %v2891, %v2947
        %v2952 = vsel %vm2888, %v2892, %v2948
        %v2953 = vmul.f32 %v2949, 2.0
        %v2954 = vmul.f32 %v2950, 2.0
        %v2955 = vmul.f32 %v2951, 2.0
        %v2956 = vmul.f32 %v2952, 2.0
        %v2957 = vsub.f32 %v2877, %v2953
        %v2958 = vsub.f32 %v2878, %v2954
        %v2959 = vsub.f32 %v2879, %v2955
        %v2960 = vsub.f32 %v2880, %v2956
        %vm2961 = vcmp.gt.f32.partialorder %v2869, -11.512925
        %vm2962 = vcmp.gt.f32.partialorder %v2870, -11.512925
        %vm2963 = vcmp.gt.f32.partialorder %v2871, -11.512925
        %vm2964 = vcmp.gt.f32.partialorder %v2872, -11.512925
        %v2965 = vsub.f32 %v2957, 4.8481164
        %v2966 = vsub.f32 %v2958, 4.8481164
        %v2967 = vsub.f32 %v2959, 4.8481164
        %v2968 = vsub.f32 %v2960, 4.8481164
        %v2969 = vsel %vm2961, %v2869, %v2965
        %v2970 = vsel %vm2962, %v2870, %v2966
        %v2971 = vsel %vm2963, %v2871, %v2967
        %v2972 = vsel %vm2964, %v2872, %v2968
        %v2973 = vlaneseq
        %v2974 = vshrl.u32 %v2973, 7
        %v2975 = vsub.s32 2, %v2974
        %v2976 = vrot.slane %v1782, %v2975
        %v2977 = vlaneseq
        %v2978 = vshrl.u32 %v2977, 7
        %v2979 = vsub.s32 6, %v2978
        %v2980 = vrot.slane %v1782, %v2979
        %v2981 = vlaneseq
        %v2982 = vshrl.u32 %v2981, 7
        %v2983 = vsub.s32 2, %v2982
        %v2984 = vrot.slane %v2976, %v2983
        %v2985 = vlaneseq
        %v2986 = vshrl.u32 %v2985, 7
        %v2987 = vsub.s32 2, %v2986
        %v2988 = vrot.slane %v2980, %v2987
        %vm2989 = vcmp.eq.s32.totalorder %v2984, 1
        %vm2990 = vcmp.eq.s32.totalorder %v2988, 1
        %v2991 = vsel %vm2989, %v2805, %v2969
        %v2992 = vsel %vm2990, %v2806, %v2970
        %v2993 = vsel %vm2989, %v2807, %v2971
        %v2994 = vsel %vm2990, %v2808, %v2972
        %v2995 = vlaneseq
        %v2996 = vshrl.u32 %v2995, 7
        %v2997 = vsub.s32 2, %v2996
        %v2998 = vrot.slane %v1806, %v2997
        %v2999 = vlaneseq
        %v3000 = vshrl.u32 %v2999, 7
        %v3001 = vsub.s32 6, %v3000
        %v3002 = vrot.slane %v1806, %v3001
        %v3003 = vlaneseq
        %v3004 = vshrl.u32 %v3003, 7
        %v3005 = vsub.s32 2, %v3004
        %v3006 = vrot.slane %v2998, %v3005
        %v3007 = vlaneseq
        %v3008 = vshrl.u32 %v3007, 7
        %v3009 = vsub.s32 2, %v3008
        %v3010 = vrot.slane %v3002, %v3009
        %vm3011 = vcmp.eq.s32.totalorder %v3006, 1
        %vm3012 = vcmp.eq.s32.totalorder %v3010, 1
        %v3013 = vsel %vm3011, %v2801, %v2991
        %v3014 = vsel %vm3012, %v2802, %v2992
        %v3015 = vsel %vm3011, %v2803, %v2993
        %v3016 = vsel %vm3012, %v2804, %v2994
        %v3017 = vadd.f32 %v2363, %v3013
        %v3018 = vadd.f32 %v2364, %v3014
        %v3019 = vadd.f32 %v2365, %v3015
        %v3020 = vadd.f32 %v2366, %v3016
        %v3021 = vmax.f32 %v716, %v722
        %v3022 = vrot.slane %v3021, 4
        %v3023 = vmax.f32 %v3021, %v3022
        %v3024 = vrot.slane %v3023, 2
        %v3025 = vmax.f32 %v3023, %v3024
        %v3026 = vrot.slane %v3025, 1
        %v3027 = vmax.f32 %v3025, %v3026
        %v3028 = vmax.f32 %v718, %v724
        %v3029 = vrot.slane %v3028, 4
        %v3030 = vmax.f32 %v3028, %v3029
        %v3031 = vrot.slane %v3030, 2
        %v3032 = vmax.f32 %v3030, %v3031
        %v3033 = vrot.slane %v3032, 1
        %v3034 = vmax.f32 %v3032, %v3033
        %v3035 = vsub.f32 %v716, %v3027
        %v3036 = vsub.f32 %v718, %v3034
        %v3037 = vsub.f32 %v722, %v3027
        %v3038 = vsub.f32 %v724, %v3034
        %v3039 = vmul.f32 %v3035, 1.442695
        %v3040 = vpow.pop %v3039
        %v3041 = vmul.f32 %v3036, 1.442695
        %v3042 = vpow.pop %v3041
        %v3043 = vmul.f32 %v3037, 1.442695
        %v3044 = vpow.pop %v3043
        %v3045 = vmul.f32 %v3038, 1.442695
        %v3046 = vpow.pop %v3045
        %v3047 = vadd.f32 %v3040, %v3044
        %v3048 = vrot.slane %v3047, 4
        %v3049 = vadd.f32 %v3047, %v3048
        %v3050 = vrot.slane %v3049, 2
        %v3051 = vadd.f32 %v3049, %v3050
        %v3052 = vrot.slane %v3051, 1
        %v3053 = vadd.f32 %v3051, %v3052
        %v3054 = vadd.f32 %v3042, %v3046
        %v3055 = vrot.slane %v3054, 4
        %v3056 = vadd.f32 %v3054, %v3055
        %v3057 = vrot.slane %v3056, 2
        %v3058 = vadd.f32 %v3056, %v3057
        %v3059 = vrot.slane %v3058, 1
        %v3060 = vadd.f32 %v3058, %v3059
        %v3061 = vlog2.pop %v3053
        %v3062 = vmul.f32 %v3061, 0.6931472
        %v3063 = vlog2.pop %v3060
        %v3064 = vmul.f32 %v3063, 0.6931472
        %v3065 = vadd.f32 %v3027, %v3062
        %v3066 = vadd.f32 %v3034, %v3064
        %v3067 = vsub.f32 %v716, %v3065
        %v3068 = vsub.f32 %v718, %v3066
        %v3069 = vsub.f32 %v722, %v3065
        %v3070 = vsub.f32 %v724, %v3066
        %v3071 = vadd.f32 %v3017, %v3067
        %v3072 = vadd.f32 %v3018, %v3068
        %v3073 = vadd.f32 %v3019, %v3069
        %v3074 = vadd.f32 %v3020, %v3070
        %v3075 = vmax.f32 %v3071, %v3073
        %v3076 = vrot.slane %v3075, 4
        %v3077 = vmax.f32 %v3075, %v3076
        %v3078 = vrot.slane %v3077, 2
        %v3079 = vmax.f32 %v3077, %v3078
        %v3080 = vrot.slane %v3079, 1
        %v3081 = vmax.f32 %v3079, %v3080
        %v3082 = vmax.f32 %v3072, %v3074
        %v3083 = vrot.slane %v3082, 4
        %v3084 = vmax.f32 %v3082, %v3083
        %v3085 = vrot.slane %v3084, 2
        %v3086 = vmax.f32 %v3084, %v3085
        %v3087 = vrot.slane %v3086, 1
        %v3088 = vmax.f32 %v3086, %v3087
        %v3089 = vsub.f32 %v3071, %v3081
        %v3090 = vsub.f32 %v3072, %v3088
        %v3091 = vsub.f32 %v3073, %v3081
        %v3092 = vsub.f32 %v3074, %v3088
        %v3093 = vmul.f32 %v3089, 1.442695
        %v3094 = vpow.pop %v3093
        %v3095 = vmul.f32 %v3090, 1.442695
        %v3096 = vpow.pop %v3095
        %v3097 = vmul.f32 %v3091, 1.442695
        %v3098 = vpow.pop %v3097
        %v3099 = vmul.f32 %v3092, 1.442695
        %v3100 = vpow.pop %v3099
        %v3101 = vadd.f32 %v3094, %v3098
        %v3102 = vrot.slane %v3101, 4
        %v3103 = vadd.f32 %v3101, %v3102
        %v3104 = vrot.slane %v3103, 2
        %v3105 = vadd.f32 %v3103, %v3104
        %v3106 = vrot.slane %v3105, 1
        %v3107 = vadd.f32 %v3105, %v3106
        %v3108 = vadd.f32 %v3096, %v3100
        %v3109 = vrot.slane %v3108, 4
        %v3110 = vadd.f32 %v3108, %v3109
        %v3111 = vrot.slane %v3110, 2
        %v3112 = vadd.f32 %v3110, %v3111
        %v3113 = vrot.slane %v3112, 1
        %v3114 = vadd.f32 %v3112, %v3113
        %v3115 = vlog2.pop %v3107
        %v3116 = vmul.f32 %v3115, 0.6931472
        %v3117 = vlog2.pop %v3114
        %v3118 = vmul.f32 %v3117, 0.6931472
        %v3119 = vadd.f32 %v3081, %v3116
        %v3120 = vadd.f32 %v3088, %v3118
        %v3123 = vcombine.low %v3119, %v3120
        %v3125 = vunpack.c.l.s4 1966171168
        %v3126 = vunpack.c.0.s8 %v3125
        %v3127 = vlaneseq
        %v3128 = vshrl.u32 %v3127, 7
        %v3129 = vsub.s32 %v3126, %v3128
        %v3130 = vrot.slane %v3123, %v3129
        %v3132 = vunpack.c.l.s4 1966171168
        %v3133 = vunpack.c.0.s8 %v3132
        %v3134 = vlaneseq
        %v3135 = vshrl.u32 %v3134, 7
        %v3136 = vsub.s32 %v3133, %v3135
        %v3137 = vrot.slane %v3130, %v3136
        %3139 = vst.msk [vmem:[%s377] sm:$0x3] %vm1345, %v3137
        %s3140 = sand.u32 %s198, 1
        %s3141 = scalar_lea.sflag [#allocation3], %s3140
        %s3142 = sand.u32 %s198, 1
        %s3143 = smul.addr %s3142, 2
        %s3144 = scalar_lea.vmem [#allocation2], %s3143
        %s3145 = smul.u32 2, %s27
        %p3146 = scmp.lt.s32.totalorder %s26, 1
        %s3147 = scalar_select %p3146, %s26, 1
        %p3148 = scmp.lt.s32.totalorder %s3145, 1
        %s3149 = scalar_select %p3148, %s3145, 1
        %s3150 = smul.addr %s3147, 2
        %s3151 = sadd.s32 %s3149, %s3150
        %s3152 = smul.addr %s3151, 4
        %s3153 = scalar_lea.vmem %s7, %s3152
        // Predicated region
        $region45: #{tpu_custom_call.1} parent=43 // pred_check
          %p3154 = pneg %p208
        $region46: #{tpu_custom_call.1} parent=43 // pred_check_branch
          %3156 = sbr.rel (%p3154) target = $region48
        $region47: #{tpu_custom_call.1} parent=43 // pred_region
          %s3157 = smul.u32 2, %s27
          %s3159 = ssub.s32 32, 32
          %3160 = vsyncadd %s3141, %s3159
          %s3161 = smul.addr %s26, 2
          %s3162 = sadd.s32 %s3157, %s3161
          %s3163 = smul.addr %s3162, 16
          %s3164 = scalar_lea.hbm %s6, %s3163
          %s3166 = sshll.u32 %s3144, 4
          %s3167 = int_to_ptr.vmem [resolvable:$true] %s3166
          %3169 = dma.vmem_to_hbm [thread:$0]  %s3167, 32, %s3164, %s3141
        $region48: #{tpu_custom_call.1} parent=43 // pred_fallthru
          _
        // Predicated region
        $region49: #{tpu_custom_call.1} parent=43 // pred_check
          %p3170 = pneg %p236
        $region50: #{tpu_custom_call.1} parent=43 // pred_check_branch
          %3172 = sbr.rel (%p3170) target = $region52
        $region51: #{tpu_custom_call.1} parent=43 // pred_region
          %s3173 = smul.u32 2, %s27
        $region52: #{tpu_custom_call.1} parent=43 // pred_fallthru
          _
      $region44: #{tpu_custom_call.1} parent=5 // pred_fallthru
        _
      %p3174 = scmp.le.s32.totalorder 2, %s17
      // Predicated region
      $region53: #{tpu_custom_call.1} parent=5 // pred_check
        %p3175 = pneg %p3174
      $region54: #{tpu_custom_call.1} parent=5 // pred_check_branch
        %3177 = sbr.rel (%p3175) target = $region56
      $region55: #{tpu_custom_call.1} parent=5 // pred_region
        %s3178 = ssub.s32 %s17, 2
        // Predicated region
        $region57: #{tpu_custom_call.1} parent=55 // pred_check
          %p3179 = pneg %p214
        $region58: #{tpu_custom_call.1} parent=55 // pred_check_branch
          %3181 = sbr.rel (%p3179) target = $region60
        $region59: #{tpu_custom_call.1} parent=55 // pred_region
          %s3182 = sand.u32 %s199, 1
          %s3183 = scalar_lea.sflag [#allocation3], %s3182
          %s3184 = sand.u32 %s199, 1
          %s3185 = smul.addr %s3184, 2
          %s3186 = scalar_lea.vmem [#allocation2], %s3185
          %3187 = dma.done %s3183, 32
        $region60: #{tpu_custom_call.1} parent=55 // pred_fallthru
          _
        // Predicated region
        $region61: #{tpu_custom_call.1} parent=55 // pred_check
          %p3188 = pneg %p242
        $region62: #{tpu_custom_call.1} parent=55 // pred_check_branch
          %3190 = sbr.rel (%p3188) target = $region64
        $region63: #{tpu_custom_call.1} parent=55 // pred_region
          %s3191 = smul.u32 2, %s29
          %p3192 = scmp.lt.s32.totalorder %s28, 1
          %s3193 = scalar_select %p3192, %s28, 1
          %p3194 = scmp.lt.s32.totalorder %s3191, 1
          %s3195 = scalar_select %p3194, %s3191, 1
          %s3196 = smul.addr %s3193, 2
          %s3197 = sadd.s32 %s3195, %s3196
          %s3198 = smul.addr %s3197, 4
          %s3199 = scalar_lea.vmem %s7, %s3198
        $region64: #{tpu_custom_call.1} parent=55 // pred_fallthru
          _
      $region56: #{tpu_custom_call.1} parent=5 // pred_fallthru
        _
    $region6: #{tpu_custom_call.1} parent=1 // loop_footer
      %s21 = sadd.s32 1, %s17
    $region7: #{tpu_custom_call.1} parent=1 // loop_footer_branch
      %16 = sbr.rel target = $region3
    $region8: #{tpu_custom_call.1} parent=1 // loop_exit
      _
    %3200 = vsyncpa [#allocation3], 1
    %s3201 = scalar_lea.sflag [#allocation3], 1
    %3202 = vsyncpa %s3201, 1

</llo_original>
